<compile_context>
chip_gen: v7x
topology: tpu7x:2x2x1
jax: 0.10.0
libtpu: 0.0.40
codegen_flags: <defaults>
</compile_context>

<pallas_src>
import functools
import math

import jax
import jax.numpy as jnp
import numpy as np
from jax.experimental import pallas as pl
from jax.experimental.pallas import tpu as pltpu


# ----------------------------- configuration --------------------------------
BSZ = 2
N_INTER = 3          # max number of pCRE interactions
BINS = 8             # max_n_bins
N_FEATS_P = 8
N_FEATS_PCRE = 8
D_MODEL = 32
D_FF = 64
N_HEADS = 2
N_LAYERS = 2
D_K = D_MODEL // N_HEADS
LN_EPS = 1e-5
NEG_INF = -1e9       # masked_fill value for mask == 0


# ----------------------------- helpers (glue) --------------------------------
def sinusoidal_pos_enc(dim, max_len):
    """Matches PairwiseInteractionTransformer._pos_enc."""
    pos = jnp.arange(max_len, dtype=jnp.float32)[:, None]
    k = jnp.exp(-math.log(10000.0) * jnp.arange(0, dim, 2, dtype=jnp.float32) / dim)
    pe = jnp.zeros((max_len, dim), jnp.float32)
    pe = pe.at[:, 0::2].set(jnp.sin(pos * k))
    pe = pe.at[:, 1::2].set(jnp.cos(pos * k))
    return pe


def init_params(key):
    """Deterministic synthetic parameters (weights stored transposed: y = x @ W)."""
    def nrm(k, shape, scale=0.1):
        return scale * jax.random.normal(k, shape, jnp.float32)

    keys = jax.random.split(key, 32)
    it = iter(keys)
    p = {
        "w_proj_p": nrm(next(it), (N_FEATS_P, D_MODEL)),        # Linear(n_feats_p, d_model, bias=False)
        "w_proj_pcre": nrm(next(it), (N_FEATS_PCRE, D_MODEL)),  # Linear(n_feats_pcre, d_model, bias=False)
        "wq": nrm(next(it), (N_LAYERS, D_MODEL, D_MODEL)),
        "bq": nrm(next(it), (N_LAYERS, 1, D_MODEL)),
        "wk": nrm(next(it), (N_LAYERS, D_MODEL, D_MODEL)),
        "bk": nrm(next(it), (N_LAYERS, 1, D_MODEL)),
        "wv": nrm(next(it), (N_LAYERS, D_MODEL, D_MODEL)),
        "bv": nrm(next(it), (N_LAYERS, 1, D_MODEL)),
        "wo": nrm(next(it), (N_LAYERS, D_MODEL, D_MODEL)),
        "bo": nrm(next(it), (N_LAYERS, 1, D_MODEL)),
        "ln1_g": jnp.ones((N_LAYERS, 1, D_MODEL), jnp.float32),
        "ln1_b": jnp.zeros((N_LAYERS, 1, D_MODEL), jnp.float32),
        "w1": nrm(next(it), (N_LAYERS, D_MODEL, D_FF)),
        "b1": nrm(next(it), (N_LAYERS, 1, D_FF)),
        "w2": nrm(next(it), (N_LAYERS, D_FF, D_MODEL)),
        "b2": nrm(next(it), (N_LAYERS, 1, D_MODEL)),
        "ln2_g": jnp.ones((N_LAYERS, 1, D_MODEL), jnp.float32),
        "ln2_b": jnp.zeros((N_LAYERS, 1, D_MODEL), jnp.float32),
    }
    return p


# ------------------------------- Pallas kernel -------------------------------
def pairwise_kernel(xp_ref, xpc_ref, mask_ref, pe_ref,
                    wproj_ref, watt_ref, w1_ref, w2_ref, bvec_ref, b1_ref,
                    out_ref):
    """Processes one group of Bg (promoter, pCRE) pairs per grid step.

    xp_ref   : (1, Bg, N_FEATS_P)        centre-bin promoter features per pair
    xpc_ref  : (1, Bg*BINS, N_FEATS_PCRE) pCRE features (pairs stacked on rows)
    mask_ref : (1, Bg, Bg*BINS)          block-diagonal centre-row attention mask
    pe_ref   : (Bg*BINS, D_MODEL)        positional encoding, tiled per pair
    wproj_ref: (N_FEATS_P + N_FEATS_PCRE, D_MODEL)  [w_proj_p; w_proj_pcre]
    watt_ref : (N_LAYERS, 4, D_MODEL, D_MODEL)      [wq, wk, wv, wo]
    w1_ref   : (N_LAYERS, D_MODEL, D_FF)
    w2_ref   : (N_LAYERS, D_FF, D_MODEL)
    bvec_ref : (N_LAYERS, 9, D_MODEL)    [bq, bk, bv, bo, ln1_g, ln1_b, b2, ln2_g, ln2_b]
    b1_ref   : (N_LAYERS, 1, D_FF)
    out_ref  : (1, Bg, D_MODEL)          centre-bin output of the query stream
    """
    xp = xp_ref[0]        # (Bg, N_FEATS_P)
    xpc = xpc_ref[0]      # (Bg*BINS, N_FEATS_PCRE)
    mask = mask_ref[0]    # (Bg, Bg*BINS)
    pe = pe_ref[...]      # (Bg*BINS, D_MODEL)

    w_proj_p = wproj_ref[0:N_FEATS_P, :]
    w_proj_pcre = wproj_ref[N_FEATS_P:N_FEATS_P + N_FEATS_PCRE, :]

    # input projections (Linear, no bias) + positional encoding on pCRE stream
    x1 = jnp.dot(xp, w_proj_p, preferred_element_type=jnp.float32)          # (Bg, D)
    x2 = jnp.dot(xpc, w_proj_pcre, preferred_element_type=jnp.float32) + pe  # (Bg*BINS, D)

    # mask is an exact 0/1 float; threshold comparison is robust either way.
    masked = mask < 0.5

    def layer_norm(x, g, b):
        mu = jnp.mean(x, axis=-1, keepdims=True)
        var = jnp.mean((x - mu) ** 2, axis=-1, keepdims=True)
        return (x - mu) * jax.lax.rsqrt(var + LN_EPS) * g + b

    inv_sqrt_dk = 1.0 / math.sqrt(D_K)

    for l in range(N_LAYERS):  # static unroll over layers
        bvec = bvec_ref[l]                                   # (9, D_MODEL)
        bq, bk, bv, bo = bvec[0:1], bvec[1:2], bvec[2:3], bvec[3:4]
        ln1_g, ln1_b = bvec[4:5], bvec[5:6]
        b2 = bvec[6:7]
        ln2_g, ln2_b = bvec[7:8], bvec[8:9]
        b1 = b1_ref[l]                                       # (1, D_FF)

        # scale folded into q once (covers both heads)
        q = (jnp.dot(x1, watt_ref[l, 0], preferred_element_type=jnp.float32)
             + bq) * inv_sqrt_dk                             # (Bg, D)
        k = jnp.dot(x2, watt_ref[l, 1], preferred_element_type=jnp.float32) + bk
        v = jnp.dot(x2, watt_ref[l, 2], preferred_element_type=jnp.float32) + bv

        # multi-head cross attention; heads via static lane slicing, head
        # contexts concatenated and projected with a single full Wo dot.
        ctx = []
        for h in range(N_HEADS):
            lo, hi = h * D_K, (h + 1) * D_K
            # q @ k^T without an explicit transpose (contract last dims)
            s = jax.lax.dot_general(q[:, lo:hi], k[:, lo:hi],
                                    (((1,), (1,)), ((), ())),
                                    preferred_element_type=jnp.float32)  # (Bg, Bg*BINS)
            s = jnp.where(masked, jnp.float32(NEG_INF), s)
            s = s - jnp.max(s, axis=-1, keepdims=True)
            p = jnp.exp(s)
            p = p / jnp.sum(p, axis=-1, keepdims=True)
            ctx.append(jnp.dot(p, v[:, lo:hi],
                               preferred_element_type=jnp.float32))      # (Bg, D_K)
        o = jnp.concatenate(ctx, axis=-1)                                # (Bg, D)
        att = jnp.dot(o, watt_ref[l, 3], preferred_element_type=jnp.float32) + bo

        # residual + LayerNorm, then ReLU feed-forward + residual + LayerNorm
        x1 = layer_norm(x1 + att, ln1_g, ln1_b)
        h1 = jnp.maximum(jnp.dot(x1, w1_ref[l], preferred_element_type=jnp.float32)
                         + b1, 0.0)
        ff = jnp.dot(h1, w2_ref[l], preferred_element_type=jnp.float32) + b2
        x1 = layer_norm(x1 + ff, ln2_g, ln2_b)

    out_ref[0] = x1                                                      # (Bg, D)


# ------------------------------- wrapper --------------------------------------
@jax.jit
def pairwise_interaction_transformer(params, x_p, x_pcre, mask):
    bsz, n_inter, bins, n_feats_pcre = x_pcre.shape
    n_feats_p = x_p.shape[-1]
    B = bsz * n_inter
    c = bins // 2

    # two parallel grid steps when possible (feeds both v7x TensorCores);
    # otherwise a single step.
    G = 2 if (B % 2 == 0) else 1
    Bg = B // G

    # --- glue (mirrors the PyTorch view/expand/reshape), plus pruning/packing ---
    # Centre-bin query rows only: query rows are independent through attention
    # (each score row uses only its own q row), FF/LayerNorm are row-wise and
    # the module output only reads bin bins//2.
    xp_c = jnp.broadcast_to(x_p, (bsz, n_inter, bins, n_feats_p))[:, :, c, :]
    xp_c = xp_c.reshape(G, Bg, n_feats_p)

    xpc_g = x_pcre.reshape(G, Bg * bins, n_feats_pcre)

    # centre-row attention mask, expanded to a block-diagonal (Bg, Bg*bins)
    # mask per group so all pairs in a group share one score matrix.
    mask_c = mask.reshape(B, bins, bins)[:, c, :].astype(jnp.float32)    # (B, bins)
    mask_c = mask_c.reshape(G, Bg, bins)
    eye = jnp.eye(Bg, dtype=jnp.float32)
    mask_g = (eye[None, :, :, None] * mask_c[:, None, :, :]).reshape(G, Bg, Bg * bins)

    pe = sinusoidal_pos_enc(D_MODEL, bins)                   # (bins, D_MODEL)
    pe_tiled = jnp.tile(pe, (Bg, 1))                         # (Bg*bins, D_MODEL)

    # --- pack 18 parameter arrays into 6 slabs (fewer DMAs, resident weights) ---
    wproj = jnp.concatenate([params["w_proj_p"], params["w_proj_pcre"]], axis=0)
    watt = jnp.stack([params["wq"], params["wk"], params["wv"], params["wo"]],
                     axis=1)                                  # (L, 4, D, D)
    bvec = jnp.concatenate([params["bq"], params["bk"], params["bv"], params["bo"],
                            params["ln1_g"], params["ln1_b"], params["b2"],
                            params["ln2_g"], params["ln2_b"]], axis=1)  # (L, 9, D)
    w1 = params["w1"]                                         # (L, D, D_FF)
    w2 = params["w2"]                                         # (L, D_FF, D)
    b1 = params["b1"]                                         # (L, 1, D_FF)

    def const_spec(shape):
        n = len(shape)
        return pl.BlockSpec(shape, lambda g, _n=n: (0,) * _n)

    out = pl.pallas_call(
        pairwise_kernel,
        out_shape=jax.ShapeDtypeStruct((G, Bg, D_MODEL), jnp.float32),
        grid=(G,),
        in_specs=[
            pl.BlockSpec((1, Bg, n_feats_p), lambda g: (g, 0, 0)),
            pl.BlockSpec((1, Bg * bins, n_feats_pcre), lambda g: (g, 0, 0)),
            pl.BlockSpec((1, Bg, Bg * bins), lambda g: (g, 0, 0)),
            const_spec(pe_tiled.shape),
            const_spec(wproj.shape),
            const_spec(watt.shape),
            const_spec(w1.shape),
            const_spec(w2.shape),
            const_spec(bvec.shape),
            const_spec(b1.shape),
        ],
        out_specs=pl.BlockSpec((1, Bg, D_MODEL), lambda g: (g, 0, 0)),
        compiler_params=pltpu.CompilerParams(dimension_semantics=("parallel",)),
    )(xp_c, xpc_g, mask_g, pe_tiled, wproj, watt, w1, w2, bvec, b1)

    return out.reshape(bsz, n_inter, D_MODEL)


# --------------------------- plain-JAX reference ------------------------------
def reference_forward(params, x_p, x_pcre, mask):
    bsz, n_inter, bins, nfc = x_pcre.shape
    nfp = x_p.shape[-1]
    B = bsz * n_inter
    xp = jnp.broadcast_to(x_p, (bsz, n_inter, bins, nfp)).reshape(B, bins, nfp)
    xpc = x_pcre.reshape(B, bins, nfc)
    m = mask.reshape(B, bins, bins).astype(jnp.float32)
    pe = sinusoidal_pos_enc(D_MODEL, bins)

    x1 = xp @ params["w_proj_p"]
    x2 = xpc @ params["w_proj_pcre"] + pe[None]

    def ln(x, g, b):
        mu = x.mean(-1, keepdims=True)
        var = ((x - mu) ** 2).mean(-1, keepdims=True)
        return (x - mu) * jax.lax.rsqrt(var + LN_EPS) * g + b

    for l in range(N_LAYERS):
        q = x1 @ params["wq"][l] + params["bq"][l]
        k = x2 @ params["wk"][l] + params["bk"][l]
        v = x2 @ params["wv"][l] + params["bv"][l]
        qh = q.reshape(B, bins, N_HEADS, D_K).transpose(0, 2, 1, 3)
        kh = k.reshape(B, bins, N_HEADS, D_K).transpose(0, 2, 1, 3)
        vh = v.reshape(B, bins, N_HEADS, D_K).transpose(0, 2, 1, 3)
        s = jnp.einsum("bhqd,bhkd->bhqk", qh, kh) / math.sqrt(D_K)
        s = jnp.where(m[:, None] == 0.0, NEG_INF, s)
        p = jax.nn.softmax(s, axis=-1)
        o = jnp.einsum("bhqk,bhkd->bhqd", p, vh).transpose(0, 2, 1, 3).reshape(B, bins, D_MODEL)
        att = o @ params["wo"][l] + params["bo"][l]
        x1 = ln(x1 + att, params["ln1_g"][l], params["ln1_b"][l])
        ff = jnp.maximum(x1 @ params["w1"][l] + params["b1"][l], 0.0) @ params["w2"][l] + params["b2"][l]
        x1 = ln(x1 + ff, params["ln2_g"][l], params["ln2_b"][l])

    x = x1.reshape(bsz, n_inter, bins, D_MODEL)
    return x[:, :, bins // 2]


# ---------------------------------- main --------------------------------------
if __name__ == "__main__":
    key = jax.random.PRNGKey(0)
    k_par, k_xp, k_xpc, k_mask = jax.random.split(key, 4)

    params = init_params(k_par)

    x_p = jax.random.normal(k_xp, (BSZ, 1, BINS, N_FEATS_P), jnp.float32)
    x_pcre = jax.random.normal(k_xpc, (BSZ, N_INTER, BINS, N_FEATS_PCRE), jnp.float32)
    # 0/1 attention mask; guarantee at least one valid key per row
    mask = (jax.random.uniform(k_mask, (BSZ, N_INTER, 1, BINS, BINS)) < 0.7).astype(jnp.float32)
    mask = mask.at[..., 0].set(1.0)

    out = pairwise_interaction_transformer(params, x_p, x_pcre, mask)
    out = jax.block_until_ready(out)

    ref = jax.block_until_ready(reference_forward(params, x_p, x_pcre, mask))
    np.testing.assert_allclose(np.asarray(out), np.asarray(ref), rtol=1e-4, atol=1e-4)

    assert out.shape == (BSZ, N_INTER, D_MODEL)
    print("KERNEL_OK")
</pallas_src>

<mosaic_0001>
module attributes {stable_mosaic.version = 11 : i64} {
  func.func @pairwise_kernel(%arg0: i32, %arg1: memref<1x3x8xf32, #tpu.memory_space<vmem>>, %arg2: memref<1x24x8xf32, #tpu.memory_space<vmem>>, %arg3: memref<1x3x24xf32, #tpu.memory_space<vmem>>, %arg4: memref<24x32xf32, #tpu.memory_space<vmem>>, %arg5: memref<16x32xf32, #tpu.memory_space<vmem>>, %arg6: memref<2x4x32x32xf32, #tpu.memory_space<vmem>>, %arg7: memref<2x32x64xf32, #tpu.memory_space<vmem>>, %arg8: memref<2x64x32xf32, #tpu.memory_space<vmem>>, %arg9: memref<2x9x32xf32, #tpu.memory_space<vmem>>, %arg10: memref<2x1x64xf32, #tpu.memory_space<vmem>>, %arg11: memref<1x3x32xf32, #tpu.memory_space<vmem>>) attributes {dimension_semantics = [#tpu.dimension_semantics<parallel>], iteration_bounds = array<i64: 2>, scalar_prefetch = 0 : i64, scratch_operands = 0 : i64, tpu.core_type = #tpu.core_type<tc>, window_params = [{transform_indices = @transform_0, window_bounds = array<i64: 1, 3, 8>}, {transform_indices = @transform_1, window_bounds = array<i64: 1, 24, 8>}, {transform_indices = @transform_2, window_bounds = array<i64: 1, 3, 24>}, {pipeline_mode = #tpu.pipeline_mode<synchronous>, transform_indices = @transform_3, window_bounds = array<i64: 24, 32>}, {pipeline_mode = #tpu.pipeline_mode<synchronous>, transform_indices = @transform_4, window_bounds = array<i64: 16, 32>}, {pipeline_mode = #tpu.pipeline_mode<synchronous>, transform_indices = @transform_5, window_bounds = array<i64: 2, 4, 32, 32>}, {pipeline_mode = #tpu.pipeline_mode<synchronous>, transform_indices = @transform_6, window_bounds = array<i64: 2, 32, 64>}, {pipeline_mode = #tpu.pipeline_mode<synchronous>, transform_indices = @transform_7, window_bounds = array<i64: 2, 64, 32>}, {pipeline_mode = #tpu.pipeline_mode<synchronous>, transform_indices = @transform_8, window_bounds = array<i64: 2, 9, 32>}, {pipeline_mode = #tpu.pipeline_mode<synchronous>, transform_indices = @transform_9, window_bounds = array<i64: 2, 1, 64>}, {transform_indices = @transform_10, window_bounds = array<i64: 1, 3, 32>}]} {
    %c0 = arith.constant 0 : index
    %c0_0 = arith.constant 0 : index
    %c0_1 = arith.constant 0 : index
    %0 = vector.load %arg1[%c0, %c0_0, %c0_1] : memref<1x3x8xf32, #tpu.memory_space<vmem>>, vector<1x3x8xf32>
    %1 = vector.shape_cast %0 : vector<1x3x8xf32> to vector<3x8xf32>
    %c0_2 = arith.constant 0 : index
    %c0_3 = arith.constant 0 : index
    %c0_4 = arith.constant 0 : index
    %2 = vector.load %arg2[%c0_2, %c0_3, %c0_4] : memref<1x24x8xf32, #tpu.memory_space<vmem>>, vector<1x24x8xf32>
    %3 = vector.shape_cast %2 : vector<1x24x8xf32> to vector<24x8xf32>
    %c0_5 = arith.constant 0 : index
    %c0_6 = arith.constant 0 : index
    %c0_7 = arith.constant 0 : index
    %4 = vector.load %arg3[%c0_5, %c0_6, %c0_7] : memref<1x3x24xf32, #tpu.memory_space<vmem>>, vector<1x3x24xf32>
    %5 = vector.shape_cast %4 : vector<1x3x24xf32> to vector<3x24xf32>
    %c0_8 = arith.constant 0 : index
    %c0_9 = arith.constant 0 : index
    %6 = vector.load %arg4[%c0_8, %c0_9] : memref<24x32xf32, #tpu.memory_space<vmem>>, vector<24x32xf32>
    %c0_10 = arith.constant 0 : index
    %c0_11 = arith.constant 0 : index
    %7 = vector.load %arg5[%c0_10, %c0_11] : memref<16x32xf32, #tpu.memory_space<vmem>>, vector<8x32xf32>
    %c8 = arith.constant 8 : index
    %c0_12 = arith.constant 0 : index
    %8 = vector.load %arg5[%c8, %c0_12] : memref<16x32xf32, #tpu.memory_space<vmem>>, vector<8x32xf32>
    %cst = arith.constant dense<0.000000e+00> : vector<3x32xf32>
    %9 = tpu.matmul %1, %7, %cst {dimension_numbers = #tpu.dot_dimension_numbers<[1], [0], [0], [1], [0, 0, 1, 1], [], []>} : vector<3x8xf32>, vector<8x32xf32>, vector<3x32xf32> -> vector<3x32xf32>
    %cst_13 = arith.constant dense<0.000000e+00> : vector<24x32xf32>
    %10 = tpu.matmul %3, %8, %cst_13 {dimension_numbers = #tpu.dot_dimension_numbers<[1], [0], [0], [1], [0, 0, 1, 1], [], []>} : vector<24x8xf32>, vector<8x32xf32>, vector<24x32xf32> -> vector<24x32xf32>
    %11 = arith.addf %10, %6 : vector<24x32xf32>
    %cst_14 = arith.constant 5.000000e-01 : f32
    %12 = vector.broadcast %cst_14 : f32 to vector<3x24xf32>
    %13 = arith.cmpf olt, %5, %12 : vector<3x24xf32>
    %c0_15 = arith.constant 0 : index
    %c0_16 = arith.constant 0 : index
    %c0_17 = arith.constant 0 : index
    %14 = vector.load %arg9[%c0_15, %c0_16, %c0_17] : memref<2x9x32xf32, #tpu.memory_space<vmem>>, vector<1x9x32xf32>
    %15 = vector.shape_cast %14 : vector<1x9x32xf32> to vector<9x32xf32>
    %16 = vector.extract_strided_slice %15 {offsets = [0, 0], sizes = [1, 32], strides = [1, 1]} : vector<9x32xf32> to vector<1x32xf32>
    %17 = vector.extract_strided_slice %15 {offsets = [1, 0], sizes = [1, 32], strides = [1, 1]} : vector<9x32xf32> to vector<1x32xf32>
    %18 = vector.extract_strided_slice %15 {offsets = [2, 0], sizes = [1, 32], strides = [1, 1]} : vector<9x32xf32> to vector<1x32xf32>
    %19 = vector.extract_strided_slice %15 {offsets = [3, 0], sizes = [1, 32], strides = [1, 1]} : vector<9x32xf32> to vector<1x32xf32>
    %20 = vector.extract_strided_slice %15 {offsets = [4, 0], sizes = [1, 32], strides = [1, 1]} : vector<9x32xf32> to vector<1x32xf32>
    %21 = vector.extract_strided_slice %15 {offsets = [5, 0], sizes = [1, 32], strides = [1, 1]} : vector<9x32xf32> to vector<1x32xf32>
    %22 = vector.extract_strided_slice %15 {offsets = [6, 0], sizes = [1, 32], strides = [1, 1]} : vector<9x32xf32> to vector<1x32xf32>
    %23 = vector.extract_strided_slice %15 {offsets = [7, 0], sizes = [1, 32], strides = [1, 1]} : vector<9x32xf32> to vector<1x32xf32>
    %24 = vector.extract_strided_slice %15 {offsets = [8, 0], sizes = [1, 32], strides = [1, 1]} : vector<9x32xf32> to vector<1x32xf32>
    %c0_18 = arith.constant 0 : index
    %c0_19 = arith.constant 0 : index
    %c0_20 = arith.constant 0 : index
    %25 = vector.load %arg10[%c0_18, %c0_19, %c0_20] : memref<2x1x64xf32, #tpu.memory_space<vmem>>, vector<1x1x64xf32>
    %26 = vector.shape_cast %25 : vector<1x1x64xf32> to vector<1x64xf32>
    %c0_21 = arith.constant 0 : index
    %c0_22 = arith.constant 0 : index
    %c0_23 = arith.constant 0 : index
    %c0_24 = arith.constant 0 : index
    %27 = vector.load %arg6[%c0_21, %c0_22, %c0_23, %c0_24] : memref<2x4x32x32xf32, #tpu.memory_space<vmem>>, vector<1x1x32x32xf32>
    %28 = vector.shape_cast %27 : vector<1x1x32x32xf32> to vector<32x32xf32>
    %cst_25 = arith.constant dense<0.000000e+00> : vector<3x32xf32>
    %29 = tpu.matmul %9, %28, %cst_25 {dimension_numbers = #tpu.dot_dimension_numbers<[1], [0], [0], [1], [0, 0, 1, 1], [], []>} : vector<3x32xf32>, vector<32x32xf32>, vector<3x32xf32> -> vector<3x32xf32>
    %30 = vector.broadcast %16 : vector<1x32xf32> to vector<3x32xf32>
    %31 = arith.addf %29, %30 : vector<3x32xf32>
    %cst_26 = arith.constant 2.500000e-01 : f32
    %32 = vector.broadcast %cst_26 : f32 to vector<3x32xf32>
    %33 = arith.mulf %31, %32 : vector<3x32xf32>
    %c0_27 = arith.constant 0 : index
    %c1 = arith.constant 1 : index
    %c0_28 = arith.constant 0 : index
    %c0_29 = arith.constant 0 : index
    %34 = vector.load %arg6[%c0_27, %c1, %c0_28, %c0_29] : memref<2x4x32x32xf32, #tpu.memory_space<vmem>>, vector<1x1x32x32xf32>
    %35 = vector.shape_cast %34 : vector<1x1x32x32xf32> to vector<32x32xf32>
    %cst_30 = arith.constant dense<0.000000e+00> : vector<24x32xf32>
    %36 = tpu.matmul %11, %35, %cst_30 {dimension_numbers = #tpu.dot_dimension_numbers<[1], [0], [0], [1], [0, 0, 1, 1], [], []>} : vector<24x32xf32>, vector<32x32xf32>, vector<24x32xf32> -> vector<24x32xf32>
    %37 = vector.broadcast %17 : vector<1x32xf32> to vector<24x32xf32>
    %38 = arith.addf %36, %37 : vector<24x32xf32>
    %c0_31 = arith.constant 0 : index
    %c2 = arith.constant 2 : index
    %c0_32 = arith.constant 0 : index
    %c0_33 = arith.constant 0 : index
    %39 = vector.load %arg6[%c0_31, %c2, %c0_32, %c0_33] : memref<2x4x32x32xf32, #tpu.memory_space<vmem>>, vector<1x1x32x32xf32>
    %40 = vector.shape_cast %39 : vector<1x1x32x32xf32> to vector<32x32xf32>
    %cst_34 = arith.constant dense<0.000000e+00> : vector<24x32xf32>
    %41 = tpu.matmul %11, %40, %cst_34 {dimension_numbers = #tpu.dot_dimension_numbers<[1], [0], [0], [1], [0, 0, 1, 1], [], []>} : vector<24x32xf32>, vector<32x32xf32>, vector<24x32xf32> -> vector<24x32xf32>
    %42 = vector.broadcast %18 : vector<1x32xf32> to vector<24x32xf32>
    %43 = arith.addf %41, %42 : vector<24x32xf32>
    %44 = vector.extract_strided_slice %33 {offsets = [0, 0], sizes = [3, 16], strides = [1, 1]} : vector<3x32xf32> to vector<3x16xf32>
    %45 = vector.extract_strided_slice %38 {offsets = [0, 0], sizes = [24, 16], strides = [1, 1]} : vector<24x32xf32> to vector<24x16xf32>
    %cst_35 = arith.constant dense<0.000000e+00> : vector<3x24xf32>
    %46 = tpu.matmul %44, %45, %cst_35 {dimension_numbers = #tpu.dot_dimension_numbers<[1], [1], [0], [0], [0, 0, 1, 0], [], []>} : vector<3x16xf32>, vector<24x16xf32>, vector<3x24xf32> -> vector<3x24xf32>
    %cst_36 = arith.constant -1.000000e+09 : f32
    %47 = vector.broadcast %cst_36 : f32 to vector<3x24xf32>
    %48 = arith.select %13, %47, %46 : vector<3x24xi1>, vector<3x24xf32>
    %cst_37 = arith.constant dense<0xFF800000> : vector<3xf32>
    %49 = vector.multi_reduction <maximumf>, %48, %cst_37 [1] : vector<3x24xf32> to vector<3xf32>
    %50 = vector.shape_cast %49 : vector<3xf32> to vector<3x1xf32>
    %51 = vector.broadcast %50 : vector<3x1xf32> to vector<3x24xf32>
    %52 = arith.subf %48, %51 : vector<3x24xf32>
    %53 = math.exp %52 : vector<3x24xf32>
    %cst_38 = arith.constant dense<0.000000e+00> : vector<3xf32>
    %54 = vector.multi_reduction <add>, %53, %cst_38 [1] : vector<3x24xf32> to vector<3xf32>
    %55 = vector.shape_cast %54 : vector<3xf32> to vector<3x1xf32>
    %56 = vector.broadcast %55 : vector<3x1xf32> to vector<3x24xf32>
    %57 = arith.divf %53, %56 : vector<3x24xf32>
    %58 = vector.extract_strided_slice %43 {offsets = [0, 0], sizes = [24, 16], strides = [1, 1]} : vector<24x32xf32> to vector<24x16xf32>
    %cst_39 = arith.constant dense<0.000000e+00> : vector<3x16xf32>
    %59 = tpu.matmul %57, %58, %cst_39 {dimension_numbers = #tpu.dot_dimension_numbers<[1], [0], [0], [1], [0, 0, 1, 1], [], []>} : vector<3x24xf32>, vector<24x16xf32>, vector<3x16xf32> -> vector<3x16xf32>
    %60 = vector.extract_strided_slice %33 {offsets = [0, 16], sizes = [3, 16], strides = [1, 1]} : vector<3x32xf32> to vector<3x16xf32>
    %61 = vector.extract_strided_slice %38 {offsets = [0, 16], sizes = [24, 16], strides = [1, 1]} : vector<24x32xf32> to vector<24x16xf32>
    %cst_40 = arith.constant dense<0.000000e+00> : vector<3x24xf32>
    %62 = tpu.matmul %60, %61, %cst_40 {dimension_numbers = #tpu.dot_dimension_numbers<[1], [1], [0], [0], [0, 0, 1, 0], [], []>} : vector<3x16xf32>, vector<24x16xf32>, vector<3x24xf32> -> vector<3x24xf32>
    %cst_41 = arith.constant -1.000000e+09 : f32
    %63 = vector.broadcast %cst_41 : f32 to vector<3x24xf32>
    %64 = arith.select %13, %63, %62 : vector<3x24xi1>, vector<3x24xf32>
    %cst_42 = arith.constant dense<0xFF800000> : vector<3xf32>
    %65 = vector.multi_reduction <maximumf>, %64, %cst_42 [1] : vector<3x24xf32> to vector<3xf32>
    %66 = vector.shape_cast %65 : vector<3xf32> to vector<3x1xf32>
    %67 = vector.broadcast %66 : vector<3x1xf32> to vector<3x24xf32>
    %68 = arith.subf %64, %67 : vector<3x24xf32>
    %69 = math.exp %68 : vector<3x24xf32>
    %cst_43 = arith.constant dense<0.000000e+00> : vector<3xf32>
    %70 = vector.multi_reduction <add>, %69, %cst_43 [1] : vector<3x24xf32> to vector<3xf32>
    %71 = vector.shape_cast %70 : vector<3xf32> to vector<3x1xf32>
    %72 = vector.broadcast %71 : vector<3x1xf32> to vector<3x24xf32>
    %73 = arith.divf %69, %72 : vector<3x24xf32>
    %74 = vector.extract_strided_slice %43 {offsets = [0, 16], sizes = [24, 16], strides = [1, 1]} : vector<24x32xf32> to vector<24x16xf32>
    %cst_44 = arith.constant dense<0.000000e+00> : vector<3x16xf32>
    %75 = tpu.matmul %73, %74, %cst_44 {dimension_numbers = #tpu.dot_dimension_numbers<[1], [0], [0], [1], [0, 0, 1, 1], [], []>} : vector<3x24xf32>, vector<24x16xf32>, vector<3x16xf32> -> vector<3x16xf32>
    %76 = tpu.concatenate %59, %75 in 1 : vector<3x16xf32>, vector<3x16xf32> -> vector<3x32xf32>
    %c0_45 = arith.constant 0 : index
    %c3 = arith.constant 3 : index
    %c0_46 = arith.constant 0 : index
    %c0_47 = arith.constant 0 : index
    %77 = vector.load %arg6[%c0_45, %c3, %c0_46, %c0_47] : memref<2x4x32x32xf32, #tpu.memory_space<vmem>>, vector<1x1x32x32xf32>
    %78 = vector.shape_cast %77 : vector<1x1x32x32xf32> to vector<32x32xf32>
    %cst_48 = arith.constant dense<0.000000e+00> : vector<3x32xf32>
    %79 = tpu.matmul %76, %78, %cst_48 {dimension_numbers = #tpu.dot_dimension_numbers<[1], [0], [0], [1], [0, 0, 1, 1], [], []>} : vector<3x32xf32>, vector<32x32xf32>, vector<3x32xf32> -> vector<3x32xf32>
    %80 = vector.broadcast %19 : vector<1x32xf32> to vector<3x32xf32>
    %81 = arith.addf %79, %80 : vector<3x32xf32>
    %82 = arith.addf %9, %81 : vector<3x32xf32>
    %cst_49 = arith.constant dense<0.000000e+00> : vector<3xf32>
    %83 = vector.multi_reduction <add>, %82, %cst_49 [1] : vector<3x32xf32> to vector<3xf32>
    %84 = vector.shape_cast %83 : vector<3xf32> to vector<3x1xf32>
    %cst_50 = arith.constant 3.200000e+01 : f32
    %85 = vector.broadcast %cst_50 : f32 to vector<3x1xf32>
    %86 = arith.divf %84, %85 : vector<3x1xf32>
    %87 = vector.broadcast %86 : vector<3x1xf32> to vector<3x32xf32>
    %88 = arith.subf %82, %87 : vector<3x32xf32>
    %89 = arith.mulf %88, %88 : vector<3x32xf32>
    %cst_51 = arith.constant dense<0.000000e+00> : vector<3xf32>
    %90 = vector.multi_reduction <add>, %89, %cst_51 [1] : vector<3x32xf32> to vector<3xf32>
    %91 = vector.shape_cast %90 : vector<3xf32> to vector<3x1xf32>
    %cst_52 = arith.constant 3.200000e+01 : f32
    %92 = vector.broadcast %cst_52 : f32 to vector<3x1xf32>
    %93 = arith.divf %91, %92 : vector<3x1xf32>
    %94 = vector.broadcast %86 : vector<3x1xf32> to vector<3x32xf32>
    %95 = arith.subf %82, %94 : vector<3x32xf32>
    %cst_53 = arith.constant 9.99999974E-6 : f32
    %96 = vector.broadcast %cst_53 : f32 to vector<3x1xf32>
    %97 = arith.addf %93, %96 : vector<3x1xf32>
    %98 = math.rsqrt %97 : vector<3x1xf32>
    %99 = vector.broadcast %98 : vector<3x1xf32> to vector<3x32xf32>
    %100 = arith.mulf %95, %99 : vector<3x32xf32>
    %101 = vector.broadcast %20 : vector<1x32xf32> to vector<3x32xf32>
    %102 = arith.mulf %100, %101 : vector<3x32xf32>
    %103 = vector.broadcast %21 : vector<1x32xf32> to vector<3x32xf32>
    %104 = arith.addf %102, %103 : vector<3x32xf32>
    %c0_54 = arith.constant 0 : index
    %c0_55 = arith.constant 0 : index
    %c0_56 = arith.constant 0 : index
    %105 = vector.load %arg7[%c0_54, %c0_55, %c0_56] : memref<2x32x64xf32, #tpu.memory_space<vmem>>, vector<1x32x64xf32>
    %106 = vector.shape_cast %105 : vector<1x32x64xf32> to vector<32x64xf32>
    %cst_57 = arith.constant dense<0.000000e+00> : vector<3x64xf32>
    %107 = tpu.matmul %104, %106, %cst_57 {dimension_numbers = #tpu.dot_dimension_numbers<[1], [0], [0], [1], [0, 0, 1, 1], [], []>} : vector<3x32xf32>, vector<32x64xf32>, vector<3x64xf32> -> vector<3x64xf32>
    %108 = vector.broadcast %26 : vector<1x64xf32> to vector<3x64xf32>
    %109 = arith.addf %107, %108 : vector<3x64xf32>
    %cst_58 = arith.constant 0.000000e+00 : f32
    %110 = vector.broadcast %cst_58 : f32 to vector<3x64xf32>
    %111 = arith.maximumf %109, %110 : vector<3x64xf32>
    %c0_59 = arith.constant 0 : index
    %c0_60 = arith.constant 0 : index
    %c0_61 = arith.constant 0 : index
    %112 = vector.load %arg8[%c0_59, %c0_60, %c0_61] : memref<2x64x32xf32, #tpu.memory_space<vmem>>, vector<1x64x32xf32>
    %113 = vector.shape_cast %112 : vector<1x64x32xf32> to vector<64x32xf32>
    %cst_62 = arith.constant dense<0.000000e+00> : vector<3x32xf32>
    %114 = tpu.matmul %111, %113, %cst_62 {dimension_numbers = #tpu.dot_dimension_numbers<[1], [0], [0], [1], [0, 0, 1, 1], [], []>} : vector<3x64xf32>, vector<64x32xf32>, vector<3x32xf32> -> vector<3x32xf32>
    %115 = vector.broadcast %22 : vector<1x32xf32> to vector<3x32xf32>
    %116 = arith.addf %114, %115 : vector<3x32xf32>
    %117 = arith.addf %104, %116 : vector<3x32xf32>
    %cst_63 = arith.constant dense<0.000000e+00> : vector<3xf32>
    %118 = vector.multi_reduction <add>, %117, %cst_63 [1] : vector<3x32xf32> to vector<3xf32>
    %119 = vector.shape_cast %118 : vector<3xf32> to vector<3x1xf32>
    %cst_64 = arith.constant 3.200000e+01 : f32
    %120 = vector.broadcast %cst_64 : f32 to vector<3x1xf32>
    %121 = arith.divf %119, %120 : vector<3x1xf32>
    %122 = vector.broadcast %121 : vector<3x1xf32> to vector<3x32xf32>
    %123 = arith.subf %117, %122 : vector<3x32xf32>
    %124 = arith.mulf %123, %123 : vector<3x32xf32>
    %cst_65 = arith.constant dense<0.000000e+00> : vector<3xf32>
    %125 = vector.multi_reduction <add>, %124, %cst_65 [1] : vector<3x32xf32> to vector<3xf32>
    %126 = vector.shape_cast %125 : vector<3xf32> to vector<3x1xf32>
    %cst_66 = arith.constant 3.200000e+01 : f32
    %127 = vector.broadcast %cst_66 : f32 to vector<3x1xf32>
    %128 = arith.divf %126, %127 : vector<3x1xf32>
    %129 = vector.broadcast %121 : vector<3x1xf32> to vector<3x32xf32>
    %130 = arith.subf %117, %129 : vector<3x32xf32>
    %cst_67 = arith.constant 9.99999974E-6 : f32
    %131 = vector.broadcast %cst_67 : f32 to vector<3x1xf32>
    %132 = arith.addf %128, %131 : vector<3x1xf32>
    %133 = math.rsqrt %132 : vector<3x1xf32>
    %134 = vector.broadcast %133 : vector<3x1xf32> to vector<3x32xf32>
    %135 = arith.mulf %130, %134 : vector<3x32xf32>
    %136 = vector.broadcast %23 : vector<1x32xf32> to vector<3x32xf32>
    %137 = arith.mulf %135, %136 : vector<3x32xf32>
    %138 = vector.broadcast %24 : vector<1x32xf32> to vector<3x32xf32>
    %139 = arith.addf %137, %138 : vector<3x32xf32>
    %c1_68 = arith.constant 1 : index
    %c0_69 = arith.constant 0 : index
    %c0_70 = arith.constant 0 : index
    %140 = vector.load %arg9[%c1_68, %c0_69, %c0_70] : memref<2x9x32xf32, #tpu.memory_space<vmem>>, vector<1x9x32xf32>
    %141 = vector.shape_cast %140 : vector<1x9x32xf32> to vector<9x32xf32>
    %142 = vector.extract_strided_slice %141 {offsets = [0, 0], sizes = [1, 32], strides = [1, 1]} : vector<9x32xf32> to vector<1x32xf32>
    %143 = vector.extract_strided_slice %141 {offsets = [1, 0], sizes = [1, 32], strides = [1, 1]} : vector<9x32xf32> to vector<1x32xf32>
    %144 = vector.extract_strided_slice %141 {offsets = [2, 0], sizes = [1, 32], strides = [1, 1]} : vector<9x32xf32> to vector<1x32xf32>
    %145 = vector.extract_strided_slice %141 {offsets = [3, 0], sizes = [1, 32], strides = [1, 1]} : vector<9x32xf32> to vector<1x32xf32>
    %146 = vector.extract_strided_slice %141 {offsets = [4, 0], sizes = [1, 32], strides = [1, 1]} : vector<9x32xf32> to vector<1x32xf32>
    %147 = vector.extract_strided_slice %141 {offsets = [5, 0], sizes = [1, 32], strides = [1, 1]} : vector<9x32xf32> to vector<1x32xf32>
    %148 = vector.extract_strided_slice %141 {offsets = [6, 0], sizes = [1, 32], strides = [1, 1]} : vector<9x32xf32> to vector<1x32xf32>
    %149 = vector.extract_strided_slice %141 {offsets = [7, 0], sizes = [1, 32], strides = [1, 1]} : vector<9x32xf32> to vector<1x32xf32>
    %150 = vector.extract_strided_slice %141 {offsets = [8, 0], sizes = [1, 32], strides = [1, 1]} : vector<9x32xf32> to vector<1x32xf32>
    %c1_71 = arith.constant 1 : index
    %c0_72 = arith.constant 0 : index
    %c0_73 = arith.constant 0 : index
    %151 = vector.load %arg10[%c1_71, %c0_72, %c0_73] : memref<2x1x64xf32, #tpu.memory_space<vmem>>, vector<1x1x64xf32>
    %152 = vector.shape_cast %151 : vector<1x1x64xf32> to vector<1x64xf32>
    %c1_74 = arith.constant 1 : index
    %c0_75 = arith.constant 0 : index
    %c0_76 = arith.constant 0 : index
    %c0_77 = arith.constant 0 : index
    %153 = vector.load %arg6[%c1_74, %c0_75, %c0_76, %c0_77] : memref<2x4x32x32xf32, #tpu.memory_space<vmem>>, vector<1x1x32x32xf32>
    %154 = vector.shape_cast %153 : vector<1x1x32x32xf32> to vector<32x32xf32>
    %cst_78 = arith.constant dense<0.000000e+00> : vector<3x32xf32>
    %155 = tpu.matmul %139, %154, %cst_78 {dimension_numbers = #tpu.dot_dimension_numbers<[1], [0], [0], [1], [0, 0, 1, 1], [], []>} : vector<3x32xf32>, vector<32x32xf32>, vector<3x32xf32> -> vector<3x32xf32>
    %156 = vector.broadcast %142 : vector<1x32xf32> to vector<3x32xf32>
    %157 = arith.addf %155, %156 : vector<3x32xf32>
    %cst_79 = arith.constant 2.500000e-01 : f32
    %158 = vector.broadcast %cst_79 : f32 to vector<3x32xf32>
    %159 = arith.mulf %157, %158 : vector<3x32xf32>
    %c1_80 = arith.constant 1 : index
    %c1_81 = arith.constant 1 : index
    %c0_82 = arith.constant 0 : index
    %c0_83 = arith.constant 0 : index
    %160 = vector.load %arg6[%c1_80, %c1_81, %c0_82, %c0_83] : memref<2x4x32x32xf32, #tpu.memory_space<vmem>>, vector<1x1x32x32xf32>
    %161 = vector.shape_cast %160 : vector<1x1x32x32xf32> to vector<32x32xf32>
    %cst_84 = arith.constant dense<0.000000e+00> : vector<24x32xf32>
    %162 = tpu.matmul %11, %161, %cst_84 {dimension_numbers = #tpu.dot_dimension_numbers<[1], [0], [0], [1], [0, 0, 1, 1], [], []>} : vector<24x32xf32>, vector<32x32xf32>, vector<24x32xf32> -> vector<24x32xf32>
    %163 = vector.broadcast %143 : vector<1x32xf32> to vector<24x32xf32>
    %164 = arith.addf %162, %163 : vector<24x32xf32>
    %c1_85 = arith.constant 1 : index
    %c2_86 = arith.constant 2 : index
    %c0_87 = arith.constant 0 : index
    %c0_88 = arith.constant 0 : index
    %165 = vector.load %arg6[%c1_85, %c2_86, %c0_87, %c0_88] : memref<2x4x32x32xf32, #tpu.memory_space<vmem>>, vector<1x1x32x32xf32>
    %166 = vector.shape_cast %165 : vector<1x1x32x32xf32> to vector<32x32xf32>
    %cst_89 = arith.constant dense<0.000000e+00> : vector<24x32xf32>
    %167 = tpu.matmul %11, %166, %cst_89 {dimension_numbers = #tpu.dot_dimension_numbers<[1], [0], [0], [1], [0, 0, 1, 1], [], []>} : vector<24x32xf32>, vector<32x32xf32>, vector<24x32xf32> -> vector<24x32xf32>
    %168 = vector.broadcast %144 : vector<1x32xf32> to vector<24x32xf32>
    %169 = arith.addf %167, %168 : vector<24x32xf32>
    %170 = vector.extract_strided_slice %159 {offsets = [0, 0], sizes = [3, 16], strides = [1, 1]} : vector<3x32xf32> to vector<3x16xf32>
    %171 = vector.extract_strided_slice %164 {offsets = [0, 0], sizes = [24, 16], strides = [1, 1]} : vector<24x32xf32> to vector<24x16xf32>
    %cst_90 = arith.constant dense<0.000000e+00> : vector<3x24xf32>
    %172 = tpu.matmul %170, %171, %cst_90 {dimension_numbers = #tpu.dot_dimension_numbers<[1], [1], [0], [0], [0, 0, 1, 0], [], []>} : vector<3x16xf32>, vector<24x16xf32>, vector<3x24xf32> -> vector<3x24xf32>
    %cst_91 = arith.constant -1.000000e+09 : f32
    %173 = vector.broadcast %cst_91 : f32 to vector<3x24xf32>
    %174 = arith.select %13, %173, %172 : vector<3x24xi1>, vector<3x24xf32>
    %cst_92 = arith.constant dense<0xFF800000> : vector<3xf32>
    %175 = vector.multi_reduction <maximumf>, %174, %cst_92 [1] : vector<3x24xf32> to vector<3xf32>
    %176 = vector.shape_cast %175 : vector<3xf32> to vector<3x1xf32>
    %177 = vector.broadcast %176 : vector<3x1xf32> to vector<3x24xf32>
    %178 = arith.subf %174, %177 : vector<3x24xf32>
    %179 = math.exp %178 : vector<3x24xf32>
    %cst_93 = arith.constant dense<0.000000e+00> : vector<3xf32>
    %180 = vector.multi_reduction <add>, %179, %cst_93 [1] : vector<3x24xf32> to vector<3xf32>
    %181 = vector.shape_cast %180 : vector<3xf32> to vector<3x1xf32>
    %182 = vector.broadcast %181 : vector<3x1xf32> to vector<3x24xf32>
    %183 = arith.divf %179, %182 : vector<3x24xf32>
    %184 = vector.extract_strided_slice %169 {offsets = [0, 0], sizes = [24, 16], strides = [1, 1]} : vector<24x32xf32> to vector<24x16xf32>
    %cst_94 = arith.constant dense<0.000000e+00> : vector<3x16xf32>
    %185 = tpu.matmul %183, %184, %cst_94 {dimension_numbers = #tpu.dot_dimension_numbers<[1], [0], [0], [1], [0, 0, 1, 1], [], []>} : vector<3x24xf32>, vector<24x16xf32>, vector<3x16xf32> -> vector<3x16xf32>
    %186 = vector.extract_strided_slice %159 {offsets = [0, 16], sizes = [3, 16], strides = [1, 1]} : vector<3x32xf32> to vector<3x16xf32>
    %187 = vector.extract_strided_slice %164 {offsets = [0, 16], sizes = [24, 16], strides = [1, 1]} : vector<24x32xf32> to vector<24x16xf32>
    %cst_95 = arith.constant dense<0.000000e+00> : vector<3x24xf32>
    %188 = tpu.matmul %186, %187, %cst_95 {dimension_numbers = #tpu.dot_dimension_numbers<[1], [1], [0], [0], [0, 0, 1, 0], [], []>} : vector<3x16xf32>, vector<24x16xf32>, vector<3x24xf32> -> vector<3x24xf32>
    %cst_96 = arith.constant -1.000000e+09 : f32
    %189 = vector.broadcast %cst_96 : f32 to vector<3x24xf32>
    %190 = arith.select %13, %189, %188 : vector<3x24xi1>, vector<3x24xf32>
    %cst_97 = arith.constant dense<0xFF800000> : vector<3xf32>
    %191 = vector.multi_reduction <maximumf>, %190, %cst_97 [1] : vector<3x24xf32> to vector<3xf32>
    %192 = vector.shape_cast %191 : vector<3xf32> to vector<3x1xf32>
    %193 = vector.broadcast %192 : vector<3x1xf32> to vector<3x24xf32>
    %194 = arith.subf %190, %193 : vector<3x24xf32>
    %195 = math.exp %194 : vector<3x24xf32>
    %cst_98 = arith.constant dense<0.000000e+00> : vector<3xf32>
    %196 = vector.multi_reduction <add>, %195, %cst_98 [1] : vector<3x24xf32> to vector<3xf32>
    %197 = vector.shape_cast %196 : vector<3xf32> to vector<3x1xf32>
    %198 = vector.broadcast %197 : vector<3x1xf32> to vector<3x24xf32>
    %199 = arith.divf %195, %198 : vector<3x24xf32>
    %200 = vector.extract_strided_slice %169 {offsets = [0, 16], sizes = [24, 16], strides = [1, 1]} : vector<24x32xf32> to vector<24x16xf32>
    %cst_99 = arith.constant dense<0.000000e+00> : vector<3x16xf32>
    %201 = tpu.matmul %199, %200, %cst_99 {dimension_numbers = #tpu.dot_dimension_numbers<[1], [0], [0], [1], [0, 0, 1, 1], [], []>} : vector<3x24xf32>, vector<24x16xf32>, vector<3x16xf32> -> vector<3x16xf32>
    %202 = tpu.concatenate %185, %201 in 1 : vector<3x16xf32>, vector<3x16xf32> -> vector<3x32xf32>
    %c1_100 = arith.constant 1 : index
    %c3_101 = arith.constant 3 : index
    %c0_102 = arith.constant 0 : index
    %c0_103 = arith.constant 0 : index
    %203 = vector.load %arg6[%c1_100, %c3_101, %c0_102, %c0_103] : memref<2x4x32x32xf32, #tpu.memory_space<vmem>>, vector<1x1x32x32xf32>
    %204 = vector.shape_cast %203 : vector<1x1x32x32xf32> to vector<32x32xf32>
    %cst_104 = arith.constant dense<0.000000e+00> : vector<3x32xf32>
    %205 = tpu.matmul %202, %204, %cst_104 {dimension_numbers = #tpu.dot_dimension_numbers<[1], [0], [0], [1], [0, 0, 1, 1], [], []>} : vector<3x32xf32>, vector<32x32xf32>, vector<3x32xf32> -> vector<3x32xf32>
    %206 = vector.broadcast %145 : vector<1x32xf32> to vector<3x32xf32>
    %207 = arith.addf %205, %206 : vector<3x32xf32>
    %208 = arith.addf %139, %207 : vector<3x32xf32>
    %cst_105 = arith.constant dense<0.000000e+00> : vector<3xf32>
    %209 = vector.multi_reduction <add>, %208, %cst_105 [1] : vector<3x32xf32> to vector<3xf32>
    %210 = vector.shape_cast %209 : vector<3xf32> to vector<3x1xf32>
    %cst_106 = arith.constant 3.200000e+01 : f32
    %211 = vector.broadcast %cst_106 : f32 to vector<3x1xf32>
    %212 = arith.divf %210, %211 : vector<3x1xf32>
    %213 = vector.broadcast %212 : vector<3x1xf32> to vector<3x32xf32>
    %214 = arith.subf %208, %213 : vector<3x32xf32>
    %215 = arith.mulf %214, %214 : vector<3x32xf32>
    %cst_107 = arith.constant dense<0.000000e+00> : vector<3xf32>
    %216 = vector.multi_reduction <add>, %215, %cst_107 [1] : vector<3x32xf32> to vector<3xf32>
    %217 = vector.shape_cast %216 : vector<3xf32> to vector<3x1xf32>
    %cst_108 = arith.constant 3.200000e+01 : f32
    %218 = vector.broadcast %cst_108 : f32 to vector<3x1xf32>
    %219 = arith.divf %217, %218 : vector<3x1xf32>
    %220 = vector.broadcast %212 : vector<3x1xf32> to vector<3x32xf32>
    %221 = arith.subf %208, %220 : vector<3x32xf32>
    %cst_109 = arith.constant 9.99999974E-6 : f32
    %222 = vector.broadcast %cst_109 : f32 to vector<3x1xf32>
    %223 = arith.addf %219, %222 : vector<3x1xf32>
    %224 = math.rsqrt %223 : vector<3x1xf32>
    %225 = vector.broadcast %224 : vector<3x1xf32> to vector<3x32xf32>
    %226 = arith.mulf %221, %225 : vector<3x32xf32>
    %227 = vector.broadcast %146 : vector<1x32xf32> to vector<3x32xf32>
    %228 = arith.mulf %226, %227 : vector<3x32xf32>
    %229 = vector.broadcast %147 : vector<1x32xf32> to vector<3x32xf32>
    %230 = arith.addf %228, %229 : vector<3x32xf32>
    %c1_110 = arith.constant 1 : index
    %c0_111 = arith.constant 0 : index
    %c0_112 = arith.constant 0 : index
    %231 = vector.load %arg7[%c1_110, %c0_111, %c0_112] : memref<2x32x64xf32, #tpu.memory_space<vmem>>, vector<1x32x64xf32>
    %232 = vector.shape_cast %231 : vector<1x32x64xf32> to vector<32x64xf32>
    %cst_113 = arith.constant dense<0.000000e+00> : vector<3x64xf32>
    %233 = tpu.matmul %230, %232, %cst_113 {dimension_numbers = #tpu.dot_dimension_numbers<[1], [0], [0], [1], [0, 0, 1, 1], [], []>} : vector<3x32xf32>, vector<32x64xf32>, vector<3x64xf32> -> vector<3x64xf32>
    %234 = vector.broadcast %152 : vector<1x64xf32> to vector<3x64xf32>
    %235 = arith.addf %233, %234 : vector<3x64xf32>
    %cst_114 = arith.constant 0.000000e+00 : f32
    %236 = vector.broadcast %cst_114 : f32 to vector<3x64xf32>
    %237 = arith.maximumf %235, %236 : vector<3x64xf32>
    %c1_115 = arith.constant 1 : index
    %c0_116 = arith.constant 0 : index
    %c0_117 = arith.constant 0 : index
    %238 = vector.load %arg8[%c1_115, %c0_116, %c0_117] : memref<2x64x32xf32, #tpu.memory_space<vmem>>, vector<1x64x32xf32>
    %239 = vector.shape_cast %238 : vector<1x64x32xf32> to vector<64x32xf32>
    %cst_118 = arith.constant dense<0.000000e+00> : vector<3x32xf32>
    %240 = tpu.matmul %237, %239, %cst_118 {dimension_numbers = #tpu.dot_dimension_numbers<[1], [0], [0], [1], [0, 0, 1, 1], [], []>} : vector<3x64xf32>, vector<64x32xf32>, vector<3x32xf32> -> vector<3x32xf32>
    %241 = vector.broadcast %148 : vector<1x32xf32> to vector<3x32xf32>
    %242 = arith.addf %240, %241 : vector<3x32xf32>
    %243 = arith.addf %230, %242 : vector<3x32xf32>
    %cst_119 = arith.constant dense<0.000000e+00> : vector<3xf32>
    %244 = vector.multi_reduction <add>, %243, %cst_119 [1] : vector<3x32xf32> to vector<3xf32>
    %245 = vector.shape_cast %244 : vector<3xf32> to vector<3x1xf32>
    %cst_120 = arith.constant 3.200000e+01 : f32
    %246 = vector.broadcast %cst_120 : f32 to vector<3x1xf32>
    %247 = arith.divf %245, %246 : vector<3x1xf32>
    %248 = vector.broadcast %247 : vector<3x1xf32> to vector<3x32xf32>
    %249 = arith.subf %243, %248 : vector<3x32xf32>
    %250 = arith.mulf %249, %249 : vector<3x32xf32>
    %cst_121 = arith.constant dense<0.000000e+00> : vector<3xf32>
    %251 = vector.multi_reduction <add>, %250, %cst_121 [1] : vector<3x32xf32> to vector<3xf32>
    %252 = vector.shape_cast %251 : vector<3xf32> to vector<3x1xf32>
    %cst_122 = arith.constant 3.200000e+01 : f32
    %253 = vector.broadcast %cst_122 : f32 to vector<3x1xf32>
    %254 = arith.divf %252, %253 : vector<3x1xf32>
    %255 = vector.broadcast %247 : vector<3x1xf32> to vector<3x32xf32>
    %256 = arith.subf %243, %255 : vector<3x32xf32>
    %cst_123 = arith.constant 9.99999974E-6 : f32
    %257 = vector.broadcast %cst_123 : f32 to vector<3x1xf32>
    %258 = arith.addf %254, %257 : vector<3x1xf32>
    %259 = math.rsqrt %258 : vector<3x1xf32>
    %260 = vector.broadcast %259 : vector<3x1xf32> to vector<3x32xf32>
    %261 = arith.mulf %256, %260 : vector<3x32xf32>
    %262 = vector.broadcast %149 : vector<1x32xf32> to vector<3x32xf32>
    %263 = arith.mulf %261, %262 : vector<3x32xf32>
    %264 = vector.broadcast %150 : vector<1x32xf32> to vector<3x32xf32>
    %265 = arith.addf %263, %264 : vector<3x32xf32>
    %c0_124 = arith.constant 0 : index
    %c0_125 = arith.constant 0 : index
    %c0_126 = arith.constant 0 : index
    %266 = vector.load %arg11[%c0_124, %c0_125, %c0_126] : memref<1x3x32xf32, #tpu.memory_space<vmem>>, vector<1x3x32xf32>
    %267 = vector.shape_cast %266 : vector<1x3x32xf32> to vector<3x32xf32>
    %268 = vector.shape_cast %265 : vector<3x32xf32> to vector<1x3x32xf32>
    tpu.vector_store %arg11[%c0_124, %c0_125, %c0_126], %268 {strides = array<i32>} : memref<1x3x32xf32, #tpu.memory_space<vmem>>, vector<1x3x32xf32>,
    return
  }
  func.func @transform_0(%arg0: i32) -> (i32, i32, i32) {
    %c0_i32 = arith.constant 0 : i32
    %c0_i32_0 = arith.constant 0 : i32
    %c0_i32_1 = arith.constant 0 : i32
    return %arg0, %c0_i32, %c0_i32_0 : i32, i32, i32
  }
  func.func @transform_1(%arg0: i32) -> (i32, i32, i32) {
    %c0_i32 = arith.constant 0 : i32
    %c0_i32_0 = arith.constant 0 : i32
    %c0_i32_1 = arith.constant 0 : i32
    return %arg0, %c0_i32, %c0_i32_0 : i32, i32, i32
  }
  func.func @transform_2(%arg0: i32) -> (i32, i32, i32) {
    %c0_i32 = arith.constant 0 : i32
    %c0_i32_0 = arith.constant 0 : i32
    %c0_i32_1 = arith.constant 0 : i32
    return %arg0, %c0_i32, %c0_i32_0 : i32, i32, i32
  }
  func.func @transform_3(%arg0: i32) -> (i32, i32) {
    %c0_i32 = arith.constant 0 : i32
    %c0_i32_0 = arith.constant 0 : i32
    %c0_i32_1 = arith.constant 0 : i32
    return %c0_i32, %c0_i32_0 : i32, i32
  }
  func.func @transform_4(%arg0: i32) -> (i32, i32) {
    %c0_i32 = arith.constant 0 : i32
    %c0_i32_0 = arith.constant 0 : i32
    %c0_i32_1 = arith.constant 0 : i32
    return %c0_i32, %c0_i32_0 : i32, i32
  }
  func.func @transform_5(%arg0: i32) -> (i32, i32, i32, i32) {
    %c0_i32 = arith.constant 0 : i32
    %c0_i32_0 = arith.constant 0 : i32
    %c0_i32_1 = arith.constant 0 : i32
    %c0_i32_2 = arith.constant 0 : i32
    %c0_i32_3 = arith.constant 0 : i32
    return %c0_i32, %c0_i32_0, %c0_i32_1, %c0_i32_2 : i32, i32, i32, i32
  }
  func.func @transform_6(%arg0: i32) -> (i32, i32, i32) {
    %c0_i32 = arith.constant 0 : i32
    %c0_i32_0 = arith.constant 0 : i32
    %c0_i32_1 = arith.constant 0 : i32
    %c0_i32_2 = arith.constant 0 : i32
    return %c0_i32, %c0_i32_0, %c0_i32_1 : i32, i32, i32
  }
  func.func @transform_7(%arg0: i32) -> (i32, i32, i32) {
    %c0_i32 = arith.constant 0 : i32
    %c0_i32_0 = arith.constant 0 : i32
    %c0_i32_1 = arith.constant 0 : i32
    %c0_i32_2 = arith.constant 0 : i32
    return %c0_i32, %c0_i32_0, %c0_i32_1 : i32, i32, i32
  }
  func.func @transform_8(%arg0: i32) -> (i32, i32, i32) {
    %c0_i32 = arith.constant 0 : i32
    %c0_i32_0 = arith.constant 0 : i32
    %c0_i32_1 = arith.constant 0 : i32
    %c0_i32_2 = arith.constant 0 : i32
    return %c0_i32, %c0_i32_0, %c0_i32_1 : i32, i32, i32
  }
  func.func @transform_9(%arg0: i32) -> (i32, i32, i32) {
    %c0_i32 = arith.constant 0 : i32
    %c0_i32_0 = arith.constant 0 : i32
    %c0_i32_1 = arith.constant 0 : i32
    %c0_i32_2 = arith.constant 0 : i32
    return %c0_i32, %c0_i32_0, %c0_i32_1 : i32, i32, i32
  }
  func.func @transform_10(%arg0: i32) -> (i32, i32, i32) {
    %c0_i32 = arith.constant 0 : i32
    %c0_i32_0 = arith.constant 0 : i32
    %c0_i32_1 = arith.constant 0 : i32
    return %arg0, %c0_i32, %c0_i32_0 : i32, i32, i32
  }
}

</mosaic_0001>

<llo_original>
// kernel: pairwise_interaction_transformer.1
$region0: #{pairwise_interaction_transformer.1}
  #allocation0 [shape = 'u32[]', space=smem, size = 0x4, offset = 0x4, fixed_abs, tag = 'smem constant byte address 0x4 - core index']
  #allocation1 [shape = 'u32[144,128]{1,0:T(1,128)}', space=vmem, size = 0x12000, scoped, tag = 'internal scratch']
  %s0 = inlined_call_operand.vmem [shape: f32[2,3,8], index: 0, kind: input, shape index: {}]
  %s1 = inlined_call_operand.vmem [shape: f32[2,24,8], index: 1, kind: input, shape index: {}]
  %s2 = inlined_call_operand.vmem [shape: f32[2,3,24], index: 2, kind: input, shape index: {}]
  %s3 = inlined_call_operand.vmem [shape: f32[24,32], index: 3, kind: input, shape index: {}]
  %s4 = inlined_call_operand.vmem [shape: f32[16,32], index: 4, kind: input, shape index: {}]
  %s5 = inlined_call_operand.vmem [shape: f32[2,4,32,32], index: 5, kind: input, shape index: {}]
  %s6 = inlined_call_operand.vmem [shape: f32[2,32,64], index: 6, kind: input, shape index: {}]
  %s7 = inlined_call_operand.vmem [shape: f32[2,64,32], index: 7, kind: input, shape index: {}]
  %s8 = inlined_call_operand.vmem [shape: f32[2,9,32], index: 8, kind: input, shape index: {}]
  %s9 = inlined_call_operand.vmem [shape: f32[2,1,64], index: 9, kind: input, shape index: {}]
  %s10 = inlined_call_operand.vmem [shape: f32[2,3,32], index: 10, kind: output, shape index: {}]
  %s11 = sld [smem:[#allocation0]]
  $region73: #{pairwise_interaction_transformer.1} parent=0
    _
  %s13 = ssub.s32 1, %s11
  %s14 = scalar_select 0, %s13, %s11
  loop: start=0, step=1, limit=4
  $region2: #{pairwise_interaction_transformer.1} parent=0 // loop_pre_header
    _
  $region3: #{pairwise_interaction_transformer.1} parent=0 // loop_header
    %s16 = sphi 0, %s20
    %p17 = scmp.ge.s32.totalorder %s16, 4
    %s26 = sphi 0, %s28
    %s29 = sphi 0, %s26
    %s30 = sphi 0, %s29
    %s46 = sphi 0, %s30
    %s52 = sphi 0, %s54
    %s55 = sphi 0, %s52
    %s56 = sphi 0, %s55
    %s72 = sphi 0, %s56
    %s78 = sphi 0, %s80
    %s81 = sphi 0, %s78
    %s82 = sphi 0, %s81
    %s98 = sphi 0, %s82
    %s102 = sphi 0, %s102
    %s104 = sphi 0, %s102
    %s105 = sphi 0, %s104
    %s119 = sphi 0, %s105
    %s123 = sphi 0, %s123
    %s125 = sphi 0, %s123
    %s126 = sphi 0, %s125
    %s140 = sphi 0, %s126
    %s144 = sphi 0, %s144
    %s146 = sphi 0, %s144
    %s147 = sphi 0, %s146
    %s161 = sphi 0, %s147
    %s165 = sphi 0, %s165
    %s167 = sphi 0, %s165
    %s168 = sphi 0, %s167
    %s182 = sphi 0, %s168
    %s186 = sphi 0, %s186
    %s188 = sphi 0, %s186
    %s189 = sphi 0, %s188
    %s203 = sphi 0, %s189
    %s207 = sphi 0, %s207
    %s209 = sphi 0, %s207
    %s210 = sphi 0, %s209
    %s224 = sphi 0, %s210
    %s228 = sphi 0, %s228
    %s230 = sphi 0, %s228
    %s231 = sphi 0, %s230
    %s245 = sphi 0, %s231
    %s251 = sphi 0, %s253
    %s254 = sphi 0, %s251
    %s255 = sphi 0, %s254
    %s271 = sphi 0, %s255
  $region4: #{pairwise_interaction_transformer.1} parent=0 // loop_header_branch
    %19 = sbr.rel (%p17) target = $region8
  $region5: #{pairwise_interaction_transformer.1} parent=0 // loop_body
    %s21 = ssub.s32 %s16, 1
    %s22 = ssub.s32 %s16, 2
    %s23 = sadd.s32 %s16, 1
    %s24 = ssub.s32 %s16, %s23
    %p25 = scmp.eq.s32.totalorder %s24, 0
    %s27 = sadd.s32 %s26, 1
    %s28 = scalar_select %p25, %s26, %s27
    %p31 = pneg %p25
    %p32 = scmp.eq.s32.totalorder %s16, 1
    %p33 = por %p31, %p32
    %p34 = scmp.ne.s32.totalorder %s26, %s29
    %p35 = scmp.eq.s32.totalorder %s16, 0
    %p36 = por %p34, %p35
    %p37 = scmp.ne.s32.totalorder %s26, %s29
    %p38 = scmp.eq.s32.totalorder %s21, 1
    %p39 = por %p37, %p38
    %p40 = scmp.ne.s32.totalorder %s29, %s30
    %p41 = scmp.eq.s32.totalorder %s21, 0
    %p42 = por %p40, %p41
    %p43 = scmp.ne.s32.totalorder %s29, %s30
    %p44 = scmp.eq.s32.totalorder %s22, 1
    %p45 = por %p43, %p44
    %p47 = scmp.ne.s32.totalorder %s30, %s46
    %p48 = scmp.eq.s32.totalorder %s22, 0
    %p49 = por %p47, %p48
    %s50 = ssub.s32 %s16, %s23
    %p51 = scmp.eq.s32.totalorder %s50, 0
    %s53 = sadd.s32 %s52, 1
    %s54 = scalar_select %p51, %s52, %s53
    %p57 = pneg %p51
    %p58 = scmp.eq.s32.totalorder %s16, 1
    %p59 = por %p57, %p58
    %p60 = scmp.ne.s32.totalorder %s52, %s55
    %p61 = scmp.eq.s32.totalorder %s16, 0
    %p62 = por %p60, %p61
    %p63 = scmp.ne.s32.totalorder %s52, %s55
    %p64 = scmp.eq.s32.totalorder %s21, 1
    %p65 = por %p63, %p64
    %p66 = scmp.ne.s32.totalorder %s55, %s56
    %p67 = scmp.eq.s32.totalorder %s21, 0
    %p68 = por %p66, %p67
    %p69 = scmp.ne.s32.totalorder %s55, %s56
    %p70 = scmp.eq.s32.totalorder %s22, 1
    %p71 = por %p69, %p70
    %p73 = scmp.ne.s32.totalorder %s56, %s72
    %p74 = scmp.eq.s32.totalorder %s22, 0
    %p75 = por %p73, %p74
    %s76 = ssub.s32 %s16, %s23
    %p77 = scmp.eq.s32.totalorder %s76, 0
    %s79 = sadd.s32 %s78, 1
    %s80 = scalar_select %p77, %s78, %s79
    %p83 = pneg %p77
    %p84 = scmp.eq.s32.totalorder %s16, 1
    %p85 = por %p83, %p84
    %p86 = scmp.ne.s32.totalorder %s78, %s81
    %p87 = scmp.eq.s32.totalorder %s16, 0
    %p88 = por %p86, %p87
    %p89 = scmp.ne.s32.totalorder %s78, %s81
    %p90 = scmp.eq.s32.totalorder %s21, 1
    %p91 = por %p89, %p90
    %p92 = scmp.ne.s32.totalorder %s81, %s82
    %p93 = scmp.eq.s32.totalorder %s21, 0
    %p94 = por %p92, %p93
    %p95 = scmp.ne.s32.totalorder %s81, %s82
    %p96 = scmp.eq.s32.totalorder %s22, 1
    %p97 = por %p95, %p96
    %p99 = scmp.ne.s32.totalorder %s82, %s98
    %p100 = scmp.eq.s32.totalorder %s22, 0
    %p101 = por %p99, %p100
    %s103 = sadd.s32 %s102, 1
    %p106 = scmp.eq.s32.totalorder %s16, 1
    %p107 = scmp.ne.s32.totalorder %s102, %s104
    %p108 = scmp.eq.s32.totalorder %s16, 0
    %p109 = por %p107, %p108
    %p110 = scmp.ne.s32.totalorder %s102, %s104
    %p111 = scmp.eq.s32.totalorder %s21, 1
    %p112 = por %p110, %p111
    %p113 = scmp.ne.s32.totalorder %s104, %s105
    %p114 = scmp.eq.s32.totalorder %s21, 0
    %p115 = por %p113, %p114
    %p116 = scmp.ne.s32.totalorder %s104, %s105
    %p117 = scmp.eq.s32.totalorder %s22, 1
    %p118 = por %p116, %p117
    %p120 = scmp.ne.s32.totalorder %s105, %s119
    %p121 = scmp.eq.s32.totalorder %s22, 0
    %p122 = por %p120, %p121
    %s124 = sadd.s32 %s123, 1
    %p127 = scmp.eq.s32.totalorder %s16, 1
    %p128 = scmp.ne.s32.totalorder %s123, %s125
    %p129 = scmp.eq.s32.totalorder %s16, 0
    %p130 = por %p128, %p129
    %p131 = scmp.ne.s32.totalorder %s123, %s125
    %p132 = scmp.eq.s32.totalorder %s21, 1
    %p133 = por %p131, %p132
    %p134 = scmp.ne.s32.totalorder %s125, %s126
    %p135 = scmp.eq.s32.totalorder %s21, 0
    %p136 = por %p134, %p135
    %p137 = scmp.ne.s32.totalorder %s125, %s126
    %p138 = scmp.eq.s32.totalorder %s22, 1
    %p139 = por %p137, %p138
    %p141 = scmp.ne.s32.totalorder %s126, %s140
    %p142 = scmp.eq.s32.totalorder %s22, 0
    %p143 = por %p141, %p142
    %s145 = sadd.s32 %s144, 1
    %p148 = scmp.eq.s32.totalorder %s16, 1
    %p149 = scmp.ne.s32.totalorder %s144, %s146
    %p150 = scmp.eq.s32.totalorder %s16, 0
    %p151 = por %p149, %p150
    %p152 = scmp.ne.s32.totalorder %s144, %s146
    %p153 = scmp.eq.s32.totalorder %s21, 1
    %p154 = por %p152, %p153
    %p155 = scmp.ne.s32.totalorder %s146, %s147
    %p156 = scmp.eq.s32.totalorder %s21, 0
    %p157 = por %p155, %p156
    %p158 = scmp.ne.s32.totalorder %s146, %s147
    %p159 = scmp.eq.s32.totalorder %s22, 1
    %p160 = por %p158, %p159
    %p162 = scmp.ne.s32.totalorder %s147, %s161
    %p163 = scmp.eq.s32.totalorder %s22, 0
    %p164 = por %p162, %p163
    %s166 = sadd.s32 %s165, 1
    %p169 = scmp.eq.s32.totalorder %s16, 1
    %p170 = scmp.ne.s32.totalorder %s165, %s167
    %p171 = scmp.eq.s32.totalorder %s16, 0
    %p172 = por %p170, %p171
    %p173 = scmp.ne.s32.totalorder %s165, %s167
    %p174 = scmp.eq.s32.totalorder %s21, 1
    %p175 = por %p173, %p174
    %p176 = scmp.ne.s32.totalorder %s167, %s168
    %p177 = scmp.eq.s32.totalorder %s21, 0
    %p178 = por %p176, %p177
    %p179 = scmp.ne.s32.totalorder %s167, %s168
    %p180 = scmp.eq.s32.totalorder %s22, 1
    %p181 = por %p179, %p180
    %p183 = scmp.ne.s32.totalorder %s168, %s182
    %p184 = scmp.eq.s32.totalorder %s22, 0
    %p185 = por %p183, %p184
    %s187 = sadd.s32 %s186, 1
    %p190 = scmp.eq.s32.totalorder %s16, 1
    %p191 = scmp.ne.s32.totalorder %s186, %s188
    %p192 = scmp.eq.s32.totalorder %s16, 0
    %p193 = por %p191, %p192
    %p194 = scmp.ne.s32.totalorder %s186, %s188
    %p195 = scmp.eq.s32.totalorder %s21, 1
    %p196 = por %p194, %p195
    %p197 = scmp.ne.s32.totalorder %s188, %s189
    %p198 = scmp.eq.s32.totalorder %s21, 0
    %p199 = por %p197, %p198
    %p200 = scmp.ne.s32.totalorder %s188, %s189
    %p201 = scmp.eq.s32.totalorder %s22, 1
    %p202 = por %p200, %p201
    %p204 = scmp.ne.s32.totalorder %s189, %s203
    %p205 = scmp.eq.s32.totalorder %s22, 0
    %p206 = por %p204, %p205
    %s208 = sadd.s32 %s207, 1
    %p211 = scmp.eq.s32.totalorder %s16, 1
    %p212 = scmp.ne.s32.totalorder %s207, %s209
    %p213 = scmp.eq.s32.totalorder %s16, 0
    %p214 = por %p212, %p213
    %p215 = scmp.ne.s32.totalorder %s207, %s209
    %p216 = scmp.eq.s32.totalorder %s21, 1
    %p217 = por %p215, %p216
    %p218 = scmp.ne.s32.totalorder %s209, %s210
    %p219 = scmp.eq.s32.totalorder %s21, 0
    %p220 = por %p218, %p219
    %p221 = scmp.ne.s32.totalorder %s209, %s210
    %p222 = scmp.eq.s32.totalorder %s22, 1
    %p223 = por %p221, %p222
    %p225 = scmp.ne.s32.totalorder %s210, %s224
    %p226 = scmp.eq.s32.totalorder %s22, 0
    %p227 = por %p225, %p226
    %s229 = sadd.s32 %s228, 1
    %p232 = scmp.eq.s32.totalorder %s16, 1
    %p233 = scmp.ne.s32.totalorder %s228, %s230
    %p234 = scmp.eq.s32.totalorder %s16, 0
    %p235 = por %p233, %p234
    %p236 = scmp.ne.s32.totalorder %s228, %s230
    %p237 = scmp.eq.s32.totalorder %s21, 1
    %p238 = por %p236, %p237
    %p239 = scmp.ne.s32.totalorder %s230, %s231
    %p240 = scmp.eq.s32.totalorder %s21, 0
    %p241 = por %p239, %p240
    %p242 = scmp.ne.s32.totalorder %s230, %s231
    %p243 = scmp.eq.s32.totalorder %s22, 1
    %p244 = por %p242, %p243
    %p246 = scmp.ne.s32.totalorder %s231, %s245
    %p247 = scmp.eq.s32.totalorder %s22, 0
    %p248 = por %p246, %p247
    %s249 = ssub.s32 %s16, %s23
    %p250 = scmp.eq.s32.totalorder %s249, 0
    %s252 = sadd.s32 %s251, 1
    %s253 = scalar_select %p250, %s251, %s252
    %p256 = pneg %p250
    %p257 = scmp.eq.s32.totalorder %s16, 1
    %p258 = por %p256, %p257
    %p259 = scmp.ne.s32.totalorder %s251, %s254
    %p260 = scmp.eq.s32.totalorder %s16, 0
    %p261 = por %p259, %p260
    %p262 = scmp.ne.s32.totalorder %s251, %s254
    %p263 = scmp.eq.s32.totalorder %s21, 1
    %p264 = por %p262, %p263
    %p265 = scmp.ne.s32.totalorder %s254, %s255
    %p266 = scmp.eq.s32.totalorder %s21, 0
    %p267 = por %p265, %p266
    %p268 = scmp.ne.s32.totalorder %s254, %s255
    %p269 = scmp.eq.s32.totalorder %s22, 1
    %p270 = por %p268, %p269
    %p272 = scmp.ne.s32.totalorder %s255, %s271
    %p273 = scmp.eq.s32.totalorder %s22, 0
    %p274 = por %p272, %p273
    %p275 = scmp.le.s32.totalorder 1, %s16
    %p276 = scmp.lt.s32.totalorder %s16, 3
    %p277 = pnand %p275, %p276
    %p278 = pneg %p277
    // Predicated region
    $region9: #{pairwise_interaction_transformer.1} parent=5 // pred_check
      _
    $region10: #{pairwise_interaction_transformer.1} parent=5 // pred_check_branch
      %280 = sbr.rel (%p277) target = $region12
    $region11: #{pairwise_interaction_transformer.1} parent=5 // pred_region
      %s281 = ssub.s32 %s16, 1
      // Predicated region
      $region13: #{pairwise_interaction_transformer.1} parent=11 // pred_check
        %p282 = pneg %p115
      $region14: #{pairwise_interaction_transformer.1} parent=11 // pred_check_branch
        %284 = sbr.rel (%p282) target = $region16
      $region15: #{pairwise_interaction_transformer.1} parent=11 // pred_region
        _
      $region16: #{pairwise_interaction_transformer.1} parent=11 // pred_fallthru
        _
      // Predicated region
      $region17: #{pairwise_interaction_transformer.1} parent=11 // pred_check
        %p285 = pneg %p136
      $region18: #{pairwise_interaction_transformer.1} parent=11 // pred_check_branch
        %287 = sbr.rel (%p285) target = $region20
      $region19: #{pairwise_interaction_transformer.1} parent=11 // pred_region
        _
      $region20: #{pairwise_interaction_transformer.1} parent=11 // pred_fallthru
        _
      // Predicated region
      $region21: #{pairwise_interaction_transformer.1} parent=11 // pred_check
        %p288 = pneg %p157
      $region22: #{pairwise_interaction_transformer.1} parent=11 // pred_check_branch
        %290 = sbr.rel (%p288) target = $region24
      $region23: #{pairwise_interaction_transformer.1} parent=11 // pred_region
        _
      $region24: #{pairwise_interaction_transformer.1} parent=11 // pred_fallthru
        _
      // Predicated region
      $region25: #{pairwise_interaction_transformer.1} parent=11 // pred_check
        %p291 = pneg %p178
      $region26: #{pairwise_interaction_transformer.1} parent=11 // pred_check_branch
        %293 = sbr.rel (%p291) target = $region28
      $region27: #{pairwise_interaction_transformer.1} parent=11 // pred_region
        _
      $region28: #{pairwise_interaction_transformer.1} parent=11 // pred_fallthru
        _
      // Predicated region
      $region29: #{pairwise_interaction_transformer.1} parent=11 // pred_check
        %p294 = pneg %p199
      $region30: #{pairwise_interaction_transformer.1} parent=11 // pred_check_branch
        %296 = sbr.rel (%p294) target = $region32
      $region31: #{pairwise_interaction_transformer.1} parent=11 // pred_region
        _
      $region32: #{pairwise_interaction_transformer.1} parent=11 // pred_fallthru
        _
      // Predicated region
      $region33: #{pairwise_interaction_transformer.1} parent=11 // pred_check
        %p297 = pneg %p220
      $region34: #{pairwise_interaction_transformer.1} parent=11 // pred_check_branch
        %299 = sbr.rel (%p297) target = $region36
      $region35: #{pairwise_interaction_transformer.1} parent=11 // pred_region
        _
      $region36: #{pairwise_interaction_transformer.1} parent=11 // pred_fallthru
        _
      // Predicated region
      $region37: #{pairwise_interaction_transformer.1} parent=11 // pred_check
        %p300 = pneg %p241
      $region38: #{pairwise_interaction_transformer.1} parent=11 // pred_check_branch
        %302 = sbr.rel (%p300) target = $region40
      $region39: #{pairwise_interaction_transformer.1} parent=11 // pred_region
        _
      $region40: #{pairwise_interaction_transformer.1} parent=11 // pred_fallthru
        _
    $region12: #{pairwise_interaction_transformer.1} parent=5 // pred_fallthru
      _
    %p303 = scmp.lt.s32.totalorder %s16, 2
    // Predicated region
    $region41: #{pairwise_interaction_transformer.1} parent=5 // pred_check
      %p304 = pneg %p303
    $region42: #{pairwise_interaction_transformer.1} parent=5 // pred_check_branch
      %306 = sbr.rel (%p304) target = $region44
    $region43: #{pairwise_interaction_transformer.1} parent=5 // pred_region
      // Predicated region
      $region45: #{pairwise_interaction_transformer.1} parent=43 // pred_check
        %p307 = pneg %p36
      $region46: #{pairwise_interaction_transformer.1} parent=43 // pred_check_branch
        %309 = sbr.rel (%p307) target = $region48
      $region47: #{pairwise_interaction_transformer.1} parent=43 // pred_region
        %p310 = scmp.lt.s32.totalorder %s16, 1
        %s311 = scalar_select %p310, %s16, 1
        %s312 = smul.addr %s311, 4
        %s313 = scalar_lea.vmem %s0, %s312
      $region48: #{pairwise_interaction_transformer.1} parent=43 // pred_fallthru
        _
      // Predicated region
      $region49: #{pairwise_interaction_transformer.1} parent=43 // pred_check
        %p314 = pneg %p62
      $region50: #{pairwise_interaction_transformer.1} parent=43 // pred_check_branch
        %316 = sbr.rel (%p314) target = $region52
      $region51: #{pairwise_interaction_transformer.1} parent=43 // pred_region
        %p317 = scmp.lt.s32.totalorder %s16, 1
        %s318 = scalar_select %p317, %s16, 1
        %s319 = smul.addr %s318, 3
        %s320 = smul.addr %s319, 8
        %s321 = scalar_lea.vmem %s1, %s320
      $region52: #{pairwise_interaction_transformer.1} parent=43 // pred_fallthru
        _
      // Predicated region
      $region53: #{pairwise_interaction_transformer.1} parent=43 // pred_check
        %p322 = pneg %p88
      $region54: #{pairwise_interaction_transformer.1} parent=43 // pred_check_branch
        %324 = sbr.rel (%p322) target = $region56
      $region55: #{pairwise_interaction_transformer.1} parent=43 // pred_region
        %p325 = scmp.lt.s32.totalorder %s16, 1
        %s326 = scalar_select %p325, %s16, 1
        %s327 = smul.addr %s326, 4
        %s328 = scalar_lea.vmem %s2, %s327
      $region56: #{pairwise_interaction_transformer.1} parent=43 // pred_fallthru
        _
    $region44: #{pairwise_interaction_transformer.1} parent=5 // pred_fallthru
      _
    %p329 = scmp.le.s32.totalorder 1, %s16
    %p330 = scmp.lt.s32.totalorder %s16, 3
    %p331 = pnand %p329, %p330
    %p332 = pneg %p331
    // Predicated region
    $region57: #{pairwise_interaction_transformer.1} parent=5 // pred_check
      _
    $region58: #{pairwise_interaction_transformer.1} parent=5 // pred_check_branch
      %334 = sbr.rel (%p331) target = $region60
    $region59: #{pairwise_interaction_transformer.1} parent=5 // pred_region
      %s335 = ssub.s32 %s16, 1
      %p336 = scmp.lt.s32.totalorder %s21, 1
      %s337 = scalar_select %p336, %s21, 1
      %s338 = smul.addr %s337, 4
      %s339 = scalar_lea.vmem %s0, %s338
      %p340 = pneg %p42
      %p341 = pneg %p39
      %p342 = scmp.lt.s32.totalorder %s21, 1
      %s343 = scalar_select %p342, %s21, 1
      %s344 = smul.addr %s343, 3
      %s345 = smul.addr %s344, 8
      %s346 = scalar_lea.vmem %s1, %s345
      %p347 = pneg %p68
      %p348 = pneg %p65
      %p349 = scmp.lt.s32.totalorder %s21, 1
      %s350 = scalar_select %p349, %s21, 1
      %s351 = smul.addr %s350, 4
      %s352 = scalar_lea.vmem %s2, %s351
      %p353 = pneg %p94
      %p354 = pneg %p91
      %p355 = pneg %p115
      %p356 = pneg %p112
      %p357 = pneg %p136
      %p358 = pneg %p133
      %p359 = pneg %p157
      %p360 = pneg %p154
      %p361 = pneg %p178
      %p362 = pneg %p175
      %p363 = pneg %p199
      %p364 = pneg %p196
      %p365 = pneg %p220
      %p366 = pneg %p217
      %p367 = pneg %p241
      %p368 = pneg %p238
      %p369 = pneg %p267
      %p370 = pneg %p264
      %p371 = scmp.lt.s32.totalorder %s21, 1
      %s372 = scalar_select %p371, %s21, 1
      %s373 = smul.addr %s372, 4
      %s374 = scalar_lea.vmem %s10, %s373
      %p375 = scmp.lt.s32.totalorder %s21, 1
      %s376 = scalar_select %p375, %s21, 1
      %s377 = smul.addr %s376, 4
      %s378 = scalar_lea.vmem %s0, %s377
      %p379 = scmp.lt.s32.totalorder %s21, 1
      %s380 = scalar_select %p379, %s21, 1
      %s381 = smul.addr %s380, 3
      %s382 = smul.addr %s381, 8
      %s383 = scalar_lea.vmem %s1, %s382
      %p384 = scmp.lt.s32.totalorder %s21, 1
      %s385 = scalar_select %p384, %s21, 1
      %s386 = smul.addr %s385, 4
      %s387 = scalar_lea.vmem %s2, %s386
      %p388 = scmp.lt.s32.totalorder %s21, 1
      %s389 = scalar_select %p388, %s21, 1
      %s390 = smul.addr %s389, 4
      %s391 = scalar_lea.vmem %s10, %s390
      %v392 = vld [vmem:[%s378] sm:$0x7]
      %v393 = vld [vmem:[%s383] sm:$0xff]
      %v394 = vld [vmem:[%s383 + $0x8] sm:$0xff]
      %v395 = vld [vmem:[%s383 + $0x10] sm:$0xff]
      %v396 = vld [vmem:[%s387] sm:$0x7]
      %v397 = vld [vmem:[%s3] sm:$0xff]
      %v398 = vld [vmem:[%s3 + $0x8] sm:$0xff]
      %v399 = vld [vmem:[%s3 + $0x10] sm:$0xff]
      %v400 = vld [vmem:[%s4] sm:$0xff]
      %v401 = vld [vmem:[%s4 + $0x8] sm:$0xff]
      %vm402 = vcmask 64512
      %v404 = vsel %vm402, %v392, 0
      %406 = vmatprep.subr.mxu0 0.0
      %407 = vmatpush1.msra.mxu0 %v400
      %408 = vmatprep.subr.mxu0 0.0
      %409 = vmatpush1.msra.mxu0 0.0
      %410 = vmatprep.subr.mxu0 0.0
      %411 = vmatpush1.msra.mxu0 0.0
      %412 = vmatprep.subr.mxu0 0.0
      %413 = vmatpush1.msra.mxu0 0.0
      %414 = vmatprep.subr.mxu0 0.0
      %415 = vmatpush1.msra.mxu0 0.0
      %416 = vmatprep.subr.mxu0 0.0
      %417 = vmatpush1.msra.mxu0 0.0
      %418 = vmatprep.subr.mxu0 0.0
      %419 = vmatpush1.msra.mxu0 0.0
      %420 = vmatprep.subr.mxu0 0.0
      %421 = vmatpush1.msra.mxu0 0.0
      %422 = vmatprep.subr.mxu0 0.0
      %423 = vmatpush1.msra.mxu0 0.0
      %424 = vmatprep.subr.mxu0 0.0
      %425 = vmatpush1.msra.mxu0 0.0
      %426 = vmatprep.subr.mxu0 0.0
      %427 = vmatpush1.msra.mxu0 0.0
      %428 = vmatprep.subr.mxu0 0.0
      %429 = vmatpush1.msra.mxu0 0.0
      %430 = vmatprep.subr.mxu0 0.0
      %431 = vmatpush1.msra.mxu0 0.0
      %432 = vmatprep.subr.mxu0 0.0
      %433 = vmatpush1.msra.mxu0 0.0
      %434 = vmatprep.subr.mxu0 0.0
      %435 = vmatpush1.msra.mxu0 0.0
      %436 = vmatprep.subr.mxu0 0.0
      %437 = vmatpush1.msra.mxu0 0.0
      %438 = vmatprep.subr.mxu0 0.0
      %439 = vmatpush1.msra.mxu0 0.0
      %440 = vmatprep.subr.mxu0 0.0
      %441 = vmatpush1.msra.mxu0 0.0
      %442 = vmatprep.subr.mxu0 0.0
      %443 = vmatpush1.msra.mxu0 0.0
      %444 = vmatprep.subr.mxu0 0.0
      %445 = vmatpush1.msra.mxu0 0.0
      %446 = vmatprep.subr.mxu0 0.0
      %447 = vmatpush1.msra.mxu0 0.0
      %448 = vmatprep.subr.mxu0 0.0
      %449 = vmatpush1.msra.mxu0 0.0
      %450 = vmatprep.subr.mxu0 0.0
      %451 = vmatpush1.msra.mxu0 0.0
      %452 = vmatprep.subr.mxu0 0.0
      %453 = vmatpush1.msra.mxu0 0.0
      %454 = vmatprep.subr.mxu0 0.0
      %455 = vmatpush1.msra.mxu0 0.0
      %456 = vmatprep.subr.mxu0 0.0
      %457 = vmatpush1.msra.mxu0 0.0
      %458 = vmatprep.subr.mxu0 0.0
      %459 = vmatpush1.msra.mxu0 0.0
      %460 = vmatprep.subr.mxu0 0.0
      %461 = vmatpush1.msra.mxu0 0.0
      %462 = vmatprep.subr.mxu0 0.0
      %463 = vmatpush1.msra.mxu0 0.0
      %464 = vmatprep.subr.mxu0 0.0
      %465 = vmatpush1.msra.mxu0 0.0
      %466 = vmatprep.subr.mxu0 0.0
      %467 = vmatpush1.msra.mxu0 0.0
      %468 = vmatprep.subr.mxu0 0.0
      %469 = vmatpush1.msra.mxu0 0.0
      %470 = vmatprep.mubr.f32.mxu0 0.0
      %471 = vmatmul.mubr.f32.gmra.mrb[0].mxu0 %v404
      %v472 = vpop.f32.mrb[0].mxu0
      %v473 = vadd.f32 0.0, %v472
      %v474 = vpop.f32.mrb[0].mxu0
      %475 = vdwg.mxu0
      %v477 = vsel %vm402, %v393, 0
      %v480 = vsel %vm402, %v394, 0
      %v483 = vsel %vm402, %v395, 0
      %485 = vmatprep.subr.mxu0 0.0
      %486 = vmatpush1.msra.mxu0 %v401
      %487 = vmatprep.subr.mxu0 0.0
      %488 = vmatpush1.msra.mxu0 0.0
      %489 = vmatprep.subr.mxu0 0.0
      %490 = vmatpush1.msra.mxu0 0.0
      %491 = vmatprep.subr.mxu0 0.0
      %492 = vmatpush1.msra.mxu0 0.0
      %493 = vmatprep.subr.mxu0 0.0
      %494 = vmatpush1.msra.mxu0 0.0
      %495 = vmatprep.subr.mxu0 0.0
      %496 = vmatpush1.msra.mxu0 0.0
      %497 = vmatprep.subr.mxu0 0.0
      %498 = vmatpush1.msra.mxu0 0.0
      %499 = vmatprep.subr.mxu0 0.0
      %500 = vmatpush1.msra.mxu0 0.0
      %501 = vmatprep.subr.mxu0 0.0
      %502 = vmatpush1.msra.mxu0 0.0
      %503 = vmatprep.subr.mxu0 0.0
      %504 = vmatpush1.msra.mxu0 0.0
      %505 = vmatprep.subr.mxu0 0.0
      %506 = vmatpush1.msra.mxu0 0.0
      %507 = vmatprep.subr.mxu0 0.0
      %508 = vmatpush1.msra.mxu0 0.0
      %509 = vmatprep.subr.mxu0 0.0
      %510 = vmatpush1.msra.mxu0 0.0
      %511 = vmatprep.subr.mxu0 0.0
      %512 = vmatpush1.msra.mxu0 0.0
      %513 = vmatprep.subr.mxu0 0.0
      %514 = vmatpush1.msra.mxu0 0.0
      %515 = vmatprep.subr.mxu0 0.0
      %516 = vmatpush1.msra.mxu0 0.0
      %517 = vmatprep.subr.mxu0 0.0
      %518 = vmatpush1.msra.mxu0 0.0
      %519 = vmatprep.subr.mxu0 0.0
      %520 = vmatpush1.msra.mxu0 0.0
      %521 = vmatprep.subr.mxu0 0.0
      %522 = vmatpush1.msra.mxu0 0.0
      %523 = vmatprep.subr.mxu0 0.0
      %524 = vmatpush1.msra.mxu0 0.0
      %525 = vmatprep.subr.mxu0 0.0
      %526 = vmatpush1.msra.mxu0 0.0
      %527 = vmatprep.subr.mxu0 0.0
      %528 = vmatpush1.msra.mxu0 0.0
      %529 = vmatprep.subr.mxu0 0.0
      %530 = vmatpush1.msra.mxu0 0.0
      %531 = vmatprep.subr.mxu0 0.0
      %532 = vmatpush1.msra.mxu0 0.0
      %533 = vmatprep.subr.mxu0 0.0
      %534 = vmatpush1.msra.mxu0 0.0
      %535 = vmatprep.subr.mxu0 0.0
      %536 = vmatpush1.msra.mxu0 0.0
      %537 = vmatprep.subr.mxu0 0.0
      %538 = vmatpush1.msra.mxu0 0.0
      %539 = vmatprep.subr.mxu0 0.0
      %540 = vmatpush1.msra.mxu0 0.0
      %541 = vmatprep.subr.mxu0 0.0
      %542 = vmatpush1.msra.mxu0 0.0
      %543 = vmatprep.subr.mxu0 0.0
      %544 = vmatpush1.msra.mxu0 0.0
      %545 = vmatprep.subr.mxu0 0.0
      %546 = vmatpush1.msra.mxu0 0.0
      %547 = vmatprep.subr.mxu0 0.0
      %548 = vmatpush1.msra.mxu0 0.0
      %549 = vmatprep.mubr.f32.mxu0 0.0
      %550 = vmatmul.mubr.f32.gmra.mrb[0].mxu0 %v477
      %v551 = vpop.f32.mrb[0].mxu0
      %v552 = vadd.f32 %v397, %v551
      %v553 = vpop.f32.mrb[0].mxu0
      %554 = vmatprep.mubr.f32.mxu0 0.0
      %555 = vmatmul.mubr.f32.gmra.mrb[0].mxu0 %v480
      %v556 = vpop.f32.mrb[0].mxu0
      %v557 = vadd.f32 %v398, %v556
      %v558 = vpop.f32.mrb[0].mxu0
      %559 = vmatprep.mubr.f32.mxu0 0.0
      %560 = vmatmul.mubr.f32.gmra.mrb[0].mxu0 %v483
      %v561 = vpop.f32.mrb[0].mxu0
      %v562 = vadd.f32 %v399, %v561
      %v563 = vpop.f32.mrb[0].mxu0
      %564 = vdwg.mxu0
      %vm565 = vcmp.lt.f32.partialorder %v396, 0.5
      %v566 = vld [vmem:[%s8] sm:$0xff]
      %v567 = vld [vmem:[%s8 + $0x8] sm:$0x1]
      %v568 = vld [vmem:[%s9] sm:$0x1]
      %v569 = vld [vmem:[%s5] sm:$0xff]
      %v570 = vld [vmem:[%s5 + $0x8] sm:$0xff]
      %v571 = vld [vmem:[%s5 + $0x10] sm:$0xff]
      %v572 = vld [vmem:[%s5 + $0x18] sm:$0xff]
      %v573 = vlaneseq
      %v574 = vshrl.u32 %v573, 7
      %v575 = vsub.s32 0, %v574
      %v576 = vrot.slane %v566, %v575
      %vm577 = vcmask 261120
      %v579 = vsel %vm577, %v473, 0
      %581 = vmatprep.subr.mxu0 0.0
      %582 = vmatpush1.msra.mxu0 %v569
      %583 = vmatprep.subr.mxu0 0.0
      %584 = vmatpush1.msra.mxu0 %v570
      %585 = vmatprep.subr.mxu0 0.0
      %586 = vmatpush1.msra.mxu0 %v571
      %587 = vmatprep.subr.mxu0 0.0
      %588 = vmatpush1.msra.mxu0 %v572
      %589 = vmatprep.subr.mxu0 0.0
      %590 = vmatpush1.msra.mxu0 0.0
      %591 = vmatprep.subr.mxu0 0.0
      %592 = vmatpush1.msra.mxu0 0.0
      %593 = vmatprep.subr.mxu0 0.0
      %594 = vmatpush1.msra.mxu0 0.0
      %595 = vmatprep.subr.mxu0 0.0
      %596 = vmatpush1.msra.mxu0 0.0
      %597 = vmatprep.subr.mxu0 0.0
      %598 = vmatpush1.msra.mxu0 0.0
      %599 = vmatprep.subr.mxu0 0.0
      %600 = vmatpush1.msra.mxu0 0.0
      %601 = vmatprep.subr.mxu0 0.0
      %602 = vmatpush1.msra.mxu0 0.0
      %603 = vmatprep.subr.mxu0 0.0
      %604 = vmatpush1.msra.mxu0 0.0
      %605 = vmatprep.subr.mxu0 0.0
      %606 = vmatpush1.msra.mxu0 0.0
      %607 = vmatprep.subr.mxu0 0.0
      %608 = vmatpush1.msra.mxu0 0.0
      %609 = vmatprep.subr.mxu0 0.0
      %610 = vmatpush1.msra.mxu0 0.0
      %611 = vmatprep.subr.mxu0 0.0
      %612 = vmatpush1.msra.mxu0 0.0
      %613 = vmatprep.subr.mxu0 0.0
      %614 = vmatpush1.msra.mxu0 0.0
      %615 = vmatprep.subr.mxu0 0.0
      %616 = vmatpush1.msra.mxu0 0.0
      %617 = vmatprep.subr.mxu0 0.0
      %618 = vmatpush1.msra.mxu0 0.0
      %619 = vmatprep.subr.mxu0 0.0
      %620 = vmatpush1.msra.mxu0 0.0
      %621 = vmatprep.subr.mxu0 0.0
      %622 = vmatpush1.msra.mxu0 0.0
      %623 = vmatprep.subr.mxu0 0.0
      %624 = vmatpush1.msra.mxu0 0.0
      %625 = vmatprep.subr.mxu0 0.0
      %626 = vmatpush1.msra.mxu0 0.0
      %627 = vmatprep.subr.mxu0 0.0
      %628 = vmatpush1.msra.mxu0 0.0
      %629 = vmatprep.subr.mxu0 0.0
      %630 = vmatpush1.msra.mxu0 0.0
      %631 = vmatprep.subr.mxu0 0.0
      %632 = vmatpush1.msra.mxu0 0.0
      %633 = vmatprep.subr.mxu0 0.0
      %634 = vmatpush1.msra.mxu0 0.0
      %635 = vmatprep.subr.mxu0 0.0
      %636 = vmatpush1.msra.mxu0 0.0
      %637 = vmatprep.subr.mxu0 0.0
      %638 = vmatpush1.msra.mxu0 0.0
      %639 = vmatprep.subr.mxu0 0.0
      %640 = vmatpush1.msra.mxu0 0.0
      %641 = vmatprep.subr.mxu0 0.0
      %642 = vmatpush1.msra.mxu0 0.0
      %643 = vmatprep.subr.mxu0 0.0
      %644 = vmatpush1.msra.mxu0 0.0
      %645 = vmatprep.mubr.f32.mxu0 0.0
      %646 = vmatmul.mubr.f32.gmra.mrb[0].mxu0 %v579
      %v647 = vpop.f32.mrb[0].mxu0
      %v648 = vadd.f32 %v576, %v647
      %v649 = vpop.f32.mrb[0].mxu0
      %650 = vdwg.mxu0
      %v651 = vmul.f32 %v648, 0.25
      %s652 = scalar_lea.vmem %s5, 32
      %v653 = vld [vmem:[%s652] sm:$0xff]
      %v654 = vld [vmem:[%s652 + $0x8] sm:$0xff]
      %v655 = vld [vmem:[%s652 + $0x10] sm:$0xff]
      %v656 = vld [vmem:[%s652 + $0x18] sm:$0xff]
      %v657 = vlaneseq
      %v658 = vshrl.u32 %v657, 7
      %v659 = vsub.s32 1, %v658
      %v660 = vrot.slane %v566, %v659
      %v662 = vsel %vm577, %v552, 0
      %v665 = vsel %vm577, %v557, 0
      %v668 = vsel %vm577, %v562, 0
      %670 = vmatprep.subr.mxu0 0.0
      %671 = vmatpush1.msra.mxu0 %v653
      %672 = vmatprep.subr.mxu0 0.0
      %673 = vmatpush1.msra.mxu0 %v654
      %674 = vmatprep.subr.mxu0 0.0
      %675 = vmatpush1.msra.mxu0 %v655
      %676 = vmatprep.subr.mxu0 0.0
      %677 = vmatpush1.msra.mxu0 %v656
      %678 = vmatprep.subr.mxu0 0.0
      %679 = vmatpush1.msra.mxu0 0.0
      %680 = vmatprep.subr.mxu0 0.0
      %681 = vmatpush1.msra.mxu0 0.0
      %682 = vmatprep.subr.mxu0 0.0
      %683 = vmatpush1.msra.mxu0 0.0
      %684 = vmatprep.subr.mxu0 0.0
      %685 = vmatpush1.msra.mxu0 0.0
      %686 = vmatprep.subr.mxu0 0.0
      %687 = vmatpush1.msra.mxu0 0.0
      %688 = vmatprep.subr.mxu0 0.0
      %689 = vmatpush1.msra.mxu0 0.0
      %690 = vmatprep.subr.mxu0 0.0
      %691 = vmatpush1.msra.mxu0 0.0
      %692 = vmatprep.subr.mxu0 0.0
      %693 = vmatpush1.msra.mxu0 0.0
      %694 = vmatprep.subr.mxu0 0.0
      %695 = vmatpush1.msra.mxu0 0.0
      %696 = vmatprep.subr.mxu0 0.0
      %697 = vmatpush1.msra.mxu0 0.0
      %698 = vmatprep.subr.mxu0 0.0
      %699 = vmatpush1.msra.mxu0 0.0
      %700 = vmatprep.subr.mxu0 0.0
      %701 = vmatpush1.msra.mxu0 0.0
      %702 = vmatprep.subr.mxu0 0.0
      %703 = vmatpush1.msra.mxu0 0.0
      %704 = vmatprep.subr.mxu0 0.0
      %705 = vmatpush1.msra.mxu0 0.0
      %706 = vmatprep.subr.mxu0 0.0
      %707 = vmatpush1.msra.mxu0 0.0
      %708 = vmatprep.subr.mxu0 0.0
      %709 = vmatpush1.msra.mxu0 0.0
      %710 = vmatprep.subr.mxu0 0.0
      %711 = vmatpush1.msra.mxu0 0.0
      %712 = vmatprep.subr.mxu0 0.0
      %713 = vmatpush1.msra.mxu0 0.0
      %714 = vmatprep.subr.mxu0 0.0
      %715 = vmatpush1.msra.mxu0 0.0
      %716 = vmatprep.subr.mxu0 0.0
      %717 = vmatpush1.msra.mxu0 0.0
      %718 = vmatprep.subr.mxu0 0.0
      %719 = vmatpush1.msra.mxu0 0.0
      %720 = vmatprep.subr.mxu0 0.0
      %721 = vmatpush1.msra.mxu0 0.0
      %722 = vmatprep.subr.mxu0 0.0
      %723 = vmatpush1.msra.mxu0 0.0
      %724 = vmatprep.subr.mxu0 0.0
      %725 = vmatpush1.msra.mxu0 0.0
      %726 = vmatprep.subr.mxu0 0.0
      %727 = vmatpush1.msra.mxu0 0.0
      %728 = vmatprep.subr.mxu0 0.0
      %729 = vmatpush1.msra.mxu0 0.0
      %730 = vmatprep.subr.mxu0 0.0
      %731 = vmatpush1.msra.mxu0 0.0
      %732 = vmatprep.subr.mxu0 0.0
      %733 = vmatpush1.msra.mxu0 0.0
      %734 = vmatprep.mubr.f32.mxu0 0.0
      %735 = vmatmul.mubr.f32.gmra.mrb[0].mxu0 %v662
      %v736 = vpop.f32.mrb[0].mxu0
      %v737 = vadd.f32 %v660, %v736
      %v738 = vpop.f32.mrb[0].mxu0
      %739 = vmatprep.mubr.f32.mxu0 0.0
      %740 = vmatmul.mubr.f32.gmra.mrb[0].mxu0 %v665
      %v741 = vpop.f32.mrb[0].mxu0
      %v742 = vadd.f32 %v660, %v741
      %v743 = vpop.f32.mrb[0].mxu0
      %744 = vmatprep.mubr.f32.mxu0 0.0
      %745 = vmatmul.mubr.f32.gmra.mrb[0].mxu0 %v668
      %v746 = vpop.f32.mrb[0].mxu0
      %v747 = vadd.f32 %v660, %v746
      %v748 = vpop.f32.mrb[0].mxu0
      %749 = vdwg.mxu0
      %s750 = scalar_lea.vmem %s5, 64
      %v751 = vld [vmem:[%s750] sm:$0xff]
      %v752 = vld [vmem:[%s750 + $0x8] sm:$0xff]
      %v753 = vld [vmem:[%s750 + $0x10] sm:$0xff]
      %v754 = vld [vmem:[%s750 + $0x18] sm:$0xff]
      %v755 = vlaneseq
      %v756 = vshrl.u32 %v755, 7
      %v757 = vsub.s32 2, %v756
      %v758 = vrot.slane %v566, %v757
      %759 = vmatprep.subr.mxu0 0.0
      %760 = vmatpush1.msra.mxu0 %v751
      %761 = vmatprep.subr.mxu0 0.0
      %762 = vmatpush1.msra.mxu0 %v752
      %763 = vmatprep.subr.mxu0 0.0
      %764 = vmatpush1.msra.mxu0 %v753
      %765 = vmatprep.subr.mxu0 0.0
      %766 = vmatpush1.msra.mxu0 %v754
      %767 = vmatprep.subr.mxu0 0.0
      %768 = vmatpush1.msra.mxu0 0.0
      %769 = vmatprep.subr.mxu0 0.0
      %770 = vmatpush1.msra.mxu0 0.0
      %771 = vmatprep.subr.mxu0 0.0
      %772 = vmatpush1.msra.mxu0 0.0
      %773 = vmatprep.subr.mxu0 0.0
      %774 = vmatpush1.msra.mxu0 0.0
      %775 = vmatprep.subr.mxu0 0.0
      %776 = vmatpush1.msra.mxu0 0.0
      %777 = vmatprep.subr.mxu0 0.0
      %778 = vmatpush1.msra.mxu0 0.0
      %779 = vmatprep.subr.mxu0 0.0
      %780 = vmatpush1.msra.mxu0 0.0
      %781 = vmatprep.subr.mxu0 0.0
      %782 = vmatpush1.msra.mxu0 0.0
      %783 = vmatprep.subr.mxu0 0.0
      %784 = vmatpush1.msra.mxu0 0.0
      %785 = vmatprep.subr.mxu0 0.0
      %786 = vmatpush1.msra.mxu0 0.0
      %787 = vmatprep.subr.mxu0 0.0
      %788 = vmatpush1.msra.mxu0 0.0
      %789 = vmatprep.subr.mxu0 0.0
      %790 = vmatpush1.msra.mxu0 0.0
      %791 = vmatprep.subr.mxu0 0.0
      %792 = vmatpush1.msra.mxu0 0.0
      %793 = vmatprep.subr.mxu0 0.0
      %794 = vmatpush1.msra.mxu0 0.0
      %795 = vmatprep.subr.mxu0 0.0
      %796 = vmatpush1.msra.mxu0 0.0
      %797 = vmatprep.subr.mxu0 0.0
      %798 = vmatpush1.msra.mxu0 0.0
      %799 = vmatprep.subr.mxu0 0.0
      %800 = vmatpush1.msra.mxu0 0.0
      %801 = vmatprep.subr.mxu0 0.0
      %802 = vmatpush1.msra.mxu0 0.0
      %803 = vmatprep.subr.mxu0 0.0
      %804 = vmatpush1.msra.mxu0 0.0
      %805 = vmatprep.subr.mxu0 0.0
      %806 = vmatpush1.msra.mxu0 0.0
      %807 = vmatprep.subr.mxu0 0.0
      %808 = vmatpush1.msra.mxu0 0.0
      %809 = vmatprep.subr.mxu0 0.0
      %810 = vmatpush1.msra.mxu0 0.0
      %811 = vmatprep.subr.mxu0 0.0
      %812 = vmatpush1.msra.mxu0 0.0
      %813 = vmatprep.subr.mxu0 0.0
      %814 = vmatpush1.msra.mxu0 0.0
      %815 = vmatprep.subr.mxu0 0.0
      %816 = vmatpush1.msra.mxu0 0.0
      %817 = vmatprep.subr.mxu0 0.0
      %818 = vmatpush1.msra.mxu0 0.0
      %819 = vmatprep.subr.mxu0 0.0
      %820 = vmatpush1.msra.mxu0 0.0
      %821 = vmatprep.subr.mxu0 0.0
      %822 = vmatpush1.msra.mxu0 0.0
      %823 = vmatprep.mubr.f32.mxu0 0.0
      %824 = vmatmul.mubr.f32.gmra.mrb[0].mxu0 %v662
      %v825 = vpop.f32.mrb[0].mxu0
      %v826 = vadd.f32 %v758, %v825
      %v827 = vpop.f32.mrb[0].mxu0
      %828 = vmatprep.mubr.f32.mxu0 0.0
      %829 = vmatmul.mubr.f32.gmra.mrb[0].mxu0 %v665
      %v830 = vpop.f32.mrb[0].mxu0
      %v831 = vadd.f32 %v758, %v830
      %v832 = vpop.f32.mrb[0].mxu0
      %833 = vmatprep.mubr.f32.mxu0 0.0
      %834 = vmatmul.mubr.f32.gmra.mrb[0].mxu0 %v668
      %v835 = vpop.f32.mrb[0].mxu0
      %v836 = vadd.f32 %v758, %v835
      %v837 = vpop.f32.mrb[0].mxu0
      %838 = vdwg.mxu0
      %vm839 = vcmask 130048
      %v841 = vsel %vm839, %v651, 0
      %v844 = vsel %vm839, %v737, 0
      %v847 = vsel %vm839, %v742, 0
      %v850 = vsel %vm839, %v747, 0
      %852 = vmatprep.subr.mxu0 0.0
      %853 = vmatpush1.xpose.msra.mxu0 %v844
      %854 = vmatprep.subr.mxu0 0.0
      %855 = vmatpush1.xpose.msra.mxu0 %v847
      %856 = vmatprep.subr.mxu0 0.0
      %857 = vmatpush1.xpose.msra.mxu0 %v850
      %858 = vmatprep.subr.mxu0 0.0
      %859 = vmatpush1.xpose.msra.mxu0 0.0
      %860 = vmatprep.subr.mxu0 0.0
      %861 = vmatpush1.xpose.msra.mxu0 0.0
      %862 = vmatprep.subr.mxu0 0.0
      %863 = vmatpush1.xpose.msra.mxu0 0.0
      %864 = vmatprep.subr.mxu0 0.0
      %865 = vmatpush1.xpose.msra.mxu0 0.0
      %866 = vmatprep.subr.mxu0 0.0
      %867 = vmatpush1.xpose.msra.mxu0 0.0
      %868 = vmatprep.subr.mxu0 0.0
      %869 = vmatpush1.xpose.msra.mxu0 0.0
      %870 = vmatprep.subr.mxu0 0.0
      %871 = vmatpush1.xpose.msra.mxu0 0.0
      %872 = vmatprep.subr.mxu0 0.0
      %873 = vmatpush1.xpose.msra.mxu0 0.0
      %874 = vmatprep.subr.mxu0 0.0
      %875 = vmatpush1.xpose.msra.mxu0 0.0
      %876 = vmatprep.subr.mxu0 0.0
      %877 = vmatpush1.xpose.msra.mxu0 0.0
      %878 = vmatprep.subr.mxu0 0.0
      %879 = vmatpush1.xpose.msra.mxu0 0.0
      %880 = vmatprep.subr.mxu0 0.0
      %881 = vmatpush1.xpose.msra.mxu0 0.0
      %882 = vmatprep.subr.mxu0 0.0
      %883 = vmatpush1.xpose.msra.mxu0 0.0
      %884 = vmatprep.subr.mxu0 0.0
      %885 = vmatpush1.xpose.msra.mxu0 0.0
      %886 = vmatprep.subr.mxu0 0.0
      %887 = vmatpush1.xpose.msra.mxu0 0.0
      %888 = vmatprep.subr.mxu0 0.0
      %889 = vmatpush1.xpose.msra.mxu0 0.0
      %890 = vmatprep.subr.mxu0 0.0
      %891 = vmatpush1.xpose.msra.mxu0 0.0
      %892 = vmatprep.subr.mxu0 0.0
      %893 = vmatpush1.xpose.msra.mxu0 0.0
      %894 = vmatprep.subr.mxu0 0.0
      %895 = vmatpush1.xpose.msra.mxu0 0.0
      %896 = vmatprep.subr.mxu0 0.0
      %897 = vmatpush1.xpose.msra.mxu0 0.0
      %898 = vmatprep.subr.mxu0 0.0
      %899 = vmatpush1.xpose.msra.mxu0 0.0
      %900 = vmatprep.subr.mxu0 0.0
      %901 = vmatpush1.xpose.msra.mxu0 0.0
      %902 = vmatprep.subr.mxu0 0.0
      %903 = vmatpush1.xpose.msra.mxu0 0.0
      %904 = vmatprep.subr.mxu0 0.0
      %905 = vmatpush1.xpose.msra.mxu0 0.0
      %906 = vmatprep.subr.mxu0 0.0
      %907 = vmatpush1.xpose.msra.mxu0 0.0
      %908 = vmatprep.subr.mxu0 0.0
      %909 = vmatpush1.xpose.msra.mxu0 0.0
      %910 = vmatprep.subr.mxu0 0.0
      %911 = vmatpush1.xpose.msra.mxu0 0.0
      %912 = vmatprep.subr.mxu0 0.0
      %913 = vmatpush1.xpose.msra.mxu0 0.0
      %914 = vmatprep.subr.mxu0 0.0
      %915 = vmatpush1.xpose.msra.mxu0 0.0
      %916 = vmatprep.mubr.f32.mxu0 0.0
      %917 = vmatmul.mubr.f32.gmra.mrb[0].mxu0 %v841
      %v918 = vpop.f32.mrb[0].mxu0
      %v919 = vadd.f32 0.0, %v918
      %v920 = vpop.f32.mrb[0].mxu0
      %921 = vdwg.mxu0
      %v922 = vsel %vm565, -1e+09, %v919
      %vm923 = vcmask 190464
      %v924 = vsel %vm923, %v922, -inf
      %925 = vmax.xlane.f32.xlu0 %v924
      %v926 = vpop.xlane.xlu0 %925
      %v927 = vsub.f32 %v922, %v926
      %v928 = vmul.f32 %v927, 1.442695
      %v929 = vpow.pop %v928
      %v930 = vsel %vm923, %v929, 0.0
      %931 = vadd.xlane.f32.xlu0 %v930
      %v932 = vpop.xlane.xlu0 %931
      %v933 = vrcp.pop %v932
      %v934 = vmul.f32 %v929, %v933
      %vm935 = vcmask 195584
      %v937 = vsel %vm935, %v934, 0
      %939 = vmatprep.subr.mxu0 0.0
      %940 = vmatpush1.msra.mxu0 %v826
      %941 = vmatprep.subr.mxu0 0.0
      %942 = vmatpush1.msra.mxu0 %v831
      %943 = vmatprep.subr.mxu0 0.0
      %944 = vmatpush1.msra.mxu0 %v836
      %945 = vmatprep.subr.mxu0 0.0
      %946 = vmatpush1.msra.mxu0 0.0
      %947 = vmatprep.subr.mxu0 0.0
      %948 = vmatpush1.msra.mxu0 0.0
      %949 = vmatprep.subr.mxu0 0.0
      %950 = vmatpush1.msra.mxu0 0.0
      %951 = vmatprep.subr.mxu0 0.0
      %952 = vmatpush1.msra.mxu0 0.0
      %953 = vmatprep.subr.mxu0 0.0
      %954 = vmatpush1.msra.mxu0 0.0
      %955 = vmatprep.subr.mxu0 0.0
      %956 = vmatpush1.msra.mxu0 0.0
      %957 = vmatprep.subr.mxu0 0.0
      %958 = vmatpush1.msra.mxu0 0.0
      %959 = vmatprep.subr.mxu0 0.0
      %960 = vmatpush1.msra.mxu0 0.0
      %961 = vmatprep.subr.mxu0 0.0
      %962 = vmatpush1.msra.mxu0 0.0
      %963 = vmatprep.subr.mxu0 0.0
      %964 = vmatpush1.msra.mxu0 0.0
      %965 = vmatprep.subr.mxu0 0.0
      %966 = vmatpush1.msra.mxu0 0.0
      %967 = vmatprep.subr.mxu0 0.0
      %968 = vmatpush1.msra.mxu0 0.0
      %969 = vmatprep.subr.mxu0 0.0
      %970 = vmatpush1.msra.mxu0 0.0
      %971 = vmatprep.subr.mxu0 0.0
      %972 = vmatpush1.msra.mxu0 0.0
      %973 = vmatprep.subr.mxu0 0.0
      %974 = vmatpush1.msra.mxu0 0.0
      %975 = vmatprep.subr.mxu0 0.0
      %976 = vmatpush1.msra.mxu0 0.0
      %977 = vmatprep.subr.mxu0 0.0
      %978 = vmatpush1.msra.mxu0 0.0
      %979 = vmatprep.subr.mxu0 0.0
      %980 = vmatpush1.msra.mxu0 0.0
      %981 = vmatprep.subr.mxu0 0.0
      %982 = vmatpush1.msra.mxu0 0.0
      %983 = vmatprep.subr.mxu0 0.0
      %984 = vmatpush1.msra.mxu0 0.0
      %985 = vmatprep.subr.mxu0 0.0
      %986 = vmatpush1.msra.mxu0 0.0
      %987 = vmatprep.subr.mxu0 0.0
      %988 = vmatpush1.msra.mxu0 0.0
      %989 = vmatprep.subr.mxu0 0.0
      %990 = vmatpush1.msra.mxu0 0.0
      %991 = vmatprep.subr.mxu0 0.0
      %992 = vmatpush1.msra.mxu0 0.0
      %993 = vmatprep.subr.mxu0 0.0
      %994 = vmatpush1.msra.mxu0 0.0
      %995 = vmatprep.subr.mxu0 0.0
      %996 = vmatpush1.msra.mxu0 0.0
      %997 = vmatprep.subr.mxu0 0.0
      %998 = vmatpush1.msra.mxu0 0.0
      %999 = vmatprep.subr.mxu0 0.0
      %1000 = vmatpush1.msra.mxu0 0.0
      %1001 = vmatprep.subr.mxu0 0.0
      %1002 = vmatpush1.msra.mxu0 0.0
      %1003 = vmatprep.mubr.f32.mxu0 0.0
      %1004 = vmatmul.mubr.f32.gmra.mrb[0].mxu0 %v937
      %v1005 = vpop.f32.mrb[0].mxu0
      %v1006 = vadd.f32 0.0, %v1005
      %v1007 = vpop.f32.mrb[0].mxu0
      %1008 = vdwg.mxu0
      %1009 = vrot.lane.b32.xlu0 %v651, 112
      %v1010 = vpop.permute.xlu0 %1009
      %1011 = vrot.lane.b32.xlu0 %v737, 112
      %v1012 = vpop.permute.xlu0 %1011
      %1013 = vrot.lane.b32.xlu0 %v742, 112
      %v1014 = vpop.permute.xlu0 %1013
      %1015 = vrot.lane.b32.xlu0 %v747, 112
      %v1016 = vpop.permute.xlu0 %1015
      %v1017 = vsel %vm839, %v1010, 0
      %v1019 = vsel %vm839, %v1012, 0
      %v1021 = vsel %vm839, %v1014, 0
      %v1023 = vsel %vm839, %v1016, 0
      %1025 = vmatprep.subr.mxu0 0.0
      %1026 = vmatpush1.xpose.msra.mxu0 %v1019
      %1027 = vmatprep.subr.mxu0 0.0
      %1028 = vmatpush1.xpose.msra.mxu0 %v1021
      %1029 = vmatprep.subr.mxu0 0.0
      %1030 = vmatpush1.xpose.msra.mxu0 %v1023
      %1031 = vmatprep.subr.mxu0 0.0
      %1032 = vmatpush1.xpose.msra.mxu0 0.0
      %1033 = vmatprep.subr.mxu0 0.0
      %1034 = vmatpush1.xpose.msra.mxu0 0.0
      %1035 = vmatprep.subr.mxu0 0.0
      %1036 = vmatpush1.xpose.msra.mxu0 0.0
      %1037 = vmatprep.subr.mxu0 0.0
      %1038 = vmatpush1.xpose.msra.mxu0 0.0
      %1039 = vmatprep.subr.mxu0 0.0
      %1040 = vmatpush1.xpose.msra.mxu0 0.0
      %1041 = vmatprep.subr.mxu0 0.0
      %1042 = vmatpush1.xpose.msra.mxu0 0.0
      %1043 = vmatprep.subr.mxu0 0.0
      %1044 = vmatpush1.xpose.msra.mxu0 0.0
      %1045 = vmatprep.subr.mxu0 0.0
      %1046 = vmatpush1.xpose.msra.mxu0 0.0
      %1047 = vmatprep.subr.mxu0 0.0
      %1048 = vmatpush1.xpose.msra.mxu0 0.0
      %1049 = vmatprep.subr.mxu0 0.0
      %1050 = vmatpush1.xpose.msra.mxu0 0.0
      %1051 = vmatprep.subr.mxu0 0.0
      %1052 = vmatpush1.xpose.msra.mxu0 0.0
      %1053 = vmatprep.subr.mxu0 0.0
      %1054 = vmatpush1.xpose.msra.mxu0 0.0
      %1055 = vmatprep.subr.mxu0 0.0
      %1056 = vmatpush1.xpose.msra.mxu0 0.0
      %1057 = vmatprep.subr.mxu0 0.0
      %1058 = vmatpush1.xpose.msra.mxu0 0.0
      %1059 = vmatprep.subr.mxu0 0.0
      %1060 = vmatpush1.xpose.msra.mxu0 0.0
      %1061 = vmatprep.subr.mxu0 0.0
      %1062 = vmatpush1.xpose.msra.mxu0 0.0
      %1063 = vmatprep.subr.mxu0 0.0
      %1064 = vmatpush1.xpose.msra.mxu0 0.0
      %1065 = vmatprep.subr.mxu0 0.0
      %1066 = vmatpush1.xpose.msra.mxu0 0.0
      %1067 = vmatprep.subr.mxu0 0.0
      %1068 = vmatpush1.xpose.msra.mxu0 0.0
      %1069 = vmatprep.subr.mxu0 0.0
      %1070 = vmatpush1.xpose.msra.mxu0 0.0
      %1071 = vmatprep.subr.mxu0 0.0
      %1072 = vmatpush1.xpose.msra.mxu0 0.0
      %1073 = vmatprep.subr.mxu0 0.0
      %1074 = vmatpush1.xpose.msra.mxu0 0.0
      %1075 = vmatprep.subr.mxu0 0.0
      %1076 = vmatpush1.xpose.msra.mxu0 0.0
      %1077 = vmatprep.subr.mxu0 0.0
      %1078 = vmatpush1.xpose.msra.mxu0 0.0
      %1079 = vmatprep.subr.mxu0 0.0
      %1080 = vmatpush1.xpose.msra.mxu0 0.0
      %1081 = vmatprep.subr.mxu0 0.0
      %1082 = vmatpush1.xpose.msra.mxu0 0.0
      %1083 = vmatprep.subr.mxu0 0.0
      %1084 = vmatpush1.xpose.msra.mxu0 0.0
      %1085 = vmatprep.subr.mxu0 0.0
      %1086 = vmatpush1.xpose.msra.mxu0 0.0
      %1087 = vmatprep.subr.mxu0 0.0
      %1088 = vmatpush1.xpose.msra.mxu0 0.0
      %1089 = vmatprep.mubr.f32.mxu0 0.0
      %1090 = vmatmul.mubr.f32.gmra.mrb[0].mxu0 %v1017
      %v1091 = vpop.f32.mrb[0].mxu0
      %v1092 = vadd.f32 0.0, %v1091
      %v1093 = vpop.f32.mrb[0].mxu0
      %1094 = vdwg.mxu0
      %v1095 = vsel %vm565, -1e+09, %v1092
      %v1096 = vsel %vm923, %v1095, -inf
      %1097 = vmax.xlane.f32.xlu0 %v1096
      %v1098 = vpop.xlane.xlu0 %1097
      %v1099 = vsub.f32 %v1095, %v1098
      %v1100 = vmul.f32 %v1099, 1.442695
      %v1101 = vpow.pop %v1100
      %v1102 = vsel %vm923, %v1101, 0.0
      %1103 = vadd.xlane.f32.xlu0 %v1102
      %v1104 = vpop.xlane.xlu0 %1103
      %v1105 = vrcp.pop %v1104
      %v1106 = vmul.f32 %v1101, %v1105
      %1110 = vrot.lane.b32.xlu0 %v826, 112
      %v1111 = vpop.permute.xlu0 %1110
      %1112 = vrot.lane.b32.xlu0 %v831, 112
      %v1113 = vpop.permute.xlu0 %1112
      %1114 = vrot.lane.b32.xlu0 %v836, 112
      %v1115 = vpop.permute.xlu0 %1114
      %v1120 = vsel %vm935, %v1106, 0
      %1122 = vmatprep.subr.mxu0 0.0
      %1123 = vmatpush1.msra.mxu0 %v1111
      %1124 = vmatprep.subr.mxu0 0.0
      %1125 = vmatpush1.msra.mxu0 %v1113
      %1126 = vmatprep.subr.mxu0 0.0
      %1127 = vmatpush1.msra.mxu0 %v1115
      %1128 = vmatprep.subr.mxu0 0.0
      %1129 = vmatpush1.msra.mxu0 0.0
      %1130 = vmatprep.subr.mxu0 0.0
      %1131 = vmatpush1.msra.mxu0 0.0
      %1132 = vmatprep.subr.mxu0 0.0
      %1133 = vmatpush1.msra.mxu0 0.0
      %1134 = vmatprep.subr.mxu0 0.0
      %1135 = vmatpush1.msra.mxu0 0.0
      %1136 = vmatprep.subr.mxu0 0.0
      %1137 = vmatpush1.msra.mxu0 0.0
      %1138 = vmatprep.subr.mxu0 0.0
      %1139 = vmatpush1.msra.mxu0 0.0
      %1140 = vmatprep.subr.mxu0 0.0
      %1141 = vmatpush1.msra.mxu0 0.0
      %1142 = vmatprep.subr.mxu0 0.0
      %1143 = vmatpush1.msra.mxu0 0.0
      %1144 = vmatprep.subr.mxu0 0.0
      %1145 = vmatpush1.msra.mxu0 0.0
      %1146 = vmatprep.subr.mxu0 0.0
      %1147 = vmatpush1.msra.mxu0 0.0
      %1148 = vmatprep.subr.mxu0 0.0
      %1149 = vmatpush1.msra.mxu0 0.0
      %1150 = vmatprep.subr.mxu0 0.0
      %1151 = vmatpush1.msra.mxu0 0.0
      %1152 = vmatprep.subr.mxu0 0.0
      %1153 = vmatpush1.msra.mxu0 0.0
      %1154 = vmatprep.subr.mxu0 0.0
      %1155 = vmatpush1.msra.mxu0 0.0
      %1156 = vmatprep.subr.mxu0 0.0
      %1157 = vmatpush1.msra.mxu0 0.0
      %1158 = vmatprep.subr.mxu0 0.0
      %1159 = vmatpush1.msra.mxu0 0.0
      %1160 = vmatprep.subr.mxu0 0.0
      %1161 = vmatpush1.msra.mxu0 0.0
      %1162 = vmatprep.subr.mxu0 0.0
      %1163 = vmatpush1.msra.mxu0 0.0
      %1164 = vmatprep.subr.mxu0 0.0
      %1165 = vmatpush1.msra.mxu0 0.0
      %1166 = vmatprep.subr.mxu0 0.0
      %1167 = vmatpush1.msra.mxu0 0.0
      %1168 = vmatprep.subr.mxu0 0.0
      %1169 = vmatpush1.msra.mxu0 0.0
      %1170 = vmatprep.subr.mxu0 0.0
      %1171 = vmatpush1.msra.mxu0 0.0
      %1172 = vmatprep.subr.mxu0 0.0
      %1173 = vmatpush1.msra.mxu0 0.0
      %1174 = vmatprep.subr.mxu0 0.0
      %1175 = vmatpush1.msra.mxu0 0.0
      %1176 = vmatprep.subr.mxu0 0.0
      %1177 = vmatpush1.msra.mxu0 0.0
      %1178 = vmatprep.subr.mxu0 0.0
      %1179 = vmatpush1.msra.mxu0 0.0
      %1180 = vmatprep.subr.mxu0 0.0
      %1181 = vmatpush1.msra.mxu0 0.0
      %1182 = vmatprep.subr.mxu0 0.0
      %1183 = vmatpush1.msra.mxu0 0.0
      %1184 = vmatprep.subr.mxu0 0.0
      %1185 = vmatpush1.msra.mxu0 0.0
      %1186 = vmatprep.mubr.f32.mxu0 0.0
      %1187 = vmatmul.mubr.f32.gmra.mrb[0].mxu0 %v1120
      %v1188 = vpop.f32.mrb[0].mxu0
      %v1189 = vadd.f32 0.0, %v1188
      %v1190 = vpop.f32.mrb[0].mxu0
      %1191 = vdwg.mxu0
      %1193 = vrot.lane.b32.xlu0 %v1189, 16
      %v1194 = vpop.permute.xlu0 %1193
      %v1196 = vsel %vm839, %v1006, %v1194
      %s1197 = scalar_lea.vmem %s5, 96
      %v1198 = vld [vmem:[%s1197] sm:$0xff]
      %v1199 = vld [vmem:[%s1197 + $0x8] sm:$0xff]
      %v1200 = vld [vmem:[%s1197 + $0x10] sm:$0xff]
      %v1201 = vld [vmem:[%s1197 + $0x18] sm:$0xff]
      %v1202 = vlaneseq
      %v1203 = vshrl.u32 %v1202, 7
      %v1204 = vsub.s32 3, %v1203
      %v1205 = vrot.slane %v566, %v1204
      %v1207 = vsel %vm577, %v1196, 0
      %1209 = vmatprep.subr.mxu0 0.0
      %1210 = vmatpush1.msra.mxu0 %v1198
      %1211 = vmatprep.subr.mxu0 0.0
      %1212 = vmatpush1.msra.mxu0 %v1199
      %1213 = vmatprep.subr.mxu0 0.0
      %1214 = vmatpush1.msra.mxu0 %v1200
      %1215 = vmatprep.subr.mxu0 0.0
      %1216 = vmatpush1.msra.mxu0 %v1201
      %1217 = vmatprep.subr.mxu0 0.0
      %1218 = vmatpush1.msra.mxu0 0.0
      %1219 = vmatprep.subr.mxu0 0.0
      %1220 = vmatpush1.msra.mxu0 0.0
      %1221 = vmatprep.subr.mxu0 0.0
      %1222 = vmatpush1.msra.mxu0 0.0
      %1223 = vmatprep.subr.mxu0 0.0
      %1224 = vmatpush1.msra.mxu0 0.0
      %1225 = vmatprep.subr.mxu0 0.0
      %1226 = vmatpush1.msra.mxu0 0.0
      %1227 = vmatprep.subr.mxu0 0.0
      %1228 = vmatpush1.msra.mxu0 0.0
      %1229 = vmatprep.subr.mxu0 0.0
      %1230 = vmatpush1.msra.mxu0 0.0
      %1231 = vmatprep.subr.mxu0 0.0
      %1232 = vmatpush1.msra.mxu0 0.0
      %1233 = vmatprep.subr.mxu0 0.0
      %1234 = vmatpush1.msra.mxu0 0.0
      %1235 = vmatprep.subr.mxu0 0.0
      %1236 = vmatpush1.msra.mxu0 0.0
      %1237 = vmatprep.subr.mxu0 0.0
      %1238 = vmatpush1.msra.mxu0 0.0
      %1239 = vmatprep.subr.mxu0 0.0
      %1240 = vmatpush1.msra.mxu0 0.0
      %1241 = vmatprep.subr.mxu0 0.0
      %1242 = vmatpush1.msra.mxu0 0.0
      %1243 = vmatprep.subr.mxu0 0.0
      %1244 = vmatpush1.msra.mxu0 0.0
      %1245 = vmatprep.subr.mxu0 0.0
      %1246 = vmatpush1.msra.mxu0 0.0
      %1247 = vmatprep.subr.mxu0 0.0
      %1248 = vmatpush1.msra.mxu0 0.0
      %1249 = vmatprep.subr.mxu0 0.0
      %1250 = vmatpush1.msra.mxu0 0.0
      %1251 = vmatprep.subr.mxu0 0.0
      %1252 = vmatpush1.msra.mxu0 0.0
      %1253 = vmatprep.subr.mxu0 0.0
      %1254 = vmatpush1.msra.mxu0 0.0
      %1255 = vmatprep.subr.mxu0 0.0
      %1256 = vmatpush1.msra.mxu0 0.0
      %1257 = vmatprep.subr.mxu0 0.0
      %1258 = vmatpush1.msra.mxu0 0.0
      %1259 = vmatprep.subr.mxu0 0.0
      %1260 = vmatpush1.msra.mxu0 0.0
      %1261 = vmatprep.subr.mxu0 0.0
      %1262 = vmatpush1.msra.mxu0 0.0
      %1263 = vmatprep.subr.mxu0 0.0
      %1264 = vmatpush1.msra.mxu0 0.0
      %1265 = vmatprep.subr.mxu0 0.0
      %1266 = vmatpush1.msra.mxu0 0.0
      %1267 = vmatprep.subr.mxu0 0.0
      %1268 = vmatpush1.msra.mxu0 0.0
      %1269 = vmatprep.subr.mxu0 0.0
      %1270 = vmatpush1.msra.mxu0 0.0
      %1271 = vmatprep.subr.mxu0 0.0
      %1272 = vmatpush1.msra.mxu0 0.0
      %1273 = vmatprep.mubr.f32.mxu0 0.0
      %1274 = vmatmul.mubr.f32.gmra.mrb[0].mxu0 %v1207
      %v1275 = vpop.f32.mrb[0].mxu0
      %v1276 = vadd.f32 %v1205, %v1275
      %v1277 = vpop.f32.mrb[0].mxu0
      %1278 = vdwg.mxu0
      %v1279 = vadd.f32 %v473, %v1276
      %vm1280 = vcmask 256000
      %v1281 = vsel %vm1280, %v1279, 0.0
      %1282 = vadd.xlane.f32.xlu0 %v1281
      %v1283 = vpop.xlane.xlu0 %1282
      %v1284 = vrcp.pop 32.0
      %v1285 = vmul.f32 %v1283, %v1284
      %v1286 = vsub.f32 %v1279, %v1285
      %v1287 = vmul.f32 %v1286, %v1286
      %v1288 = vsel %vm1280, %v1287, 0.0
      %1289 = vadd.xlane.f32.xlu0 %v1288
      %v1290 = vpop.xlane.xlu0 %1289
      %v1291 = vmul.f32 %v1290, %v1284
      %v1292 = vadd.f32 %v1291, 1e-05
      %v1293 = vrsqrt.pop %v1292
      %v1294 = vmul.f32 %v1286, %v1293
      %v1295 = vlaneseq
      %v1296 = vshrl.u32 %v1295, 7
      %v1297 = vsub.s32 4, %v1296
      %v1298 = vrot.slane %v566, %v1297
      %v1299 = vmul.f32 %v1294, %v1298
      %v1300 = vlaneseq
      %v1301 = vshrl.u32 %v1300, 7
      %v1302 = vsub.s32 5, %v1301
      %v1303 = vrot.slane %v566, %v1302
      %v1304 = vadd.f32 %v1299, %v1303
      %v1305 = vld [vmem:[%s6] sm:$0xff]
      %v1306 = vld [vmem:[%s6 + $0x8] sm:$0xff]
      %v1307 = vld [vmem:[%s6 + $0x10] sm:$0xff]
      %v1308 = vld [vmem:[%s6 + $0x18] sm:$0xff]
      %v1310 = vlaneseq
      %v1311 = vshrl.u32 %v1310, 7
      %v1312 = vsub.s32 0, %v1311
      %v1313 = vrot.slane %v568, %v1312
      %v1316 = vsel %vm577, %v1304, 0
      %1318 = vmatprep.subr.mxu0 0.0
      %1319 = vmatpush1.msra.mxu0 %v1305
      %1320 = vmatprep.subr.mxu0 0.0
      %1321 = vmatpush1.msra.mxu0 %v1306
      %1322 = vmatprep.subr.mxu0 0.0
      %1323 = vmatpush1.msra.mxu0 %v1307
      %1324 = vmatprep.subr.mxu0 0.0
      %1325 = vmatpush1.msra.mxu0 %v1308
      %1326 = vmatprep.subr.mxu0 0.0
      %1327 = vmatpush1.msra.mxu0 0.0
      %1328 = vmatprep.subr.mxu0 0.0
      %1329 = vmatpush1.msra.mxu0 0.0
      %1330 = vmatprep.subr.mxu0 0.0
      %1331 = vmatpush1.msra.mxu0 0.0
      %1332 = vmatprep.subr.mxu0 0.0
      %1333 = vmatpush1.msra.mxu0 0.0
      %1334 = vmatprep.subr.mxu0 0.0
      %1335 = vmatpush1.msra.mxu0 0.0
      %1336 = vmatprep.subr.mxu0 0.0
      %1337 = vmatpush1.msra.mxu0 0.0
      %1338 = vmatprep.subr.mxu0 0.0
      %1339 = vmatpush1.msra.mxu0 0.0
      %1340 = vmatprep.subr.mxu0 0.0
      %1341 = vmatpush1.msra.mxu0 0.0
      %1342 = vmatprep.subr.mxu0 0.0
      %1343 = vmatpush1.msra.mxu0 0.0
      %1344 = vmatprep.subr.mxu0 0.0
      %1345 = vmatpush1.msra.mxu0 0.0
      %1346 = vmatprep.subr.mxu0 0.0
      %1347 = vmatpush1.msra.mxu0 0.0
      %1348 = vmatprep.subr.mxu0 0.0
      %1349 = vmatpush1.msra.mxu0 0.0
      %1350 = vmatprep.subr.mxu0 0.0
      %1351 = vmatpush1.msra.mxu0 0.0
      %1352 = vmatprep.subr.mxu0 0.0
      %1353 = vmatpush1.msra.mxu0 0.0
      %1354 = vmatprep.subr.mxu0 0.0
      %1355 = vmatpush1.msra.mxu0 0.0
      %1356 = vmatprep.subr.mxu0 0.0
      %1357 = vmatpush1.msra.mxu0 0.0
      %1358 = vmatprep.subr.mxu0 0.0
      %1359 = vmatpush1.msra.mxu0 0.0
      %1360 = vmatprep.subr.mxu0 0.0
      %1361 = vmatpush1.msra.mxu0 0.0
      %1362 = vmatprep.subr.mxu0 0.0
      %1363 = vmatpush1.msra.mxu0 0.0
      %1364 = vmatprep.subr.mxu0 0.0
      %1365 = vmatpush1.msra.mxu0 0.0
      %1366 = vmatprep.subr.mxu0 0.0
      %1367 = vmatpush1.msra.mxu0 0.0
      %1368 = vmatprep.subr.mxu0 0.0
      %1369 = vmatpush1.msra.mxu0 0.0
      %1370 = vmatprep.subr.mxu0 0.0
      %1371 = vmatpush1.msra.mxu0 0.0
      %1372 = vmatprep.subr.mxu0 0.0
      %1373 = vmatpush1.msra.mxu0 0.0
      %1374 = vmatprep.subr.mxu0 0.0
      %1375 = vmatpush1.msra.mxu0 0.0
      %1376 = vmatprep.subr.mxu0 0.0
      %1377 = vmatpush1.msra.mxu0 0.0
      %1378 = vmatprep.subr.mxu0 0.0
      %1379 = vmatpush1.msra.mxu0 0.0
      %1380 = vmatprep.subr.mxu0 0.0
      %1381 = vmatpush1.msra.mxu0 0.0
      %1382 = vmatprep.mubr.f32.mxu0 0.0
      %1383 = vmatmul.mubr.f32.gmra.mrb[0].mxu0 %v1316
      %v1384 = vpop.f32.mrb[0].mxu0
      %v1385 = vadd.f32 %v1313, %v1384
      %v1386 = vpop.f32.mrb[0].mxu0
      %1387 = vdwg.mxu0
      %v1388 = vmax.f32 %v1385, 0.0
      %v1389 = vld [vmem:[%s7] sm:$0xff]
      %v1390 = vld [vmem:[%s7 + $0x8] sm:$0xff]
      %v1391 = vld [vmem:[%s7 + $0x10] sm:$0xff]
      %v1392 = vld [vmem:[%s7 + $0x18] sm:$0xff]
      %v1393 = vld [vmem:[%s7 + $0x20] sm:$0xff]
      %v1394 = vld [vmem:[%s7 + $0x28] sm:$0xff]
      %v1395 = vld [vmem:[%s7 + $0x30] sm:$0xff]
      %v1396 = vld [vmem:[%s7 + $0x38] sm:$0xff]
      %v1397 = vlaneseq
      %v1398 = vshrl.u32 %v1397, 7
      %v1399 = vsub.s32 6, %v1398
      %v1400 = vrot.slane %v566, %v1399
      %vm1401 = vcmask 523264
      %v1403 = vsel %vm1401, %v1388, 0
      %1405 = vmatprep.subr.mxu0 0.0
      %1406 = vmatpush1.msra.mxu0 %v1389
      %1407 = vmatprep.subr.mxu0 0.0
      %1408 = vmatpush1.msra.mxu0 %v1390
      %1409 = vmatprep.subr.mxu0 0.0
      %1410 = vmatpush1.msra.mxu0 %v1391
      %1411 = vmatprep.subr.mxu0 0.0
      %1412 = vmatpush1.msra.mxu0 %v1392
      %1413 = vmatprep.subr.mxu0 0.0
      %1414 = vmatpush1.msra.mxu0 %v1393
      %1415 = vmatprep.subr.mxu0 0.0
      %1416 = vmatpush1.msra.mxu0 %v1394
      %1417 = vmatprep.subr.mxu0 0.0
      %1418 = vmatpush1.msra.mxu0 %v1395
      %1419 = vmatprep.subr.mxu0 0.0
      %1420 = vmatpush1.msra.mxu0 %v1396
      %1421 = vmatprep.subr.mxu0 0.0
      %1422 = vmatpush1.msra.mxu0 0.0
      %1423 = vmatprep.subr.mxu0 0.0
      %1424 = vmatpush1.msra.mxu0 0.0
      %1425 = vmatprep.subr.mxu0 0.0
      %1426 = vmatpush1.msra.mxu0 0.0
      %1427 = vmatprep.subr.mxu0 0.0
      %1428 = vmatpush1.msra.mxu0 0.0
      %1429 = vmatprep.subr.mxu0 0.0
      %1430 = vmatpush1.msra.mxu0 0.0
      %1431 = vmatprep.subr.mxu0 0.0
      %1432 = vmatpush1.msra.mxu0 0.0
      %1433 = vmatprep.subr.mxu0 0.0
      %1434 = vmatpush1.msra.mxu0 0.0
      %1435 = vmatprep.subr.mxu0 0.0
      %1436 = vmatpush1.msra.mxu0 0.0
      %1437 = vmatprep.subr.mxu0 0.0
      %1438 = vmatpush1.msra.mxu0 0.0
      %1439 = vmatprep.subr.mxu0 0.0
      %1440 = vmatpush1.msra.mxu0 0.0
      %1441 = vmatprep.subr.mxu0 0.0
      %1442 = vmatpush1.msra.mxu0 0.0
      %1443 = vmatprep.subr.mxu0 0.0
      %1444 = vmatpush1.msra.mxu0 0.0
      %1445 = vmatprep.subr.mxu0 0.0
      %1446 = vmatpush1.msra.mxu0 0.0
      %1447 = vmatprep.subr.mxu0 0.0
      %1448 = vmatpush1.msra.mxu0 0.0
      %1449 = vmatprep.subr.mxu0 0.0
      %1450 = vmatpush1.msra.mxu0 0.0
      %1451 = vmatprep.subr.mxu0 0.0
      %1452 = vmatpush1.msra.mxu0 0.0
      %1453 = vmatprep.subr.mxu0 0.0
      %1454 = vmatpush1.msra.mxu0 0.0
      %1455 = vmatprep.subr.mxu0 0.0
      %1456 = vmatpush1.msra.mxu0 0.0
      %1457 = vmatprep.subr.mxu0 0.0
      %1458 = vmatpush1.msra.mxu0 0.0
      %1459 = vmatprep.subr.mxu0 0.0
      %1460 = vmatpush1.msra.mxu0 0.0
      %1461 = vmatprep.subr.mxu0 0.0
      %1462 = vmatpush1.msra.mxu0 0.0
      %1463 = vmatprep.subr.mxu0 0.0
      %1464 = vmatpush1.msra.mxu0 0.0
      %1465 = vmatprep.subr.mxu0 0.0
      %1466 = vmatpush1.msra.mxu0 0.0
      %1467 = vmatprep.subr.mxu0 0.0
      %1468 = vmatpush1.msra.mxu0 0.0
      %1469 = vmatprep.mubr.f32.mxu0 0.0
      %1470 = vmatmul.mubr.f32.gmra.mrb[0].mxu0 %v1403
      %v1471 = vpop.f32.mrb[0].mxu0
      %v1472 = vadd.f32 %v1400, %v1471
      %v1473 = vpop.f32.mrb[0].mxu0
      %1474 = vdwg.mxu0
      %v1475 = vadd.f32 %v1304, %v1472
      %v1476 = vsel %vm1280, %v1475, 0.0
      %1477 = vadd.xlane.f32.xlu0 %v1476
      %v1478 = vpop.xlane.xlu0 %1477
      %v1479 = vmul.f32 %v1478, %v1284
      %v1480 = vsub.f32 %v1475, %v1479
      %v1481 = vmul.f32 %v1480, %v1480
      %v1482 = vsel %vm1280, %v1481, 0.0
      %1483 = vadd.xlane.f32.xlu0 %v1482
      %v1484 = vpop.xlane.xlu0 %1483
      %v1485 = vmul.f32 %v1484, %v1284
      %v1486 = vadd.f32 %v1485, 1e-05
      %v1487 = vrsqrt.pop %v1486
      %v1488 = vmul.f32 %v1480, %v1487
      %v1489 = vlaneseq
      %v1490 = vshrl.u32 %v1489, 7
      %v1491 = vsub.s32 7, %v1490
      %v1492 = vrot.slane %v566, %v1491
      %v1493 = vmul.f32 %v1488, %v1492
      %v1494 = vlaneseq
      %v1495 = vshrl.u32 %v1494, 7
      %v1496 = vsub.s32 0, %v1495
      %v1497 = vrot.slane %v567, %v1496
      %v1498 = vadd.f32 %v1493, %v1497
      %s1499 = scalar_lea.vmem %s8, 16
      %v1500 = vld [vmem:[%s1499] sm:$0xff]
      %v1501 = vld [vmem:[%s1499 + $0x8] sm:$0x1]
      %s1502 = scalar_lea.vmem %s9, 1
      %v1503 = vld [vmem:[%s1502] sm:$0x1]
      %s1504 = scalar_lea.vmem %s5, 128
      %v1505 = vld [vmem:[%s1504] sm:$0xff]
      %v1506 = vld [vmem:[%s1504 + $0x8] sm:$0xff]
      %v1507 = vld [vmem:[%s1504 + $0x10] sm:$0xff]
      %v1508 = vld [vmem:[%s1504 + $0x18] sm:$0xff]
      %v1509 = vlaneseq
      %v1510 = vshrl.u32 %v1509, 7
      %v1511 = vsub.s32 0, %v1510
      %v1512 = vrot.slane %v1500, %v1511
      %v1514 = vsel %vm577, %v1498, 0
      %1516 = vmatprep.subr.mxu0 0.0
      %1517 = vmatpush1.msra.mxu0 %v1505
      %1518 = vmatprep.subr.mxu0 0.0
      %1519 = vmatpush1.msra.mxu0 %v1506
      %1520 = vmatprep.subr.mxu0 0.0
      %1521 = vmatpush1.msra.mxu0 %v1507
      %1522 = vmatprep.subr.mxu0 0.0
      %1523 = vmatpush1.msra.mxu0 %v1508
      %1524 = vmatprep.subr.mxu0 0.0
      %1525 = vmatpush1.msra.mxu0 0.0
      %1526 = vmatprep.subr.mxu0 0.0
      %1527 = vmatpush1.msra.mxu0 0.0
      %1528 = vmatprep.subr.mxu0 0.0
      %1529 = vmatpush1.msra.mxu0 0.0
      %1530 = vmatprep.subr.mxu0 0.0
      %1531 = vmatpush1.msra.mxu0 0.0
      %1532 = vmatprep.subr.mxu0 0.0
      %1533 = vmatpush1.msra.mxu0 0.0
      %1534 = vmatprep.subr.mxu0 0.0
      %1535 = vmatpush1.msra.mxu0 0.0
      %1536 = vmatprep.subr.mxu0 0.0
      %1537 = vmatpush1.msra.mxu0 0.0
      %1538 = vmatprep.subr.mxu0 0.0
      %1539 = vmatpush1.msra.mxu0 0.0
      %1540 = vmatprep.subr.mxu0 0.0
      %1541 = vmatpush1.msra.mxu0 0.0
      %1542 = vmatprep.subr.mxu0 0.0
      %1543 = vmatpush1.msra.mxu0 0.0
      %1544 = vmatprep.subr.mxu0 0.0
      %1545 = vmatpush1.msra.mxu0 0.0
      %1546 = vmatprep.subr.mxu0 0.0
      %1547 = vmatpush1.msra.mxu0 0.0
      %1548 = vmatprep.subr.mxu0 0.0
      %1549 = vmatpush1.msra.mxu0 0.0
      %1550 = vmatprep.subr.mxu0 0.0
      %1551 = vmatpush1.msra.mxu0 0.0
      %1552 = vmatprep.subr.mxu0 0.0
      %1553 = vmatpush1.msra.mxu0 0.0
      %1554 = vmatprep.subr.mxu0 0.0
      %1555 = vmatpush1.msra.mxu0 0.0
      %1556 = vmatprep.subr.mxu0 0.0
      %1557 = vmatpush1.msra.mxu0 0.0
      %1558 = vmatprep.subr.mxu0 0.0
      %1559 = vmatpush1.msra.mxu0 0.0
      %1560 = vmatprep.subr.mxu0 0.0
      %1561 = vmatpush1.msra.mxu0 0.0
      %1562 = vmatprep.subr.mxu0 0.0
      %1563 = vmatpush1.msra.mxu0 0.0
      %1564 = vmatprep.subr.mxu0 0.0
      %1565 = vmatpush1.msra.mxu0 0.0
      %1566 = vmatprep.subr.mxu0 0.0
      %1567 = vmatpush1.msra.mxu0 0.0
      %1568 = vmatprep.subr.mxu0 0.0
      %1569 = vmatpush1.msra.mxu0 0.0
      %1570 = vmatprep.subr.mxu0 0.0
      %1571 = vmatpush1.msra.mxu0 0.0
      %1572 = vmatprep.subr.mxu0 0.0
      %1573 = vmatpush1.msra.mxu0 0.0
      %1574 = vmatprep.subr.mxu0 0.0
      %1575 = vmatpush1.msra.mxu0 0.0
      %1576 = vmatprep.subr.mxu0 0.0
      %1577 = vmatpush1.msra.mxu0 0.0
      %1578 = vmatprep.subr.mxu0 0.0
      %1579 = vmatpush1.msra.mxu0 0.0
      %1580 = vmatprep.mubr.f32.mxu0 0.0
      %1581 = vmatmul.mubr.f32.gmra.mrb[0].mxu0 %v1514
      %v1582 = vpop.f32.mrb[0].mxu0
      %v1583 = vadd.f32 %v1512, %v1582
      %v1584 = vpop.f32.mrb[0].mxu0
      %1585 = vdwg.mxu0
      %v1586 = vmul.f32 %v1583, 0.25
      %s1587 = scalar_lea.vmem %s5, 160
      %v1588 = vld [vmem:[%s1587] sm:$0xff]
      %v1589 = vld [vmem:[%s1587 + $0x8] sm:$0xff]
      %v1590 = vld [vmem:[%s1587 + $0x10] sm:$0xff]
      %v1591 = vld [vmem:[%s1587 + $0x18] sm:$0xff]
      %v1592 = vlaneseq
      %v1593 = vshrl.u32 %v1592, 7
      %v1594 = vsub.s32 1, %v1593
      %v1595 = vrot.slane %v1500, %v1594
      %1596 = vmatprep.subr.mxu0 0.0
      %1597 = vmatpush1.msra.mxu0 %v1588
      %1598 = vmatprep.subr.mxu0 0.0
      %1599 = vmatpush1.msra.mxu0 %v1589
      %1600 = vmatprep.subr.mxu0 0.0
      %1601 = vmatpush1.msra.mxu0 %v1590
      %1602 = vmatprep.subr.mxu0 0.0
      %1603 = vmatpush1.msra.mxu0 %v1591
      %1604 = vmatprep.subr.mxu0 0.0
      %1605 = vmatpush1.msra.mxu0 0.0
      %1606 = vmatprep.subr.mxu0 0.0
      %1607 = vmatpush1.msra.mxu0 0.0
      %1608 = vmatprep.subr.mxu0 0.0
      %1609 = vmatpush1.msra.mxu0 0.0
      %1610 = vmatprep.subr.mxu0 0.0
      %1611 = vmatpush1.msra.mxu0 0.0
      %1612 = vmatprep.subr.mxu0 0.0
      %1613 = vmatpush1.msra.mxu0 0.0
      %1614 = vmatprep.subr.mxu0 0.0
      %1615 = vmatpush1.msra.mxu0 0.0
      %1616 = vmatprep.subr.mxu0 0.0
      %1617 = vmatpush1.msra.mxu0 0.0
      %1618 = vmatprep.subr.mxu0 0.0
      %1619 = vmatpush1.msra.mxu0 0.0
      %1620 = vmatprep.subr.mxu0 0.0
      %1621 = vmatpush1.msra.mxu0 0.0
      %1622 = vmatprep.subr.mxu0 0.0
      %1623 = vmatpush1.msra.mxu0 0.0
      %1624 = vmatprep.subr.mxu0 0.0
      %1625 = vmatpush1.msra.mxu0 0.0
      %1626 = vmatprep.subr.mxu0 0.0
      %1627 = vmatpush1.msra.mxu0 0.0
      %1628 = vmatprep.subr.mxu0 0.0
      %1629 = vmatpush1.msra.mxu0 0.0
      %1630 = vmatprep.subr.mxu0 0.0
      %1631 = vmatpush1.msra.mxu0 0.0
      %1632 = vmatprep.subr.mxu0 0.0
      %1633 = vmatpush1.msra.mxu0 0.0
      %1634 = vmatprep.subr.mxu0 0.0
      %1635 = vmatpush1.msra.mxu0 0.0
      %1636 = vmatprep.subr.mxu0 0.0
      %1637 = vmatpush1.msra.mxu0 0.0
      %1638 = vmatprep.subr.mxu0 0.0
      %1639 = vmatpush1.msra.mxu0 0.0
      %1640 = vmatprep.subr.mxu0 0.0
      %1641 = vmatpush1.msra.mxu0 0.0
      %1642 = vmatprep.subr.mxu0 0.0
      %1643 = vmatpush1.msra.mxu0 0.0
      %1644 = vmatprep.subr.mxu0 0.0
      %1645 = vmatpush1.msra.mxu0 0.0
      %1646 = vmatprep.subr.mxu0 0.0
      %1647 = vmatpush1.msra.mxu0 0.0
      %1648 = vmatprep.subr.mxu0 0.0
      %1649 = vmatpush1.msra.mxu0 0.0
      %1650 = vmatprep.subr.mxu0 0.0
      %1651 = vmatpush1.msra.mxu0 0.0
      %1652 = vmatprep.subr.mxu0 0.0
      %1653 = vmatpush1.msra.mxu0 0.0
      %1654 = vmatprep.subr.mxu0 0.0
      %1655 = vmatpush1.msra.mxu0 0.0
      %1656 = vmatprep.subr.mxu0 0.0
      %1657 = vmatpush1.msra.mxu0 0.0
      %1658 = vmatprep.subr.mxu0 0.0
      %1659 = vmatpush1.msra.mxu0 0.0
      %1660 = vmatprep.mubr.f32.mxu0 0.0
      %1661 = vmatmul.mubr.f32.gmra.mrb[0].mxu0 %v662
      %v1662 = vpop.f32.mrb[0].mxu0
      %v1663 = vadd.f32 %v1595, %v1662
      %v1664 = vpop.f32.mrb[0].mxu0
      %1665 = vmatprep.mubr.f32.mxu0 0.0
      %1666 = vmatmul.mubr.f32.gmra.mrb[0].mxu0 %v665
      %v1667 = vpop.f32.mrb[0].mxu0
      %v1668 = vadd.f32 %v1595, %v1667
      %v1669 = vpop.f32.mrb[0].mxu0
      %1670 = vmatprep.mubr.f32.mxu0 0.0
      %1671 = vmatmul.mubr.f32.gmra.mrb[0].mxu0 %v668
      %v1672 = vpop.f32.mrb[0].mxu0
      %v1673 = vadd.f32 %v1595, %v1672
      %v1674 = vpop.f32.mrb[0].mxu0
      %1675 = vdwg.mxu0
      %s1676 = scalar_lea.vmem %s5, 192
      %v1677 = vld [vmem:[%s1676] sm:$0xff]
      %v1678 = vld [vmem:[%s1676 + $0x8] sm:$0xff]
      %v1679 = vld [vmem:[%s1676 + $0x10] sm:$0xff]
      %v1680 = vld [vmem:[%s1676 + $0x18] sm:$0xff]
      %v1681 = vlaneseq
      %v1682 = vshrl.u32 %v1681, 7
      %v1683 = vsub.s32 2, %v1682
      %v1684 = vrot.slane %v1500, %v1683
      %1685 = vmatprep.subr.mxu0 0.0
      %1686 = vmatpush1.msra.mxu0 %v1677
      %1687 = vmatprep.subr.mxu0 0.0
      %1688 = vmatpush1.msra.mxu0 %v1678
      %1689 = vmatprep.subr.mxu0 0.0
      %1690 = vmatpush1.msra.mxu0 %v1679
      %1691 = vmatprep.subr.mxu0 0.0
      %1692 = vmatpush1.msra.mxu0 %v1680
      %1693 = vmatprep.subr.mxu0 0.0
      %1694 = vmatpush1.msra.mxu0 0.0
      %1695 = vmatprep.subr.mxu0 0.0
      %1696 = vmatpush1.msra.mxu0 0.0
      %1697 = vmatprep.subr.mxu0 0.0
      %1698 = vmatpush1.msra.mxu0 0.0
      %1699 = vmatprep.subr.mxu0 0.0
      %1700 = vmatpush1.msra.mxu0 0.0
      %1701 = vmatprep.subr.mxu0 0.0
      %1702 = vmatpush1.msra.mxu0 0.0
      %1703 = vmatprep.subr.mxu0 0.0
      %1704 = vmatpush1.msra.mxu0 0.0
      %1705 = vmatprep.subr.mxu0 0.0
      %1706 = vmatpush1.msra.mxu0 0.0
      %1707 = vmatprep.subr.mxu0 0.0
      %1708 = vmatpush1.msra.mxu0 0.0
      %1709 = vmatprep.subr.mxu0 0.0
      %1710 = vmatpush1.msra.mxu0 0.0
      %1711 = vmatprep.subr.mxu0 0.0
      %1712 = vmatpush1.msra.mxu0 0.0
      %1713 = vmatprep.subr.mxu0 0.0
      %1714 = vmatpush1.msra.mxu0 0.0
      %1715 = vmatprep.subr.mxu0 0.0
      %1716 = vmatpush1.msra.mxu0 0.0
      %1717 = vmatprep.subr.mxu0 0.0
      %1718 = vmatpush1.msra.mxu0 0.0
      %1719 = vmatprep.subr.mxu0 0.0
      %1720 = vmatpush1.msra.mxu0 0.0
      %1721 = vmatprep.subr.mxu0 0.0
      %1722 = vmatpush1.msra.mxu0 0.0
      %1723 = vmatprep.subr.mxu0 0.0
      %1724 = vmatpush1.msra.mxu0 0.0
      %1725 = vmatprep.subr.mxu0 0.0
      %1726 = vmatpush1.msra.mxu0 0.0
      %1727 = vmatprep.subr.mxu0 0.0
      %1728 = vmatpush1.msra.mxu0 0.0
      %1729 = vmatprep.subr.mxu0 0.0
      %1730 = vmatpush1.msra.mxu0 0.0
      %1731 = vmatprep.subr.mxu0 0.0
      %1732 = vmatpush1.msra.mxu0 0.0
      %1733 = vmatprep.subr.mxu0 0.0
      %1734 = vmatpush1.msra.mxu0 0.0
      %1735 = vmatprep.subr.mxu0 0.0
      %1736 = vmatpush1.msra.mxu0 0.0
      %1737 = vmatprep.subr.mxu0 0.0
      %1738 = vmatpush1.msra.mxu0 0.0
      %1739 = vmatprep.subr.mxu0 0.0
      %1740 = vmatpush1.msra.mxu0 0.0
      %1741 = vmatprep.subr.mxu0 0.0
      %1742 = vmatpush1.msra.mxu0 0.0
      %1743 = vmatprep.subr.mxu0 0.0
      %1744 = vmatpush1.msra.mxu0 0.0
      %1745 = vmatprep.subr.mxu0 0.0
      %1746 = vmatpush1.msra.mxu0 0.0
      %1747 = vmatprep.subr.mxu0 0.0
      %1748 = vmatpush1.msra.mxu0 0.0
      %1749 = vmatprep.mubr.f32.mxu0 0.0
      %1750 = vmatmul.mubr.f32.gmra.mrb[0].mxu0 %v662
      %v1751 = vpop.f32.mrb[0].mxu0
      %v1752 = vadd.f32 %v1684, %v1751
      %v1753 = vpop.f32.mrb[0].mxu0
      %1754 = vmatprep.mubr.f32.mxu0 0.0
      %1755 = vmatmul.mubr.f32.gmra.mrb[0].mxu0 %v665
      %v1756 = vpop.f32.mrb[0].mxu0
      %v1757 = vadd.f32 %v1684, %v1756
      %v1758 = vpop.f32.mrb[0].mxu0
      %1759 = vmatprep.mubr.f32.mxu0 0.0
      %1760 = vmatmul.mubr.f32.gmra.mrb[0].mxu0 %v668
      %v1761 = vpop.f32.mrb[0].mxu0
      %v1762 = vadd.f32 %v1684, %v1761
      %v1763 = vpop.f32.mrb[0].mxu0
      %1764 = vdwg.mxu0
      %v1766 = vsel %vm839, %v1586, 0
      %v1769 = vsel %vm839, %v1663, 0
      %v1772 = vsel %vm839, %v1668, 0
      %v1775 = vsel %vm839, %v1673, 0
      %1777 = vmatprep.subr.mxu0 0.0
      %1778 = vmatpush1.xpose.msra.mxu0 %v1769
      %1779 = vmatprep.subr.mxu0 0.0
      %1780 = vmatpush1.xpose.msra.mxu0 %v1772
      %1781 = vmatprep.subr.mxu0 0.0
      %1782 = vmatpush1.xpose.msra.mxu0 %v1775
      %1783 = vmatprep.subr.mxu0 0.0
      %1784 = vmatpush1.xpose.msra.mxu0 0.0
      %1785 = vmatprep.subr.mxu0 0.0
      %1786 = vmatpush1.xpose.msra.mxu0 0.0
      %1787 = vmatprep.subr.mxu0 0.0
      %1788 = vmatpush1.xpose.msra.mxu0 0.0
      %1789 = vmatprep.subr.mxu0 0.0
      %1790 = vmatpush1.xpose.msra.mxu0 0.0
      %1791 = vmatprep.subr.mxu0 0.0
      %1792 = vmatpush1.xpose.msra.mxu0 0.0
      %1793 = vmatprep.subr.mxu0 0.0
      %1794 = vmatpush1.xpose.msra.mxu0 0.0
      %1795 = vmatprep.subr.mxu0 0.0
      %1796 = vmatpush1.xpose.msra.mxu0 0.0
      %1797 = vmatprep.subr.mxu0 0.0
      %1798 = vmatpush1.xpose.msra.mxu0 0.0
      %1799 = vmatprep.subr.mxu0 0.0
      %1800 = vmatpush1.xpose.msra.mxu0 0.0
      %1801 = vmatprep.subr.mxu0 0.0
      %1802 = vmatpush1.xpose.msra.mxu0 0.0
      %1803 = vmatprep.subr.mxu0 0.0
      %1804 = vmatpush1.xpose.msra.mxu0 0.0
      %1805 = vmatprep.subr.mxu0 0.0
      %1806 = vmatpush1.xpose.msra.mxu0 0.0
      %1807 = vmatprep.subr.mxu0 0.0
      %1808 = vmatpush1.xpose.msra.mxu0 0.0
      %1809 = vmatprep.subr.mxu0 0.0
      %1810 = vmatpush1.xpose.msra.mxu0 0.0
      %1811 = vmatprep.subr.mxu0 0.0
      %1812 = vmatpush1.xpose.msra.mxu0 0.0
      %1813 = vmatprep.subr.mxu0 0.0
      %1814 = vmatpush1.xpose.msra.mxu0 0.0
      %1815 = vmatprep.subr.mxu0 0.0
      %1816 = vmatpush1.xpose.msra.mxu0 0.0
      %1817 = vmatprep.subr.mxu0 0.0
      %1818 = vmatpush1.xpose.msra.mxu0 0.0
      %1819 = vmatprep.subr.mxu0 0.0
      %1820 = vmatpush1.xpose.msra.mxu0 0.0
      %1821 = vmatprep.subr.mxu0 0.0
      %1822 = vmatpush1.xpose.msra.mxu0 0.0
      %1823 = vmatprep.subr.mxu0 0.0
      %1824 = vmatpush1.xpose.msra.mxu0 0.0
      %1825 = vmatprep.subr.mxu0 0.0
      %1826 = vmatpush1.xpose.msra.mxu0 0.0
      %1827 = vmatprep.subr.mxu0 0.0
      %1828 = vmatpush1.xpose.msra.mxu0 0.0
      %1829 = vmatprep.subr.mxu0 0.0
      %1830 = vmatpush1.xpose.msra.mxu0 0.0
      %1831 = vmatprep.subr.mxu0 0.0
      %1832 = vmatpush1.xpose.msra.mxu0 0.0
      %1833 = vmatprep.subr.mxu0 0.0
      %1834 = vmatpush1.xpose.msra.mxu0 0.0
      %1835 = vmatprep.subr.mxu0 0.0
      %1836 = vmatpush1.xpose.msra.mxu0 0.0
      %1837 = vmatprep.subr.mxu0 0.0
      %1838 = vmatpush1.xpose.msra.mxu0 0.0
      %1839 = vmatprep.subr.mxu0 0.0
      %1840 = vmatpush1.xpose.msra.mxu0 0.0
      %1841 = vmatprep.mubr.f32.mxu0 0.0
      %1842 = vmatmul.mubr.f32.gmra.mrb[0].mxu0 %v1766
      %v1843 = vpop.f32.mrb[0].mxu0
      %v1844 = vadd.f32 0.0, %v1843
      %v1845 = vpop.f32.mrb[0].mxu0
      %1846 = vdwg.mxu0
      %v1847 = vsel %vm565, -1e+09, %v1844
      %v1848 = vsel %vm923, %v1847, -inf
      %1849 = vmax.xlane.f32.xlu0 %v1848
      %v1850 = vpop.xlane.xlu0 %1849
      %v1851 = vsub.f32 %v1847, %v1850
      %v1852 = vmul.f32 %v1851, 1.442695
      %v1853 = vpow.pop %v1852
      %v1854 = vsel %vm923, %v1853, 0.0
      %1855 = vadd.xlane.f32.xlu0 %v1854
      %v1856 = vpop.xlane.xlu0 %1855
      %v1857 = vrcp.pop %v1856
      %v1858 = vmul.f32 %v1853, %v1857
      %v1860 = vsel %vm935, %v1858, 0
      %1862 = vmatprep.subr.mxu0 0.0
      %1863 = vmatpush1.msra.mxu0 %v1752
      %1864 = vmatprep.subr.mxu0 0.0
      %1865 = vmatpush1.msra.mxu0 %v1757
      %1866 = vmatprep.subr.mxu0 0.0
      %1867 = vmatpush1.msra.mxu0 %v1762
      %1868 = vmatprep.subr.mxu0 0.0
      %1869 = vmatpush1.msra.mxu0 0.0
      %1870 = vmatprep.subr.mxu0 0.0
      %1871 = vmatpush1.msra.mxu0 0.0
      %1872 = vmatprep.subr.mxu0 0.0
      %1873 = vmatpush1.msra.mxu0 0.0
      %1874 = vmatprep.subr.mxu0 0.0
      %1875 = vmatpush1.msra.mxu0 0.0
      %1876 = vmatprep.subr.mxu0 0.0
      %1877 = vmatpush1.msra.mxu0 0.0
      %1878 = vmatprep.subr.mxu0 0.0
      %1879 = vmatpush1.msra.mxu0 0.0
      %1880 = vmatprep.subr.mxu0 0.0
      %1881 = vmatpush1.msra.mxu0 0.0
      %1882 = vmatprep.subr.mxu0 0.0
      %1883 = vmatpush1.msra.mxu0 0.0
      %1884 = vmatprep.subr.mxu0 0.0
      %1885 = vmatpush1.msra.mxu0 0.0
      %1886 = vmatprep.subr.mxu0 0.0
      %1887 = vmatpush1.msra.mxu0 0.0
      %1888 = vmatprep.subr.mxu0 0.0
      %1889 = vmatpush1.msra.mxu0 0.0
      %1890 = vmatprep.subr.mxu0 0.0
      %1891 = vmatpush1.msra.mxu0 0.0
      %1892 = vmatprep.subr.mxu0 0.0
      %1893 = vmatpush1.msra.mxu0 0.0
      %1894 = vmatprep.subr.mxu0 0.0
      %1895 = vmatpush1.msra.mxu0 0.0
      %1896 = vmatprep.subr.mxu0 0.0
      %1897 = vmatpush1.msra.mxu0 0.0
      %1898 = vmatprep.subr.mxu0 0.0
      %1899 = vmatpush1.msra.mxu0 0.0
      %1900 = vmatprep.subr.mxu0 0.0
      %1901 = vmatpush1.msra.mxu0 0.0
      %1902 = vmatprep.subr.mxu0 0.0
      %1903 = vmatpush1.msra.mxu0 0.0
      %1904 = vmatprep.subr.mxu0 0.0
      %1905 = vmatpush1.msra.mxu0 0.0
      %1906 = vmatprep.subr.mxu0 0.0
      %1907 = vmatpush1.msra.mxu0 0.0
      %1908 = vmatprep.subr.mxu0 0.0
      %1909 = vmatpush1.msra.mxu0 0.0
      %1910 = vmatprep.subr.mxu0 0.0
      %1911 = vmatpush1.msra.mxu0 0.0
      %1912 = vmatprep.subr.mxu0 0.0
      %1913 = vmatpush1.msra.mxu0 0.0
      %1914 = vmatprep.subr.mxu0 0.0
      %1915 = vmatpush1.msra.mxu0 0.0
      %1916 = vmatprep.subr.mxu0 0.0
      %1917 = vmatpush1.msra.mxu0 0.0
      %1918 = vmatprep.subr.mxu0 0.0
      %1919 = vmatpush1.msra.mxu0 0.0
      %1920 = vmatprep.subr.mxu0 0.0
      %1921 = vmatpush1.msra.mxu0 0.0
      %1922 = vmatprep.subr.mxu0 0.0
      %1923 = vmatpush1.msra.mxu0 0.0
      %1924 = vmatprep.subr.mxu0 0.0
      %1925 = vmatpush1.msra.mxu0 0.0
      %1926 = vmatprep.mubr.f32.mxu0 0.0
      %1927 = vmatmul.mubr.f32.gmra.mrb[0].mxu0 %v1860
      %v1928 = vpop.f32.mrb[0].mxu0
      %v1929 = vadd.f32 0.0, %v1928
      %v1930 = vpop.f32.mrb[0].mxu0
      %1931 = vdwg.mxu0
      %1932 = vrot.lane.b32.xlu0 %v1586, 112
      %v1933 = vpop.permute.xlu0 %1932
      %1934 = vrot.lane.b32.xlu0 %v1663, 112
      %v1935 = vpop.permute.xlu0 %1934
      %1936 = vrot.lane.b32.xlu0 %v1668, 112
      %v1937 = vpop.permute.xlu0 %1936
      %1938 = vrot.lane.b32.xlu0 %v1673, 112
      %v1939 = vpop.permute.xlu0 %1938
      %v1940 = vsel %vm839, %v1933, 0
      %v1942 = vsel %vm839, %v1935, 0
      %v1944 = vsel %vm839, %v1937, 0
      %v1946 = vsel %vm839, %v1939, 0
      %1948 = vmatprep.subr.mxu0 0.0
      %1949 = vmatpush1.xpose.msra.mxu0 %v1942
      %1950 = vmatprep.subr.mxu0 0.0
      %1951 = vmatpush1.xpose.msra.mxu0 %v1944
      %1952 = vmatprep.subr.mxu0 0.0
      %1953 = vmatpush1.xpose.msra.mxu0 %v1946
      %1954 = vmatprep.subr.mxu0 0.0
      %1955 = vmatpush1.xpose.msra.mxu0 0.0
      %1956 = vmatprep.subr.mxu0 0.0
      %1957 = vmatpush1.xpose.msra.mxu0 0.0
      %1958 = vmatprep.subr.mxu0 0.0
      %1959 = vmatpush1.xpose.msra.mxu0 0.0
      %1960 = vmatprep.subr.mxu0 0.0
      %1961 = vmatpush1.xpose.msra.mxu0 0.0
      %1962 = vmatprep.subr.mxu0 0.0
      %1963 = vmatpush1.xpose.msra.mxu0 0.0
      %1964 = vmatprep.subr.mxu0 0.0
      %1965 = vmatpush1.xpose.msra.mxu0 0.0
      %1966 = vmatprep.subr.mxu0 0.0
      %1967 = vmatpush1.xpose.msra.mxu0 0.0
      %1968 = vmatprep.subr.mxu0 0.0
      %1969 = vmatpush1.xpose.msra.mxu0 0.0
      %1970 = vmatprep.subr.mxu0 0.0
      %1971 = vmatpush1.xpose.msra.mxu0 0.0
      %1972 = vmatprep.subr.mxu0 0.0
      %1973 = vmatpush1.xpose.msra.mxu0 0.0
      %1974 = vmatprep.subr.mxu0 0.0
      %1975 = vmatpush1.xpose.msra.mxu0 0.0
      %1976 = vmatprep.subr.mxu0 0.0
      %1977 = vmatpush1.xpose.msra.mxu0 0.0
      %1978 = vmatprep.subr.mxu0 0.0
      %1979 = vmatpush1.xpose.msra.mxu0 0.0
      %1980 = vmatprep.subr.mxu0 0.0
      %1981 = vmatpush1.xpose.msra.mxu0 0.0
      %1982 = vmatprep.subr.mxu0 0.0
      %1983 = vmatpush1.xpose.msra.mxu0 0.0
      %1984 = vmatprep.subr.mxu0 0.0
      %1985 = vmatpush1.xpose.msra.mxu0 0.0
      %1986 = vmatprep.subr.mxu0 0.0
      %1987 = vmatpush1.xpose.msra.mxu0 0.0
      %1988 = vmatprep.subr.mxu0 0.0
      %1989 = vmatpush1.xpose.msra.mxu0 0.0
      %1990 = vmatprep.subr.mxu0 0.0
      %1991 = vmatpush1.xpose.msra.mxu0 0.0
      %1992 = vmatprep.subr.mxu0 0.0
      %1993 = vmatpush1.xpose.msra.mxu0 0.0
      %1994 = vmatprep.subr.mxu0 0.0
      %1995 = vmatpush1.xpose.msra.mxu0 0.0
      %1996 = vmatprep.subr.mxu0 0.0
      %1997 = vmatpush1.xpose.msra.mxu0 0.0
      %1998 = vmatprep.subr.mxu0 0.0
      %1999 = vmatpush1.xpose.msra.mxu0 0.0
      %2000 = vmatprep.subr.mxu0 0.0
      %2001 = vmatpush1.xpose.msra.mxu0 0.0
      %2002 = vmatprep.subr.mxu0 0.0
      %2003 = vmatpush1.xpose.msra.mxu0 0.0
      %2004 = vmatprep.subr.mxu0 0.0
      %2005 = vmatpush1.xpose.msra.mxu0 0.0
      %2006 = vmatprep.subr.mxu0 0.0
      %2007 = vmatpush1.xpose.msra.mxu0 0.0
      %2008 = vmatprep.subr.mxu0 0.0
      %2009 = vmatpush1.xpose.msra.mxu0 0.0
      %2010 = vmatprep.subr.mxu0 0.0
      %2011 = vmatpush1.xpose.msra.mxu0 0.0
      %2012 = vmatprep.mubr.f32.mxu0 0.0
      %2013 = vmatmul.mubr.f32.gmra.mrb[0].mxu0 %v1940
      %v2014 = vpop.f32.mrb[0].mxu0
      %v2015 = vadd.f32 0.0, %v2014
      %v2016 = vpop.f32.mrb[0].mxu0
      %2017 = vdwg.mxu0
      %v2018 = vsel %vm565, -1e+09, %v2015
      %v2019 = vsel %vm923, %v2018, -inf
      %2020 = vmax.xlane.f32.xlu0 %v2019
      %v2021 = vpop.xlane.xlu0 %2020
      %v2022 = vsub.f32 %v2018, %v2021
      %v2023 = vmul.f32 %v2022, 1.442695
      %v2024 = vpow.pop %v2023
      %v2025 = vsel %vm923, %v2024, 0.0
      %2026 = vadd.xlane.f32.xlu0 %v2025
      %v2027 = vpop.xlane.xlu0 %2026
      %v2028 = vrcp.pop %v2027
      %v2029 = vmul.f32 %v2024, %v2028
      %2033 = vrot.lane.b32.xlu0 %v1752, 112
      %v2034 = vpop.permute.xlu0 %2033
      %2035 = vrot.lane.b32.xlu0 %v1757, 112
      %v2036 = vpop.permute.xlu0 %2035
      %2037 = vrot.lane.b32.xlu0 %v1762, 112
      %v2038 = vpop.permute.xlu0 %2037
      %v2043 = vsel %vm935, %v2029, 0
      %2045 = vmatprep.subr.mxu0 0.0
      %2046 = vmatpush1.msra.mxu0 %v2034
      %2047 = vmatprep.subr.mxu0 0.0
      %2048 = vmatpush1.msra.mxu0 %v2036
      %2049 = vmatprep.subr.mxu0 0.0
      %2050 = vmatpush1.msra.mxu0 %v2038
      %2051 = vmatprep.subr.mxu0 0.0
      %2052 = vmatpush1.msra.mxu0 0.0
      %2053 = vmatprep.subr.mxu0 0.0
      %2054 = vmatpush1.msra.mxu0 0.0
      %2055 = vmatprep.subr.mxu0 0.0
      %2056 = vmatpush1.msra.mxu0 0.0
      %2057 = vmatprep.subr.mxu0 0.0
      %2058 = vmatpush1.msra.mxu0 0.0
      %2059 = vmatprep.subr.mxu0 0.0
      %2060 = vmatpush1.msra.mxu0 0.0
      %2061 = vmatprep.subr.mxu0 0.0
      %2062 = vmatpush1.msra.mxu0 0.0
      %2063 = vmatprep.subr.mxu0 0.0
      %2064 = vmatpush1.msra.mxu0 0.0
      %2065 = vmatprep.subr.mxu0 0.0
      %2066 = vmatpush1.msra.mxu0 0.0
      %2067 = vmatprep.subr.mxu0 0.0
      %2068 = vmatpush1.msra.mxu0 0.0
      %2069 = vmatprep.subr.mxu0 0.0
      %2070 = vmatpush1.msra.mxu0 0.0
      %2071 = vmatprep.subr.mxu0 0.0
      %2072 = vmatpush1.msra.mxu0 0.0
      %2073 = vmatprep.subr.mxu0 0.0
      %2074 = vmatpush1.msra.mxu0 0.0
      %2075 = vmatprep.subr.mxu0 0.0
      %2076 = vmatpush1.msra.mxu0 0.0
      %2077 = vmatprep.subr.mxu0 0.0
      %2078 = vmatpush1.msra.mxu0 0.0
      %2079 = vmatprep.subr.mxu0 0.0
      %2080 = vmatpush1.msra.mxu0 0.0
      %2081 = vmatprep.subr.mxu0 0.0
      %2082 = vmatpush1.msra.mxu0 0.0
      %2083 = vmatprep.subr.mxu0 0.0
      %2084 = vmatpush1.msra.mxu0 0.0
      %2085 = vmatprep.subr.mxu0 0.0
      %2086 = vmatpush1.msra.mxu0 0.0
      %2087 = vmatprep.subr.mxu0 0.0
      %2088 = vmatpush1.msra.mxu0 0.0
      %2089 = vmatprep.subr.mxu0 0.0
      %2090 = vmatpush1.msra.mxu0 0.0
      %2091 = vmatprep.subr.mxu0 0.0
      %2092 = vmatpush1.msra.mxu0 0.0
      %2093 = vmatprep.subr.mxu0 0.0
      %2094 = vmatpush1.msra.mxu0 0.0
      %2095 = vmatprep.subr.mxu0 0.0
      %2096 = vmatpush1.msra.mxu0 0.0
      %2097 = vmatprep.subr.mxu0 0.0
      %2098 = vmatpush1.msra.mxu0 0.0
      %2099 = vmatprep.subr.mxu0 0.0
      %2100 = vmatpush1.msra.mxu0 0.0
      %2101 = vmatprep.subr.mxu0 0.0
      %2102 = vmatpush1.msra.mxu0 0.0
      %2103 = vmatprep.subr.mxu0 0.0
      %2104 = vmatpush1.msra.mxu0 0.0
      %2105 = vmatprep.subr.mxu0 0.0
      %2106 = vmatpush1.msra.mxu0 0.0
      %2107 = vmatprep.subr.mxu0 0.0
      %2108 = vmatpush1.msra.mxu0 0.0
      %2109 = vmatprep.mubr.f32.mxu0 0.0
      %2110 = vmatmul.mubr.f32.gmra.mrb[0].mxu0 %v2043
      %v2111 = vpop.f32.mrb[0].mxu0
      %v2112 = vadd.f32 0.0, %v2111
      %v2113 = vpop.f32.mrb[0].mxu0
      %2114 = vdwg.mxu0
      %2116 = vrot.lane.b32.xlu0 %v2112, 16
      %v2117 = vpop.permute.xlu0 %2116
      %v2119 = vsel %vm839, %v1929, %v2117
      %s2120 = scalar_lea.vmem %s5, 224
      %v2121 = vld [vmem:[%s2120] sm:$0xff]
      %v2122 = vld [vmem:[%s2120 + $0x8] sm:$0xff]
      %v2123 = vld [vmem:[%s2120 + $0x10] sm:$0xff]
      %v2124 = vld [vmem:[%s2120 + $0x18] sm:$0xff]
      %v2125 = vlaneseq
      %v2126 = vshrl.u32 %v2125, 7
      %v2127 = vsub.s32 3, %v2126
      %v2128 = vrot.slane %v1500, %v2127
      %v2130 = vsel %vm577, %v2119, 0
      %2132 = vmatprep.subr.mxu0 0.0
      %2133 = vmatpush1.msra.mxu0 %v2121
      %2134 = vmatprep.subr.mxu0 0.0
      %2135 = vmatpush1.msra.mxu0 %v2122
      %2136 = vmatprep.subr.mxu0 0.0
      %2137 = vmatpush1.msra.mxu0 %v2123
      %2138 = vmatprep.subr.mxu0 0.0
      %2139 = vmatpush1.msra.mxu0 %v2124
      %2140 = vmatprep.subr.mxu0 0.0
      %2141 = vmatpush1.msra.mxu0 0.0
      %2142 = vmatprep.subr.mxu0 0.0
      %2143 = vmatpush1.msra.mxu0 0.0
      %2144 = vmatprep.subr.mxu0 0.0
      %2145 = vmatpush1.msra.mxu0 0.0
      %2146 = vmatprep.subr.mxu0 0.0
      %2147 = vmatpush1.msra.mxu0 0.0
      %2148 = vmatprep.subr.mxu0 0.0
      %2149 = vmatpush1.msra.mxu0 0.0
      %2150 = vmatprep.subr.mxu0 0.0
      %2151 = vmatpush1.msra.mxu0 0.0
      %2152 = vmatprep.subr.mxu0 0.0
      %2153 = vmatpush1.msra.mxu0 0.0
      %2154 = vmatprep.subr.mxu0 0.0
      %2155 = vmatpush1.msra.mxu0 0.0
      %2156 = vmatprep.subr.mxu0 0.0
      %2157 = vmatpush1.msra.mxu0 0.0
      %2158 = vmatprep.subr.mxu0 0.0
      %2159 = vmatpush1.msra.mxu0 0.0
      %2160 = vmatprep.subr.mxu0 0.0
      %2161 = vmatpush1.msra.mxu0 0.0
      %2162 = vmatprep.subr.mxu0 0.0
      %2163 = vmatpush1.msra.mxu0 0.0
      %2164 = vmatprep.subr.mxu0 0.0
      %2165 = vmatpush1.msra.mxu0 0.0
      %2166 = vmatprep.subr.mxu0 0.0
      %2167 = vmatpush1.msra.mxu0 0.0
      %2168 = vmatprep.subr.mxu0 0.0
      %2169 = vmatpush1.msra.mxu0 0.0
      %2170 = vmatprep.subr.mxu0 0.0
      %2171 = vmatpush1.msra.mxu0 0.0
      %2172 = vmatprep.subr.mxu0 0.0
      %2173 = vmatpush1.msra.mxu0 0.0
      %2174 = vmatprep.subr.mxu0 0.0
      %2175 = vmatpush1.msra.mxu0 0.0
      %2176 = vmatprep.subr.mxu0 0.0
      %2177 = vmatpush1.msra.mxu0 0.0
      %2178 = vmatprep.subr.mxu0 0.0
      %2179 = vmatpush1.msra.mxu0 0.0
      %2180 = vmatprep.subr.mxu0 0.0
      %2181 = vmatpush1.msra.mxu0 0.0
      %2182 = vmatprep.subr.mxu0 0.0
      %2183 = vmatpush1.msra.mxu0 0.0
      %2184 = vmatprep.subr.mxu0 0.0
      %2185 = vmatpush1.msra.mxu0 0.0
      %2186 = vmatprep.subr.mxu0 0.0
      %2187 = vmatpush1.msra.mxu0 0.0
      %2188 = vmatprep.subr.mxu0 0.0
      %2189 = vmatpush1.msra.mxu0 0.0
      %2190 = vmatprep.subr.mxu0 0.0
      %2191 = vmatpush1.msra.mxu0 0.0
      %2192 = vmatprep.subr.mxu0 0.0
      %2193 = vmatpush1.msra.mxu0 0.0
      %2194 = vmatprep.subr.mxu0 0.0
      %2195 = vmatpush1.msra.mxu0 0.0
      %2196 = vmatprep.mubr.f32.mxu0 0.0
      %2197 = vmatmul.mubr.f32.gmra.mrb[0].mxu0 %v2130
      %v2198 = vpop.f32.mrb[0].mxu0
      %v2199 = vadd.f32 %v2128, %v2198
      %v2200 = vpop.f32.mrb[0].mxu0
      %2201 = vdwg.mxu0
      %v2202 = vadd.f32 %v1498, %v2199
      %v2203 = vsel %vm1280, %v2202, 0.0
      %2204 = vadd.xlane.f32.xlu0 %v2203
      %v2205 = vpop.xlane.xlu0 %2204
      %v2206 = vmul.f32 %v2205, %v1284
      %v2207 = vsub.f32 %v2202, %v2206
      %v2208 = vmul.f32 %v2207, %v2207
      %v2209 = vsel %vm1280, %v2208, 0.0
      %2210 = vadd.xlane.f32.xlu0 %v2209
      %v2211 = vpop.xlane.xlu0 %2210
      %v2212 = vmul.f32 %v2211, %v1284
      %v2213 = vadd.f32 %v2212, 1e-05
      %v2214 = vrsqrt.pop %v2213
      %v2215 = vmul.f32 %v2207, %v2214
      %v2216 = vlaneseq
      %v2217 = vshrl.u32 %v2216, 7
      %v2218 = vsub.s32 4, %v2217
      %v2219 = vrot.slane %v1500, %v2218
      %v2220 = vmul.f32 %v2215, %v2219
      %v2221 = vlaneseq
      %v2222 = vshrl.u32 %v2221, 7
      %v2223 = vsub.s32 5, %v2222
      %v2224 = vrot.slane %v1500, %v2223
      %v2225 = vadd.f32 %v2220, %v2224
      %s2226 = scalar_lea.vmem %s6, 32
      %v2227 = vld [vmem:[%s2226] sm:$0xff]
      %v2228 = vld [vmem:[%s2226 + $0x8] sm:$0xff]
      %v2229 = vld [vmem:[%s2226 + $0x10] sm:$0xff]
      %v2230 = vld [vmem:[%s2226 + $0x18] sm:$0xff]
      %v2232 = vlaneseq
      %v2233 = vshrl.u32 %v2232, 7
      %v2234 = vsub.s32 0, %v2233
      %v2235 = vrot.slane %v1503, %v2234
      %v2238 = vsel %vm577, %v2225, 0
      %2240 = vmatprep.subr.mxu0 0.0
      %2241 = vmatpush1.msra.mxu0 %v2227
      %2242 = vmatprep.subr.mxu0 0.0
      %2243 = vmatpush1.msra.mxu0 %v2228
      %2244 = vmatprep.subr.mxu0 0.0
      %2245 = vmatpush1.msra.mxu0 %v2229
      %2246 = vmatprep.subr.mxu0 0.0
      %2247 = vmatpush1.msra.mxu0 %v2230
      %2248 = vmatprep.subr.mxu0 0.0
      %2249 = vmatpush1.msra.mxu0 0.0
      %2250 = vmatprep.subr.mxu0 0.0
      %2251 = vmatpush1.msra.mxu0 0.0
      %2252 = vmatprep.subr.mxu0 0.0
      %2253 = vmatpush1.msra.mxu0 0.0
      %2254 = vmatprep.subr.mxu0 0.0
      %2255 = vmatpush1.msra.mxu0 0.0
      %2256 = vmatprep.subr.mxu0 0.0
      %2257 = vmatpush1.msra.mxu0 0.0
      %2258 = vmatprep.subr.mxu0 0.0
      %2259 = vmatpush1.msra.mxu0 0.0
      %2260 = vmatprep.subr.mxu0 0.0
      %2261 = vmatpush1.msra.mxu0 0.0
      %2262 = vmatprep.subr.mxu0 0.0
      %2263 = vmatpush1.msra.mxu0 0.0
      %2264 = vmatprep.subr.mxu0 0.0
      %2265 = vmatpush1.msra.mxu0 0.0
      %2266 = vmatprep.subr.mxu0 0.0
      %2267 = vmatpush1.msra.mxu0 0.0
      %2268 = vmatprep.subr.mxu0 0.0
      %2269 = vmatpush1.msra.mxu0 0.0
      %2270 = vmatprep.subr.mxu0 0.0
      %2271 = vmatpush1.msra.mxu0 0.0
      %2272 = vmatprep.subr.mxu0 0.0
      %2273 = vmatpush1.msra.mxu0 0.0
      %2274 = vmatprep.subr.mxu0 0.0
      %2275 = vmatpush1.msra.mxu0 0.0
      %2276 = vmatprep.subr.mxu0 0.0
      %2277 = vmatpush1.msra.mxu0 0.0
      %2278 = vmatprep.subr.mxu0 0.0
      %2279 = vmatpush1.msra.mxu0 0.0
      %2280 = vmatprep.subr.mxu0 0.0
      %2281 = vmatpush1.msra.mxu0 0.0
      %2282 = vmatprep.subr.mxu0 0.0
      %2283 = vmatpush1.msra.mxu0 0.0
      %2284 = vmatprep.subr.mxu0 0.0
      %2285 = vmatpush1.msra.mxu0 0.0
      %2286 = vmatprep.subr.mxu0 0.0
      %2287 = vmatpush1.msra.mxu0 0.0
      %2288 = vmatprep.subr.mxu0 0.0
      %2289 = vmatpush1.msra.mxu0 0.0
      %2290 = vmatprep.subr.mxu0 0.0
      %2291 = vmatpush1.msra.mxu0 0.0
      %2292 = vmatprep.subr.mxu0 0.0
      %2293 = vmatpush1.msra.mxu0 0.0
      %2294 = vmatprep.subr.mxu0 0.0
      %2295 = vmatpush1.msra.mxu0 0.0
      %2296 = vmatprep.subr.mxu0 0.0
      %2297 = vmatpush1.msra.mxu0 0.0
      %2298 = vmatprep.subr.mxu0 0.0
      %2299 = vmatpush1.msra.mxu0 0.0
      %2300 = vmatprep.subr.mxu0 0.0
      %2301 = vmatpush1.msra.mxu0 0.0
      %2302 = vmatprep.subr.mxu0 0.0
      %2303 = vmatpush1.msra.mxu0 0.0
      %2304 = vmatprep.mubr.f32.mxu0 0.0
      %2305 = vmatmul.mubr.f32.gmra.mrb[0].mxu0 %v2238
      %v2306 = vpop.f32.mrb[0].mxu0
      %v2307 = vadd.f32 %v2235, %v2306
      %v2308 = vpop.f32.mrb[0].mxu0
      %2309 = vdwg.mxu0
      %v2310 = vmax.f32 %v2307, 0.0
      %s2311 = scalar_lea.vmem %s7, 64
      %v2312 = vld [vmem:[%s2311] sm:$0xff]
      %v2313 = vld [vmem:[%s2311 + $0x8] sm:$0xff]
      %v2314 = vld [vmem:[%s2311 + $0x10] sm:$0xff]
      %v2315 = vld [vmem:[%s2311 + $0x18] sm:$0xff]
      %v2316 = vld [vmem:[%s2311 + $0x20] sm:$0xff]
      %v2317 = vld [vmem:[%s2311 + $0x28] sm:$0xff]
      %v2318 = vld [vmem:[%s2311 + $0x30] sm:$0xff]
      %v2319 = vld [vmem:[%s2311 + $0x38] sm:$0xff]
      %v2320 = vlaneseq
      %v2321 = vshrl.u32 %v2320, 7
      %v2322 = vsub.s32 6, %v2321
      %v2323 = vrot.slane %v1500, %v2322
      %v2325 = vsel %vm1401, %v2310, 0
      %2327 = vmatprep.subr.mxu0 0.0
      %2328 = vmatpush1.msra.mxu0 %v2312
      %2329 = vmatprep.subr.mxu0 0.0
      %2330 = vmatpush1.msra.mxu0 %v2313
      %2331 = vmatprep.subr.mxu0 0.0
      %2332 = vmatpush1.msra.mxu0 %v2314
      %2333 = vmatprep.subr.mxu0 0.0
      %2334 = vmatpush1.msra.mxu0 %v2315
      %2335 = vmatprep.subr.mxu0 0.0
      %2336 = vmatpush1.msra.mxu0 %v2316
      %2337 = vmatprep.subr.mxu0 0.0
      %2338 = vmatpush1.msra.mxu0 %v2317
      %2339 = vmatprep.subr.mxu0 0.0
      %2340 = vmatpush1.msra.mxu0 %v2318
      %2341 = vmatprep.subr.mxu0 0.0
      %2342 = vmatpush1.msra.mxu0 %v2319
      %2343 = vmatprep.subr.mxu0 0.0
      %2344 = vmatpush1.msra.mxu0 0.0
      %2345 = vmatprep.subr.mxu0 0.0
      %2346 = vmatpush1.msra.mxu0 0.0
      %2347 = vmatprep.subr.mxu0 0.0
      %2348 = vmatpush1.msra.mxu0 0.0
      %2349 = vmatprep.subr.mxu0 0.0
      %2350 = vmatpush1.msra.mxu0 0.0
      %2351 = vmatprep.subr.mxu0 0.0
      %2352 = vmatpush1.msra.mxu0 0.0
      %2353 = vmatprep.subr.mxu0 0.0
      %2354 = vmatpush1.msra.mxu0 0.0
      %2355 = vmatprep.subr.mxu0 0.0
      %2356 = vmatpush1.msra.mxu0 0.0
      %2357 = vmatprep.subr.mxu0 0.0
      %2358 = vmatpush1.msra.mxu0 0.0
      %2359 = vmatprep.subr.mxu0 0.0
      %2360 = vmatpush1.msra.mxu0 0.0
      %2361 = vmatprep.subr.mxu0 0.0
      %2362 = vmatpush1.msra.mxu0 0.0
      %2363 = vmatprep.subr.mxu0 0.0
      %2364 = vmatpush1.msra.mxu0 0.0
      %2365 = vmatprep.subr.mxu0 0.0
      %2366 = vmatpush1.msra.mxu0 0.0
      %2367 = vmatprep.subr.mxu0 0.0
      %2368 = vmatpush1.msra.mxu0 0.0
      %2369 = vmatprep.subr.mxu0 0.0
      %2370 = vmatpush1.msra.mxu0 0.0
      %2371 = vmatprep.subr.mxu0 0.0
      %2372 = vmatpush1.msra.mxu0 0.0
      %2373 = vmatprep.subr.mxu0 0.0
      %2374 = vmatpush1.msra.mxu0 0.0
      %2375 = vmatprep.subr.mxu0 0.0
      %2376 = vmatpush1.msra.mxu0 0.0
      %2377 = vmatprep.subr.mxu0 0.0
      %2378 = vmatpush1.msra.mxu0 0.0
      %2379 = vmatprep.subr.mxu0 0.0
      %2380 = vmatpush1.msra.mxu0 0.0
      %2381 = vmatprep.subr.mxu0 0.0
      %2382 = vmatpush1.msra.mxu0 0.0
      %2383 = vmatprep.subr.mxu0 0.0
      %2384 = vmatpush1.msra.mxu0 0.0
      %2385 = vmatprep.subr.mxu0 0.0
      %2386 = vmatpush1.msra.mxu0 0.0
      %2387 = vmatprep.subr.mxu0 0.0
      %2388 = vmatpush1.msra.mxu0 0.0
      %2389 = vmatprep.subr.mxu0 0.0
      %2390 = vmatpush1.msra.mxu0 0.0
      %2391 = vmatprep.mubr.f32.mxu0 0.0
      %2392 = vmatmul.mubr.f32.gmra.mrb[0].mxu0 %v2325
      %v2393 = vpop.f32.mrb[0].mxu0
      %v2394 = vadd.f32 %v2323, %v2393
      %v2395 = vpop.f32.mrb[0].mxu0
      %2396 = vdwg.mxu0
      %v2397 = vadd.f32 %v2225, %v2394
      %v2398 = vsel %vm1280, %v2397, 0.0
      %2399 = vadd.xlane.f32.xlu0 %v2398
      %v2400 = vpop.xlane.xlu0 %2399
      %v2401 = vmul.f32 %v2400, %v1284
      %v2402 = vsub.f32 %v2397, %v2401
      %v2403 = vmul.f32 %v2402, %v2402
      %v2404 = vsel %vm1280, %v2403, 0.0
      %2405 = vadd.xlane.f32.xlu0 %v2404
      %v2406 = vpop.xlane.xlu0 %2405
      %v2407 = vmul.f32 %v2406, %v1284
      %v2408 = vadd.f32 %v2407, 1e-05
      %v2409 = vrsqrt.pop %v2408
      %v2410 = vmul.f32 %v2402, %v2409
      %v2411 = vlaneseq
      %v2412 = vshrl.u32 %v2411, 7
      %v2413 = vsub.s32 7, %v2412
      %v2414 = vrot.slane %v1500, %v2413
      %v2415 = vmul.f32 %v2410, %v2414
      %v2416 = vlaneseq
      %v2417 = vshrl.u32 %v2416, 7
      %v2418 = vsub.s32 0, %v2417
      %v2419 = vrot.slane %v1501, %v2418
      %v2420 = vadd.f32 %v2415, %v2419
      %2421 = vst.msk [vmem:[%s391] sm:$0x7] %vm1280, %v2420
      %p2422 = scmp.lt.s32.totalorder %s21, 1
      %s2423 = scalar_select %p2422, %s21, 1
      %s2424 = smul.addr %s2423, 4
      %s2425 = scalar_lea.vmem %s10, %s2424
      // Predicated region
      $region61: #{pairwise_interaction_transformer.1} parent=59 // pred_check
        %p2426 = pneg %p264
      $region62: #{pairwise_interaction_transformer.1} parent=59 // pred_check_branch
        %2428 = sbr.rel (%p2426) target = $region64
      $region63: #{pairwise_interaction_transformer.1} parent=59 // pred_region
        _
      $region64: #{pairwise_interaction_transformer.1} parent=59 // pred_fallthru
        _
    $region60: #{pairwise_interaction_transformer.1} parent=5 // pred_fallthru
      _
    %p2429 = scmp.le.s32.totalorder 2, %s16
    // Predicated region
    $region65: #{pairwise_interaction_transformer.1} parent=5 // pred_check
      %p2430 = pneg %p2429
    $region66: #{pairwise_interaction_transformer.1} parent=5 // pred_check_branch
      %2432 = sbr.rel (%p2430) target = $region68
    $region67: #{pairwise_interaction_transformer.1} parent=5 // pred_region
      %s2433 = ssub.s32 %s16, 2
      // Predicated region
      $region69: #{pairwise_interaction_transformer.1} parent=67 // pred_check
        %p2434 = pneg %p270
      $region70: #{pairwise_interaction_transformer.1} parent=67 // pred_check_branch
        %2436 = sbr.rel (%p2434) target = $region72
      $region71: #{pairwise_interaction_transformer.1} parent=67 // pred_region
        %p2437 = scmp.lt.s32.totalorder %s22, 1
        %s2438 = scalar_select %p2437, %s22, 1
        %s2439 = smul.addr %s2438, 4
        %s2440 = scalar_lea.vmem %s10, %s2439
      $region72: #{pairwise_interaction_transformer.1} parent=67 // pred_fallthru
        _
    $region68: #{pairwise_interaction_transformer.1} parent=5 // pred_fallthru
      _
  $region6: #{pairwise_interaction_transformer.1} parent=0 // loop_footer
    %s20 = sadd.s32 1, %s16
  $region7: #{pairwise_interaction_transformer.1} parent=0 // loop_footer_branch
    %15 = sbr.rel target = $region3
  $region8: #{pairwise_interaction_transformer.1} parent=0 // loop_exit
    _

</llo_original>
